<compile_context>
chip_gen: v5e
topology: v5e:2x2
jax: 0.10.0
libtpu: 0.0.40
codegen_flags: <defaults>
</compile_context>

<pallas_src>
import functools
import math

import jax
import jax.numpy as jnp
from jax.experimental import pallas as pl
from jax.experimental.pallas import tpu as pltpu

# ----------------------------- tiny BERT config ------------------------------
VOCAB = 100
VOCAB_PAD = 128     # word_emb rows zero-padded for an aligned one-hot gather matmul
TYPE_VOCAB = 2
MAX_POS = 64
HIDDEN = 32
N_HEADS = 4
D_HEAD = HIDDEN // N_HEADS
INTER = 64
N_LAYERS = 2
NUM_CLASSES = 2
LN_EPS = 1e-12
CPAD = 128          # lane-dense padded class dimension for the final store
OUT_ROWS = 8        # sublane-padded rows of the per-batch output tile


# ------------------------------ fused Pallas kernel --------------------------
def _bert_fused_kernel(
    seq_len,
    ids_ref, mask_ref,              # SMEM (B, S) int32 (scalar prefetch)
    word_emb_ref, pos_emb_ref, type_emb_ref,
    emb_ln_g_ref, emb_ln_b_ref,
    qkv_w_ref, qkv_b_ref,           # (L, H, 3H) head-major, (L, 1, 3H)
    o_w_ref, o_b_ref,               # (L, H, H),  (L, 1, H)
    ln1_g_ref, ln1_b_ref,           # (L, 1, H)
    i_w_ref, i_b_ref,               # (L, H, I),  (L, 1, I)
    f_w_ref, f_b_ref,               # (L, I, H),  (L, 1, H)
    ln2_g_ref, ln2_b_ref,           # (L, 1, H)
    pool_w_ref, pool_b_ref,         # (H, H), (1, H)
    fc_w_ref, fc_b_ref,             # (H, CPAD), (1, CPAD)  (zero-padded)
    out_ref,                        # (OUT_ROWS, CPAD) per grid point
):
    f32 = jnp.float32
    S = seq_len
    b = pl.program_id(0)

    def layer_norm(x, g, beta):
        mean = jnp.mean(x, axis=-1, keepdims=True)
        var = jnp.mean((x - mean) ** 2, axis=-1, keepdims=True)
        return (x - mean) * jax.lax.rsqrt(var + LN_EPS) * g + beta

    def gelu(x):                                    # exact (erf) GELU, as in BERT
        return 0.5 * x * (1.0 + jax.lax.erf(x * (1.0 / math.sqrt(2.0))))

    # ---- in-kernel embedding gather (one-hot @ table; MXU is otherwise idle) --
    row_iota = jax.lax.broadcasted_iota(jnp.int32, (S, 1), 0)
    key_iota = jax.lax.broadcasted_iota(jnp.int32, (1, S), 1)
    id_col = jnp.zeros((S, 1), jnp.int32)
    key_mask = jnp.zeros((1, S), f32)
    for s in range(S):                              # S=8 static scalar reads from SMEM
        id_col = jnp.where(row_iota == s, ids_ref[b, s], id_col)
        key_mask = jnp.where(key_iota == s, mask_ref[b, s].astype(f32), key_mask)

    vocab_iota = jax.lax.broadcasted_iota(jnp.int32, (S, VOCAB_PAD), 1)
    onehot = (vocab_iota == id_col).astype(f32)                      # (S, VOCAB_PAD)
    emb = jnp.dot(onehot, word_emb_ref[...], preferred_element_type=f32)
    # token_type_ids hard-coded to type 0 (matches the reference call).
    emb = emb + pos_emb_ref[0:S, :] + type_emb_ref[0:1, :]
    h = layer_norm(emb, emb_ln_g_ref[...], emb_ln_b_ref[...])

    # Per-batch (1, S) additive key-padding bias: (1 - mask) * -1e9.
    bias = (1.0 - key_mask) * -1e9

    scale = 1.0 / math.sqrt(D_HEAD)
    for l in range(N_LAYERS):                       # static unroll, weights in VMEM
        # Fused head-major QKV projection: (S, H) @ (H, 3H) + (1, 3H)
        qkv = jnp.dot(h, qkv_w_ref[l], preferred_element_type=f32) + qkv_b_ref[l]
        o_w = o_w_ref[l]                            # (H, H)

        attn = jnp.zeros((S, HIDDEN), f32)
        for hd in range(N_HEADS):
            g0 = hd * 3 * D_HEAD                    # contiguous [q_h | k_h | v_h] group
            qh = qkv[:, g0:g0 + D_HEAD]
            kh = qkv[:, g0 + D_HEAD:g0 + 2 * D_HEAD]
            vh = qkv[:, g0 + 2 * D_HEAD:g0 + 3 * D_HEAD]
            s_ = jax.lax.dot_general(qh, kh, (((1,), (1,)), ((), ())),
                                     preferred_element_type=f32) * scale + bias
            # Keep the max-subtraction: NaN-safety for fully-masked rows.
            s_ = s_ - jnp.max(s_, axis=-1, keepdims=True)
            p = jnp.exp(s_)
            p = p * pl.reciprocal(jnp.sum(p, axis=-1, keepdims=True), approx=True)
            ctx = jnp.dot(p, vh, preferred_element_type=f32)         # (S, dh)
            # Head-merge fused into the output projection (no lane concat).
            attn = attn + jnp.dot(ctx, o_w[hd * D_HEAD:(hd + 1) * D_HEAD, :],
                                  preferred_element_type=f32)
        attn = attn + o_b_ref[l]
        h = layer_norm(attn + h, ln1_g_ref[l], ln1_b_ref[l])

        inter = gelu(jnp.dot(h, i_w_ref[l], preferred_element_type=f32) + i_b_ref[l])
        ff = jnp.dot(inter, f_w_ref[l], preferred_element_type=f32) + f_b_ref[l]
        h = layer_norm(ff + h, ln2_g_ref[l], ln2_b_ref[l])

    # ---- CLS-only pooler (tanh) + classifier ----------------------------------
    cls = h[0:1, :]                                                   # (1, H)
    pooled = jnp.tanh(jnp.dot(cls, pool_w_ref[...], preferred_element_type=f32)
                      + pool_b_ref[...])
    # Dropout(p=0.1): identity for the deterministic (inference) forward.
    logits = jnp.dot(pooled, fc_w_ref[...], preferred_element_type=f32) + fc_b_ref[...]
    out_ref[...] = jnp.broadcast_to(logits, (OUT_ROWS, CPAD)).astype(out_ref.dtype)


def _const_spec(shape):
    """Full-array VMEM block, constant block index (stays resident across grid)."""
    nd = len(shape)
    return pl.BlockSpec(shape, lambda *args, _nd=nd: (0,) * _nd)


# ------------------------------ parameter init --------------------------------
def init_params(key):
    keys = iter(jax.random.split(key, 64))

    def nrm(shape):
        return jax.random.normal(next(keys), shape, jnp.float32) * 0.02

    def zeros(shape):
        return jnp.zeros(shape, jnp.float32)

    def ones(shape):
        return jnp.ones(shape, jnp.float32)

    p = {
        "word_emb": nrm((VOCAB, HIDDEN)),
        "pos_emb": nrm((MAX_POS, HIDDEN)),
        "type_emb": nrm((TYPE_VOCAB, HIDDEN)),
        "emb_ln_g": ones((HIDDEN,)),
        "emb_ln_b": zeros((HIDDEN,)),
        "layers": [],
        "pool_w": nrm((HIDDEN, HIDDEN)),
        "pool_b": zeros((HIDDEN,)),
        "fc_w": nrm((HIDDEN, NUM_CLASSES)),
        "fc_b": zeros((NUM_CLASSES,)),
    }
    for _ in range(N_LAYERS):
        p["layers"].append({
            "q_w": nrm((HIDDEN, HIDDEN)), "q_b": zeros((HIDDEN,)),
            "k_w": nrm((HIDDEN, HIDDEN)), "k_b": zeros((HIDDEN,)),
            "v_w": nrm((HIDDEN, HIDDEN)), "v_b": zeros((HIDDEN,)),
            "o_w": nrm((HIDDEN, HIDDEN)), "o_b": zeros((HIDDEN,)),
            "ln1_g": ones((HIDDEN,)), "ln1_b": zeros((HIDDEN,)),
            "i_w": nrm((HIDDEN, INTER)), "i_b": zeros((INTER,)),
            "f_w": nrm((INTER, HIDDEN)), "f_b": zeros((HIDDEN,)),
            "ln2_g": ones((HIDDEN,)), "ln2_b": zeros((HIDDEN,)),
        })
    return p


def pack_params(p):
    """One-time repack: stack layers, head-major QKV concat, biases to (1, N),
    zero-pad word_emb rows to VOCAB_PAD and fc to a lane-dense (H, CPAD)."""
    layers = p["layers"]

    def stack_w(name):
        return jnp.stack([lp[name] for lp in layers])

    def stack_b(name):
        return jnp.stack([lp[name][None, :] for lp in layers])

    def head_major_qkv_w(lp):
        cols = []
        for hd in range(N_HEADS):
            sl = slice(hd * D_HEAD, (hd + 1) * D_HEAD)
            cols += [lp["q_w"][:, sl], lp["k_w"][:, sl], lp["v_w"][:, sl]]
        return jnp.concatenate(cols, axis=1)                          # (H, 3H)

    def head_major_qkv_b(lp):
        cols = []
        for hd in range(N_HEADS):
            sl = slice(hd * D_HEAD, (hd + 1) * D_HEAD)
            cols += [lp["q_b"][sl], lp["k_b"][sl], lp["v_b"][sl]]
        return jnp.concatenate(cols)[None, :]                         # (1, 3H)

    qkv_w = jnp.stack([head_major_qkv_w(lp) for lp in layers])        # (L, H, 3H)
    qkv_b = jnp.stack([head_major_qkv_b(lp) for lp in layers])        # (L, 1, 3H)

    word_emb = jnp.zeros((VOCAB_PAD, HIDDEN), jnp.float32).at[:VOCAB].set(p["word_emb"])
    fc_w = jnp.zeros((HIDDEN, CPAD), jnp.float32).at[:, :NUM_CLASSES].set(p["fc_w"])
    fc_b = jnp.zeros((1, CPAD), jnp.float32).at[0, :NUM_CLASSES].set(p["fc_b"])

    return {
        "word_emb": word_emb, "pos_emb": p["pos_emb"], "type_emb": p["type_emb"],
        "emb_ln_g": p["emb_ln_g"][None, :], "emb_ln_b": p["emb_ln_b"][None, :],
        "qkv_w": qkv_w, "qkv_b": qkv_b,
        "o_w": stack_w("o_w"), "o_b": stack_b("o_b"),
        "ln1_g": stack_b("ln1_g"), "ln1_b": stack_b("ln1_b"),
        "i_w": stack_w("i_w"), "i_b": stack_b("i_b"),
        "f_w": stack_w("f_w"), "f_b": stack_b("f_b"),
        "ln2_g": stack_b("ln2_g"), "ln2_b": stack_b("ln2_b"),
        "pool_w": p["pool_w"], "pool_b": p["pool_b"][None, :],
        "fc_w": fc_w, "fc_b": fc_b,
    }


# ------------------------------ model forward ---------------------------------
@jax.jit
def bert_classifier_forward(packed, input_ids, attention_mask):
    B, S = input_ids.shape

    operands = [
        packed["word_emb"], packed["pos_emb"], packed["type_emb"],
        packed["emb_ln_g"], packed["emb_ln_b"],
        packed["qkv_w"], packed["qkv_b"],
        packed["o_w"], packed["o_b"],
        packed["ln1_g"], packed["ln1_b"],
        packed["i_w"], packed["i_b"],
        packed["f_w"], packed["f_b"],
        packed["ln2_g"], packed["ln2_b"],
        packed["pool_w"], packed["pool_b"],
        packed["fc_w"], packed["fc_b"],
    ]

    grid_spec = pltpu.PrefetchScalarGridSpec(
        num_scalar_prefetch=2,                 # input_ids, attention_mask -> SMEM
        grid=(B,),                             # one grid point per batch element
        in_specs=[_const_spec(op.shape) for op in operands],
        out_specs=pl.BlockSpec((None, OUT_ROWS, CPAD), lambda b, *_: (b, 0, 0)),
    )

    out = pl.pallas_call(
        functools.partial(_bert_fused_kernel, S),
        out_shape=jax.ShapeDtypeStruct((B, OUT_ROWS, CPAD), jnp.float32),
        grid_spec=grid_spec,
        compiler_params=pltpu.CompilerParams(dimension_semantics=("parallel",)),
    )(input_ids.astype(jnp.int32), attention_mask.astype(jnp.int32), *operands)

    # Row 0 holds the CLS logits per batch element; drop class padding.
    return out[:, 0, :NUM_CLASSES]


# ----------------------------------- main --------------------------------------
if __name__ == "__main__":
    key = jax.random.PRNGKey(0)
    k_param, k_ids = jax.random.split(key)

    B, S = 2, 8
    params = init_params(k_param)
    packed = pack_params(params)
    input_ids = jax.random.randint(k_ids, (B, S), 0, VOCAB, dtype=jnp.int32)
    attention_mask = jnp.ones((B, S), dtype=jnp.int32)

    logits = bert_classifier_forward(packed, input_ids, attention_mask)
    jax.block_until_ready(logits)
    assert logits.shape == (B, NUM_CLASSES) and logits.dtype == jnp.float32
    print("KERNEL_OK")
</pallas_src>

<mosaic_0001>
module attributes {stable_mosaic.version = 11 : i64} {
  func.func @_bert_fused_kernel(%arg0: i32, %arg1: memref<2x8xi32, #tpu.memory_space<smem>>, %arg2: memref<2x8xi32, #tpu.memory_space<smem>>, %arg3: memref<128x32xf32, #tpu.memory_space<vmem>>, %arg4: memref<64x32xf32, #tpu.memory_space<vmem>>, %arg5: memref<2x32xf32, #tpu.memory_space<vmem>>, %arg6: memref<1x32xf32, #tpu.memory_space<vmem>>, %arg7: memref<1x32xf32, #tpu.memory_space<vmem>>, %arg8: memref<2x32x96xf32, #tpu.memory_space<vmem>>, %arg9: memref<2x1x96xf32, #tpu.memory_space<vmem>>, %arg10: memref<2x32x32xf32, #tpu.memory_space<vmem>>, %arg11: memref<2x1x32xf32, #tpu.memory_space<vmem>>, %arg12: memref<2x1x32xf32, #tpu.memory_space<vmem>>, %arg13: memref<2x1x32xf32, #tpu.memory_space<vmem>>, %arg14: memref<2x32x64xf32, #tpu.memory_space<vmem>>, %arg15: memref<2x1x64xf32, #tpu.memory_space<vmem>>, %arg16: memref<2x64x32xf32, #tpu.memory_space<vmem>>, %arg17: memref<2x1x32xf32, #tpu.memory_space<vmem>>, %arg18: memref<2x1x32xf32, #tpu.memory_space<vmem>>, %arg19: memref<2x1x32xf32, #tpu.memory_space<vmem>>, %arg20: memref<32x32xf32, #tpu.memory_space<vmem>>, %arg21: memref<1x32xf32, #tpu.memory_space<vmem>>, %arg22: memref<32x128xf32, #tpu.memory_space<vmem>>, %arg23: memref<1x128xf32, #tpu.memory_space<vmem>>, %arg24: memref<1x8x128xf32, #tpu.memory_space<vmem>>) attributes {dimension_semantics = [#tpu.dimension_semantics<parallel>], iteration_bounds = array<i64: 2>, scalar_prefetch = 2 : i64, scratch_operands = 0 : i64, tpu.core_type = #tpu.core_type<tc>, window_params = [{pipeline_mode = #tpu.pipeline_mode<synchronous>, transform_indices = @transform_0, window_bounds = array<i64: 128, 32>}, {pipeline_mode = #tpu.pipeline_mode<synchronous>, transform_indices = @transform_1, window_bounds = array<i64: 64, 32>}, {pipeline_mode = #tpu.pipeline_mode<synchronous>, transform_indices = @transform_2, window_bounds = array<i64: 2, 32>}, {pipeline_mode = #tpu.pipeline_mode<synchronous>, transform_indices = @transform_3, window_bounds = array<i64: 1, 32>}, {pipeline_mode = #tpu.pipeline_mode<synchronous>, transform_indices = @transform_4, window_bounds = array<i64: 1, 32>}, {pipeline_mode = #tpu.pipeline_mode<synchronous>, transform_indices = @transform_5, window_bounds = array<i64: 2, 32, 96>}, {pipeline_mode = #tpu.pipeline_mode<synchronous>, transform_indices = @transform_6, window_bounds = array<i64: 2, 1, 96>}, {pipeline_mode = #tpu.pipeline_mode<synchronous>, transform_indices = @transform_7, window_bounds = array<i64: 2, 32, 32>}, {pipeline_mode = #tpu.pipeline_mode<synchronous>, transform_indices = @transform_8, window_bounds = array<i64: 2, 1, 32>}, {pipeline_mode = #tpu.pipeline_mode<synchronous>, transform_indices = @transform_9, window_bounds = array<i64: 2, 1, 32>}, {pipeline_mode = #tpu.pipeline_mode<synchronous>, transform_indices = @transform_10, window_bounds = array<i64: 2, 1, 32>}, {pipeline_mode = #tpu.pipeline_mode<synchronous>, transform_indices = @transform_11, window_bounds = array<i64: 2, 32, 64>}, {pipeline_mode = #tpu.pipeline_mode<synchronous>, transform_indices = @transform_12, window_bounds = array<i64: 2, 1, 64>}, {pipeline_mode = #tpu.pipeline_mode<synchronous>, transform_indices = @transform_13, window_bounds = array<i64: 2, 64, 32>}, {pipeline_mode = #tpu.pipeline_mode<synchronous>, transform_indices = @transform_14, window_bounds = array<i64: 2, 1, 32>}, {pipeline_mode = #tpu.pipeline_mode<synchronous>, transform_indices = @transform_15, window_bounds = array<i64: 2, 1, 32>}, {pipeline_mode = #tpu.pipeline_mode<synchronous>, transform_indices = @transform_16, window_bounds = array<i64: 2, 1, 32>}, {pipeline_mode = #tpu.pipeline_mode<synchronous>, transform_indices = @transform_17, window_bounds = array<i64: 32, 32>}, {pipeline_mode = #tpu.pipeline_mode<synchronous>, transform_indices = @transform_18, window_bounds = array<i64: 1, 32>}, {pipeline_mode = #tpu.pipeline_mode<synchronous>, transform_indices = @transform_19, window_bounds = array<i64: 32, 128>}, {pipeline_mode = #tpu.pipeline_mode<synchronous>, transform_indices = @transform_20, window_bounds = array<i64: 1, 128>}, {transform_indices = @transform_21, window_bounds = array<i64: 1, 8, 128>}]} {
    %0 = tpu.iota {dimensions = array<i32: 0>} : vector<8x1xi32>
    %1 = tpu.iota {dimensions = array<i32: 1>} : vector<1x8xi32>
    %c0_i32 = arith.constant 0 : i32
    %2 = vector.broadcast %c0_i32 : i32 to vector<8x1xi32>
    %cst = arith.constant 0.000000e+00 : f32
    %3 = vector.broadcast %cst : f32 to vector<1x8xf32>
    %c0_i32_0 = arith.constant 0 : i32
    %4 = vector.broadcast %c0_i32_0 : i32 to vector<8x1xi32>
    %5 = arith.cmpi eq, %0, %4 : vector<8x1xi32>
    %6 = arith.index_cast %arg0 : i32 to index
    %c0 = arith.constant 0 : index
    %7 = memref.load %arg1[%6, %c0] : memref<2x8xi32, #tpu.memory_space<smem>>
    %8 = vector.broadcast %7 : i32 to vector<8x1xi32>
    %9 = arith.select %5, %8, %2 : vector<8x1xi1>, vector<8x1xi32>
    %c0_i32_1 = arith.constant 0 : i32
    %10 = vector.broadcast %c0_i32_1 : i32 to vector<1x8xi32>
    %11 = arith.cmpi eq, %1, %10 : vector<1x8xi32>
    %12 = arith.index_cast %arg0 : i32 to index
    %c0_2 = arith.constant 0 : index
    %13 = memref.load %arg2[%12, %c0_2] : memref<2x8xi32, #tpu.memory_space<smem>>
    %14 = arith.sitofp %13 : i32 to f32
    %15 = vector.broadcast %14 : f32 to vector<1x8xf32>
    %16 = arith.select %11, %15, %3 : vector<1x8xi1>, vector<1x8xf32>
    %c1_i32 = arith.constant 1 : i32
    %17 = vector.broadcast %c1_i32 : i32 to vector<8x1xi32>
    %18 = arith.cmpi eq, %0, %17 : vector<8x1xi32>
    %19 = arith.index_cast %arg0 : i32 to index
    %c1 = arith.constant 1 : index
    %20 = memref.load %arg1[%19, %c1] : memref<2x8xi32, #tpu.memory_space<smem>>
    %21 = vector.broadcast %20 : i32 to vector<8x1xi32>
    %22 = arith.select %18, %21, %9 : vector<8x1xi1>, vector<8x1xi32>
    %c1_i32_3 = arith.constant 1 : i32
    %23 = vector.broadcast %c1_i32_3 : i32 to vector<1x8xi32>
    %24 = arith.cmpi eq, %1, %23 : vector<1x8xi32>
    %25 = arith.index_cast %arg0 : i32 to index
    %c1_4 = arith.constant 1 : index
    %26 = memref.load %arg2[%25, %c1_4] : memref<2x8xi32, #tpu.memory_space<smem>>
    %27 = arith.sitofp %26 : i32 to f32
    %28 = vector.broadcast %27 : f32 to vector<1x8xf32>
    %29 = arith.select %24, %28, %16 : vector<1x8xi1>, vector<1x8xf32>
    %c2_i32 = arith.constant 2 : i32
    %30 = vector.broadcast %c2_i32 : i32 to vector<8x1xi32>
    %31 = arith.cmpi eq, %0, %30 : vector<8x1xi32>
    %32 = arith.index_cast %arg0 : i32 to index
    %c2 = arith.constant 2 : index
    %33 = memref.load %arg1[%32, %c2] : memref<2x8xi32, #tpu.memory_space<smem>>
    %34 = vector.broadcast %33 : i32 to vector<8x1xi32>
    %35 = arith.select %31, %34, %22 : vector<8x1xi1>, vector<8x1xi32>
    %c2_i32_5 = arith.constant 2 : i32
    %36 = vector.broadcast %c2_i32_5 : i32 to vector<1x8xi32>
    %37 = arith.cmpi eq, %1, %36 : vector<1x8xi32>
    %38 = arith.index_cast %arg0 : i32 to index
    %c2_6 = arith.constant 2 : index
    %39 = memref.load %arg2[%38, %c2_6] : memref<2x8xi32, #tpu.memory_space<smem>>
    %40 = arith.sitofp %39 : i32 to f32
    %41 = vector.broadcast %40 : f32 to vector<1x8xf32>
    %42 = arith.select %37, %41, %29 : vector<1x8xi1>, vector<1x8xf32>
    %c3_i32 = arith.constant 3 : i32
    %43 = vector.broadcast %c3_i32 : i32 to vector<8x1xi32>
    %44 = arith.cmpi eq, %0, %43 : vector<8x1xi32>
    %45 = arith.index_cast %arg0 : i32 to index
    %c3 = arith.constant 3 : index
    %46 = memref.load %arg1[%45, %c3] : memref<2x8xi32, #tpu.memory_space<smem>>
    %47 = vector.broadcast %46 : i32 to vector<8x1xi32>
    %48 = arith.select %44, %47, %35 : vector<8x1xi1>, vector<8x1xi32>
    %c3_i32_7 = arith.constant 3 : i32
    %49 = vector.broadcast %c3_i32_7 : i32 to vector<1x8xi32>
    %50 = arith.cmpi eq, %1, %49 : vector<1x8xi32>
    %51 = arith.index_cast %arg0 : i32 to index
    %c3_8 = arith.constant 3 : index
    %52 = memref.load %arg2[%51, %c3_8] : memref<2x8xi32, #tpu.memory_space<smem>>
    %53 = arith.sitofp %52 : i32 to f32
    %54 = vector.broadcast %53 : f32 to vector<1x8xf32>
    %55 = arith.select %50, %54, %42 : vector<1x8xi1>, vector<1x8xf32>
    %c4_i32 = arith.constant 4 : i32
    %56 = vector.broadcast %c4_i32 : i32 to vector<8x1xi32>
    %57 = arith.cmpi eq, %0, %56 : vector<8x1xi32>
    %58 = arith.index_cast %arg0 : i32 to index
    %c4 = arith.constant 4 : index
    %59 = memref.load %arg1[%58, %c4] : memref<2x8xi32, #tpu.memory_space<smem>>
    %60 = vector.broadcast %59 : i32 to vector<8x1xi32>
    %61 = arith.select %57, %60, %48 : vector<8x1xi1>, vector<8x1xi32>
    %c4_i32_9 = arith.constant 4 : i32
    %62 = vector.broadcast %c4_i32_9 : i32 to vector<1x8xi32>
    %63 = arith.cmpi eq, %1, %62 : vector<1x8xi32>
    %64 = arith.index_cast %arg0 : i32 to index
    %c4_10 = arith.constant 4 : index
    %65 = memref.load %arg2[%64, %c4_10] : memref<2x8xi32, #tpu.memory_space<smem>>
    %66 = arith.sitofp %65 : i32 to f32
    %67 = vector.broadcast %66 : f32 to vector<1x8xf32>
    %68 = arith.select %63, %67, %55 : vector<1x8xi1>, vector<1x8xf32>
    %c5_i32 = arith.constant 5 : i32
    %69 = vector.broadcast %c5_i32 : i32 to vector<8x1xi32>
    %70 = arith.cmpi eq, %0, %69 : vector<8x1xi32>
    %71 = arith.index_cast %arg0 : i32 to index
    %c5 = arith.constant 5 : index
    %72 = memref.load %arg1[%71, %c5] : memref<2x8xi32, #tpu.memory_space<smem>>
    %73 = vector.broadcast %72 : i32 to vector<8x1xi32>
    %74 = arith.select %70, %73, %61 : vector<8x1xi1>, vector<8x1xi32>
    %c5_i32_11 = arith.constant 5 : i32
    %75 = vector.broadcast %c5_i32_11 : i32 to vector<1x8xi32>
    %76 = arith.cmpi eq, %1, %75 : vector<1x8xi32>
    %77 = arith.index_cast %arg0 : i32 to index
    %c5_12 = arith.constant 5 : index
    %78 = memref.load %arg2[%77, %c5_12] : memref<2x8xi32, #tpu.memory_space<smem>>
    %79 = arith.sitofp %78 : i32 to f32
    %80 = vector.broadcast %79 : f32 to vector<1x8xf32>
    %81 = arith.select %76, %80, %68 : vector<1x8xi1>, vector<1x8xf32>
    %c6_i32 = arith.constant 6 : i32
    %82 = vector.broadcast %c6_i32 : i32 to vector<8x1xi32>
    %83 = arith.cmpi eq, %0, %82 : vector<8x1xi32>
    %84 = arith.index_cast %arg0 : i32 to index
    %c6 = arith.constant 6 : index
    %85 = memref.load %arg1[%84, %c6] : memref<2x8xi32, #tpu.memory_space<smem>>
    %86 = vector.broadcast %85 : i32 to vector<8x1xi32>
    %87 = arith.select %83, %86, %74 : vector<8x1xi1>, vector<8x1xi32>
    %c6_i32_13 = arith.constant 6 : i32
    %88 = vector.broadcast %c6_i32_13 : i32 to vector<1x8xi32>
    %89 = arith.cmpi eq, %1, %88 : vector<1x8xi32>
    %90 = arith.index_cast %arg0 : i32 to index
    %c6_14 = arith.constant 6 : index
    %91 = memref.load %arg2[%90, %c6_14] : memref<2x8xi32, #tpu.memory_space<smem>>
    %92 = arith.sitofp %91 : i32 to f32
    %93 = vector.broadcast %92 : f32 to vector<1x8xf32>
    %94 = arith.select %89, %93, %81 : vector<1x8xi1>, vector<1x8xf32>
    %c7_i32 = arith.constant 7 : i32
    %95 = vector.broadcast %c7_i32 : i32 to vector<8x1xi32>
    %96 = arith.cmpi eq, %0, %95 : vector<8x1xi32>
    %97 = arith.index_cast %arg0 : i32 to index
    %c7 = arith.constant 7 : index
    %98 = memref.load %arg1[%97, %c7] : memref<2x8xi32, #tpu.memory_space<smem>>
    %99 = vector.broadcast %98 : i32 to vector<8x1xi32>
    %100 = arith.select %96, %99, %87 : vector<8x1xi1>, vector<8x1xi32>
    %c7_i32_15 = arith.constant 7 : i32
    %101 = vector.broadcast %c7_i32_15 : i32 to vector<1x8xi32>
    %102 = arith.cmpi eq, %1, %101 : vector<1x8xi32>
    %103 = arith.index_cast %arg0 : i32 to index
    %c7_16 = arith.constant 7 : index
    %104 = memref.load %arg2[%103, %c7_16] : memref<2x8xi32, #tpu.memory_space<smem>>
    %105 = arith.sitofp %104 : i32 to f32
    %106 = vector.broadcast %105 : f32 to vector<1x8xf32>
    %107 = arith.select %102, %106, %94 : vector<1x8xi1>, vector<1x8xf32>
    %108 = tpu.iota {dimensions = array<i32: 1>} : vector<8x128xi32>
    %109 = vector.broadcast %100 : vector<8x1xi32> to vector<8x128xi32>
    %110 = arith.cmpi eq, %108, %109 : vector<8x128xi32>
    %111 = arith.extui %110 : vector<8x128xi1> to vector<8x128xi32>
    %112 = arith.sitofp %111 : vector<8x128xi32> to vector<8x128xf32>
    %c0_17 = arith.constant 0 : index
    %c0_18 = arith.constant 0 : index
    %113 = vector.load %arg3[%c0_17, %c0_18] : memref<128x32xf32, #tpu.memory_space<vmem>>, vector<128x32xf32>
    %cst_19 = arith.constant dense<0.000000e+00> : vector<8x32xf32>
    %114 = tpu.matmul %112, %113, %cst_19 {dimension_numbers = #tpu.dot_dimension_numbers<[1], [0], [0], [1], [0, 0, 1, 1], [], []>} : vector<8x128xf32>, vector<128x32xf32>, vector<8x32xf32> -> vector<8x32xf32>
    %c0_20 = arith.constant 0 : index
    %c0_21 = arith.constant 0 : index
    %115 = vector.load %arg4[%c0_20, %c0_21] : memref<64x32xf32, #tpu.memory_space<vmem>>, vector<8x32xf32>
    %116 = arith.addf %114, %115 : vector<8x32xf32>
    %c0_22 = arith.constant 0 : index
    %c0_23 = arith.constant 0 : index
    %117 = vector.load %arg5[%c0_22, %c0_23] : memref<2x32xf32, #tpu.memory_space<vmem>>, vector<1x32xf32>
    %118 = vector.broadcast %117 : vector<1x32xf32> to vector<8x32xf32>
    %119 = arith.addf %116, %118 : vector<8x32xf32>
    %c0_24 = arith.constant 0 : index
    %c0_25 = arith.constant 0 : index
    %120 = vector.load %arg6[%c0_24, %c0_25] : memref<1x32xf32, #tpu.memory_space<vmem>>, vector<1x32xf32>
    %c0_26 = arith.constant 0 : index
    %c0_27 = arith.constant 0 : index
    %121 = vector.load %arg7[%c0_26, %c0_27] : memref<1x32xf32, #tpu.memory_space<vmem>>, vector<1x32xf32>
    %cst_28 = arith.constant dense<0.000000e+00> : vector<8xf32>
    %122 = vector.multi_reduction <add>, %119, %cst_28 [1] : vector<8x32xf32> to vector<8xf32>
    %123 = vector.shape_cast %122 : vector<8xf32> to vector<8x1xf32>
    %cst_29 = arith.constant 3.200000e+01 : f32
    %124 = vector.broadcast %cst_29 : f32 to vector<8x1xf32>
    %125 = arith.divf %123, %124 : vector<8x1xf32>
    %126 = vector.broadcast %125 : vector<8x1xf32> to vector<8x32xf32>
    %127 = arith.subf %119, %126 : vector<8x32xf32>
    %128 = arith.mulf %127, %127 : vector<8x32xf32>
    %cst_30 = arith.constant dense<0.000000e+00> : vector<8xf32>
    %129 = vector.multi_reduction <add>, %128, %cst_30 [1] : vector<8x32xf32> to vector<8xf32>
    %130 = vector.shape_cast %129 : vector<8xf32> to vector<8x1xf32>
    %cst_31 = arith.constant 3.200000e+01 : f32
    %131 = vector.broadcast %cst_31 : f32 to vector<8x1xf32>
    %132 = arith.divf %130, %131 : vector<8x1xf32>
    %133 = vector.broadcast %125 : vector<8x1xf32> to vector<8x32xf32>
    %134 = arith.subf %119, %133 : vector<8x32xf32>
    %cst_32 = arith.constant 9.99999996E-13 : f32
    %135 = vector.broadcast %cst_32 : f32 to vector<8x1xf32>
    %136 = arith.addf %132, %135 : vector<8x1xf32>
    %137 = math.rsqrt %136 : vector<8x1xf32>
    %138 = vector.broadcast %137 : vector<8x1xf32> to vector<8x32xf32>
    %139 = arith.mulf %134, %138 : vector<8x32xf32>
    %140 = vector.broadcast %120 : vector<1x32xf32> to vector<8x32xf32>
    %141 = arith.mulf %139, %140 : vector<8x32xf32>
    %142 = vector.broadcast %121 : vector<1x32xf32> to vector<8x32xf32>
    %143 = arith.addf %141, %142 : vector<8x32xf32>
    %cst_33 = arith.constant 1.000000e+00 : f32
    %144 = vector.broadcast %cst_33 : f32 to vector<1x8xf32>
    %145 = arith.subf %144, %107 : vector<1x8xf32>
    %cst_34 = arith.constant -1.000000e+09 : f32
    %146 = vector.broadcast %cst_34 : f32 to vector<1x8xf32>
    %147 = arith.mulf %145, %146 : vector<1x8xf32>
    %c0_35 = arith.constant 0 : index
    %c0_36 = arith.constant 0 : index
    %c0_37 = arith.constant 0 : index
    %148 = vector.load %arg8[%c0_35, %c0_36, %c0_37] : memref<2x32x96xf32, #tpu.memory_space<vmem>>, vector<1x32x96xf32>
    %149 = vector.shape_cast %148 : vector<1x32x96xf32> to vector<32x96xf32>
    %cst_38 = arith.constant dense<0.000000e+00> : vector<8x96xf32>
    %150 = tpu.matmul %143, %149, %cst_38 {dimension_numbers = #tpu.dot_dimension_numbers<[1], [0], [0], [1], [0, 0, 1, 1], [], []>} : vector<8x32xf32>, vector<32x96xf32>, vector<8x96xf32> -> vector<8x96xf32>
    %c0_39 = arith.constant 0 : index
    %c0_40 = arith.constant 0 : index
    %c0_41 = arith.constant 0 : index
    %151 = vector.load %arg9[%c0_39, %c0_40, %c0_41] : memref<2x1x96xf32, #tpu.memory_space<vmem>>, vector<1x1x96xf32>
    %152 = vector.shape_cast %151 : vector<1x1x96xf32> to vector<1x96xf32>
    %153 = vector.broadcast %152 : vector<1x96xf32> to vector<8x96xf32>
    %154 = arith.addf %150, %153 : vector<8x96xf32>
    %c0_42 = arith.constant 0 : index
    %c0_43 = arith.constant 0 : index
    %c0_44 = arith.constant 0 : index
    %155 = vector.load %arg10[%c0_42, %c0_43, %c0_44] : memref<2x32x32xf32, #tpu.memory_space<vmem>>, vector<1x32x32xf32>
    %156 = vector.shape_cast %155 : vector<1x32x32xf32> to vector<32x32xf32>
    %cst_45 = arith.constant 0.000000e+00 : f32
    %157 = vector.broadcast %cst_45 : f32 to vector<8x32xf32>
    %158 = vector.extract_strided_slice %154 {offsets = [0, 0], sizes = [8, 8], strides = [1, 1]} : vector<8x96xf32> to vector<8x8xf32>
    %159 = vector.extract_strided_slice %154 {offsets = [0, 8], sizes = [8, 8], strides = [1, 1]} : vector<8x96xf32> to vector<8x8xf32>
    %160 = vector.extract_strided_slice %154 {offsets = [0, 16], sizes = [8, 8], strides = [1, 1]} : vector<8x96xf32> to vector<8x8xf32>
    %cst_46 = arith.constant dense<0.000000e+00> : vector<8x8xf32>
    %161 = tpu.matmul %158, %159, %cst_46 {dimension_numbers = #tpu.dot_dimension_numbers<[1], [1], [0], [0], [0, 0, 1, 0], [], []>} : vector<8x8xf32>, vector<8x8xf32>, vector<8x8xf32> -> vector<8x8xf32>
    %cst_47 = arith.constant 0.353553385 : f32
    %162 = vector.broadcast %cst_47 : f32 to vector<8x8xf32>
    %163 = arith.mulf %161, %162 : vector<8x8xf32>
    %164 = vector.broadcast %147 : vector<1x8xf32> to vector<8x8xf32>
    %165 = arith.addf %163, %164 : vector<8x8xf32>
    %cst_48 = arith.constant dense<0xFF800000> : vector<8xf32>
    %166 = vector.multi_reduction <maximumf>, %165, %cst_48 [1] : vector<8x8xf32> to vector<8xf32>
    %167 = vector.shape_cast %166 : vector<8xf32> to vector<8x1xf32>
    %168 = vector.broadcast %167 : vector<8x1xf32> to vector<8x8xf32>
    %169 = arith.subf %165, %168 : vector<8x8xf32>
    %170 = math.exp %169 : vector<8x8xf32>
    %cst_49 = arith.constant dense<0.000000e+00> : vector<8xf32>
    %171 = vector.multi_reduction <add>, %170, %cst_49 [1] : vector<8x8xf32> to vector<8xf32>
    %172 = vector.shape_cast %171 : vector<8xf32> to vector<8x1xf32>
    %173 = tpu.reciprocal %172 {approx = true} : vector<8x1xf32> -> vector<8x1xf32>
    %174 = vector.broadcast %173 : vector<8x1xf32> to vector<8x8xf32>
    %175 = arith.mulf %170, %174 : vector<8x8xf32>
    %cst_50 = arith.constant dense<0.000000e+00> : vector<8x8xf32>
    %176 = tpu.matmul %175, %160, %cst_50 {dimension_numbers = #tpu.dot_dimension_numbers<[1], [0], [0], [1], [0, 0, 1, 1], [], []>} : vector<8x8xf32>, vector<8x8xf32>, vector<8x8xf32> -> vector<8x8xf32>
    %177 = vector.extract_strided_slice %156 {offsets = [0, 0], sizes = [8, 32], strides = [1, 1]} : vector<32x32xf32> to vector<8x32xf32>
    %cst_51 = arith.constant dense<0.000000e+00> : vector<8x32xf32>
    %178 = tpu.matmul %176, %177, %cst_51 {dimension_numbers = #tpu.dot_dimension_numbers<[1], [0], [0], [1], [0, 0, 1, 1], [], []>} : vector<8x8xf32>, vector<8x32xf32>, vector<8x32xf32> -> vector<8x32xf32>
    %179 = arith.addf %157, %178 : vector<8x32xf32>
    %180 = vector.extract_strided_slice %154 {offsets = [0, 24], sizes = [8, 8], strides = [1, 1]} : vector<8x96xf32> to vector<8x8xf32>
    %181 = vector.extract_strided_slice %154 {offsets = [0, 32], sizes = [8, 8], strides = [1, 1]} : vector<8x96xf32> to vector<8x8xf32>
    %182 = vector.extract_strided_slice %154 {offsets = [0, 40], sizes = [8, 8], strides = [1, 1]} : vector<8x96xf32> to vector<8x8xf32>
    %cst_52 = arith.constant dense<0.000000e+00> : vector<8x8xf32>
    %183 = tpu.matmul %180, %181, %cst_52 {dimension_numbers = #tpu.dot_dimension_numbers<[1], [1], [0], [0], [0, 0, 1, 0], [], []>} : vector<8x8xf32>, vector<8x8xf32>, vector<8x8xf32> -> vector<8x8xf32>
    %cst_53 = arith.constant 0.353553385 : f32
    %184 = vector.broadcast %cst_53 : f32 to vector<8x8xf32>
    %185 = arith.mulf %183, %184 : vector<8x8xf32>
    %186 = vector.broadcast %147 : vector<1x8xf32> to vector<8x8xf32>
    %187 = arith.addf %185, %186 : vector<8x8xf32>
    %cst_54 = arith.constant dense<0xFF800000> : vector<8xf32>
    %188 = vector.multi_reduction <maximumf>, %187, %cst_54 [1] : vector<8x8xf32> to vector<8xf32>
    %189 = vector.shape_cast %188 : vector<8xf32> to vector<8x1xf32>
    %190 = vector.broadcast %189 : vector<8x1xf32> to vector<8x8xf32>
    %191 = arith.subf %187, %190 : vector<8x8xf32>
    %192 = math.exp %191 : vector<8x8xf32>
    %cst_55 = arith.constant dense<0.000000e+00> : vector<8xf32>
    %193 = vector.multi_reduction <add>, %192, %cst_55 [1] : vector<8x8xf32> to vector<8xf32>
    %194 = vector.shape_cast %193 : vector<8xf32> to vector<8x1xf32>
    %195 = tpu.reciprocal %194 {approx = true} : vector<8x1xf32> -> vector<8x1xf32>
    %196 = vector.broadcast %195 : vector<8x1xf32> to vector<8x8xf32>
    %197 = arith.mulf %192, %196 : vector<8x8xf32>
    %cst_56 = arith.constant dense<0.000000e+00> : vector<8x8xf32>
    %198 = tpu.matmul %197, %182, %cst_56 {dimension_numbers = #tpu.dot_dimension_numbers<[1], [0], [0], [1], [0, 0, 1, 1], [], []>} : vector<8x8xf32>, vector<8x8xf32>, vector<8x8xf32> -> vector<8x8xf32>
    %199 = vector.extract_strided_slice %156 {offsets = [8, 0], sizes = [8, 32], strides = [1, 1]} : vector<32x32xf32> to vector<8x32xf32>
    %cst_57 = arith.constant dense<0.000000e+00> : vector<8x32xf32>
    %200 = tpu.matmul %198, %199, %cst_57 {dimension_numbers = #tpu.dot_dimension_numbers<[1], [0], [0], [1], [0, 0, 1, 1], [], []>} : vector<8x8xf32>, vector<8x32xf32>, vector<8x32xf32> -> vector<8x32xf32>
    %201 = arith.addf %179, %200 : vector<8x32xf32>
    %202 = vector.extract_strided_slice %154 {offsets = [0, 48], sizes = [8, 8], strides = [1, 1]} : vector<8x96xf32> to vector<8x8xf32>
    %203 = vector.extract_strided_slice %154 {offsets = [0, 56], sizes = [8, 8], strides = [1, 1]} : vector<8x96xf32> to vector<8x8xf32>
    %204 = vector.extract_strided_slice %154 {offsets = [0, 64], sizes = [8, 8], strides = [1, 1]} : vector<8x96xf32> to vector<8x8xf32>
    %cst_58 = arith.constant dense<0.000000e+00> : vector<8x8xf32>
    %205 = tpu.matmul %202, %203, %cst_58 {dimension_numbers = #tpu.dot_dimension_numbers<[1], [1], [0], [0], [0, 0, 1, 0], [], []>} : vector<8x8xf32>, vector<8x8xf32>, vector<8x8xf32> -> vector<8x8xf32>
    %cst_59 = arith.constant 0.353553385 : f32
    %206 = vector.broadcast %cst_59 : f32 to vector<8x8xf32>
    %207 = arith.mulf %205, %206 : vector<8x8xf32>
    %208 = vector.broadcast %147 : vector<1x8xf32> to vector<8x8xf32>
    %209 = arith.addf %207, %208 : vector<8x8xf32>
    %cst_60 = arith.constant dense<0xFF800000> : vector<8xf32>
    %210 = vector.multi_reduction <maximumf>, %209, %cst_60 [1] : vector<8x8xf32> to vector<8xf32>
    %211 = vector.shape_cast %210 : vector<8xf32> to vector<8x1xf32>
    %212 = vector.broadcast %211 : vector<8x1xf32> to vector<8x8xf32>
    %213 = arith.subf %209, %212 : vector<8x8xf32>
    %214 = math.exp %213 : vector<8x8xf32>
    %cst_61 = arith.constant dense<0.000000e+00> : vector<8xf32>
    %215 = vector.multi_reduction <add>, %214, %cst_61 [1] : vector<8x8xf32> to vector<8xf32>
    %216 = vector.shape_cast %215 : vector<8xf32> to vector<8x1xf32>
    %217 = tpu.reciprocal %216 {approx = true} : vector<8x1xf32> -> vector<8x1xf32>
    %218 = vector.broadcast %217 : vector<8x1xf32> to vector<8x8xf32>
    %219 = arith.mulf %214, %218 : vector<8x8xf32>
    %cst_62 = arith.constant dense<0.000000e+00> : vector<8x8xf32>
    %220 = tpu.matmul %219, %204, %cst_62 {dimension_numbers = #tpu.dot_dimension_numbers<[1], [0], [0], [1], [0, 0, 1, 1], [], []>} : vector<8x8xf32>, vector<8x8xf32>, vector<8x8xf32> -> vector<8x8xf32>
    %221 = vector.extract_strided_slice %156 {offsets = [16, 0], sizes = [8, 32], strides = [1, 1]} : vector<32x32xf32> to vector<8x32xf32>
    %cst_63 = arith.constant dense<0.000000e+00> : vector<8x32xf32>
    %222 = tpu.matmul %220, %221, %cst_63 {dimension_numbers = #tpu.dot_dimension_numbers<[1], [0], [0], [1], [0, 0, 1, 1], [], []>} : vector<8x8xf32>, vector<8x32xf32>, vector<8x32xf32> -> vector<8x32xf32>
    %223 = arith.addf %201, %222 : vector<8x32xf32>
    %224 = vector.extract_strided_slice %154 {offsets = [0, 72], sizes = [8, 8], strides = [1, 1]} : vector<8x96xf32> to vector<8x8xf32>
    %225 = vector.extract_strided_slice %154 {offsets = [0, 80], sizes = [8, 8], strides = [1, 1]} : vector<8x96xf32> to vector<8x8xf32>
    %226 = vector.extract_strided_slice %154 {offsets = [0, 88], sizes = [8, 8], strides = [1, 1]} : vector<8x96xf32> to vector<8x8xf32>
    %cst_64 = arith.constant dense<0.000000e+00> : vector<8x8xf32>
    %227 = tpu.matmul %224, %225, %cst_64 {dimension_numbers = #tpu.dot_dimension_numbers<[1], [1], [0], [0], [0, 0, 1, 0], [], []>} : vector<8x8xf32>, vector<8x8xf32>, vector<8x8xf32> -> vector<8x8xf32>
    %cst_65 = arith.constant 0.353553385 : f32
    %228 = vector.broadcast %cst_65 : f32 to vector<8x8xf32>
    %229 = arith.mulf %227, %228 : vector<8x8xf32>
    %230 = vector.broadcast %147 : vector<1x8xf32> to vector<8x8xf32>
    %231 = arith.addf %229, %230 : vector<8x8xf32>
    %cst_66 = arith.constant dense<0xFF800000> : vector<8xf32>
    %232 = vector.multi_reduction <maximumf>, %231, %cst_66 [1] : vector<8x8xf32> to vector<8xf32>
    %233 = vector.shape_cast %232 : vector<8xf32> to vector<8x1xf32>
    %234 = vector.broadcast %233 : vector<8x1xf32> to vector<8x8xf32>
    %235 = arith.subf %231, %234 : vector<8x8xf32>
    %236 = math.exp %235 : vector<8x8xf32>
    %cst_67 = arith.constant dense<0.000000e+00> : vector<8xf32>
    %237 = vector.multi_reduction <add>, %236, %cst_67 [1] : vector<8x8xf32> to vector<8xf32>
    %238 = vector.shape_cast %237 : vector<8xf32> to vector<8x1xf32>
    %239 = tpu.reciprocal %238 {approx = true} : vector<8x1xf32> -> vector<8x1xf32>
    %240 = vector.broadcast %239 : vector<8x1xf32> to vector<8x8xf32>
    %241 = arith.mulf %236, %240 : vector<8x8xf32>
    %cst_68 = arith.constant dense<0.000000e+00> : vector<8x8xf32>
    %242 = tpu.matmul %241, %226, %cst_68 {dimension_numbers = #tpu.dot_dimension_numbers<[1], [0], [0], [1], [0, 0, 1, 1], [], []>} : vector<8x8xf32>, vector<8x8xf32>, vector<8x8xf32> -> vector<8x8xf32>
    %243 = vector.extract_strided_slice %156 {offsets = [24, 0], sizes = [8, 32], strides = [1, 1]} : vector<32x32xf32> to vector<8x32xf32>
    %cst_69 = arith.constant dense<0.000000e+00> : vector<8x32xf32>
    %244 = tpu.matmul %242, %243, %cst_69 {dimension_numbers = #tpu.dot_dimension_numbers<[1], [0], [0], [1], [0, 0, 1, 1], [], []>} : vector<8x8xf32>, vector<8x32xf32>, vector<8x32xf32> -> vector<8x32xf32>
    %245 = arith.addf %223, %244 : vector<8x32xf32>
    %c0_70 = arith.constant 0 : index
    %c0_71 = arith.constant 0 : index
    %c0_72 = arith.constant 0 : index
    %246 = vector.load %arg11[%c0_70, %c0_71, %c0_72] : memref<2x1x32xf32, #tpu.memory_space<vmem>>, vector<1x1x32xf32>
    %247 = vector.shape_cast %246 : vector<1x1x32xf32> to vector<1x32xf32>
    %248 = vector.broadcast %247 : vector<1x32xf32> to vector<8x32xf32>
    %249 = arith.addf %245, %248 : vector<8x32xf32>
    %250 = arith.addf %249, %143 : vector<8x32xf32>
    %c0_73 = arith.constant 0 : index
    %c0_74 = arith.constant 0 : index
    %c0_75 = arith.constant 0 : index
    %251 = vector.load %arg12[%c0_73, %c0_74, %c0_75] : memref<2x1x32xf32, #tpu.memory_space<vmem>>, vector<1x1x32xf32>
    %252 = vector.shape_cast %251 : vector<1x1x32xf32> to vector<1x32xf32>
    %c0_76 = arith.constant 0 : index
    %c0_77 = arith.constant 0 : index
    %c0_78 = arith.constant 0 : index
    %253 = vector.load %arg13[%c0_76, %c0_77, %c0_78] : memref<2x1x32xf32, #tpu.memory_space<vmem>>, vector<1x1x32xf32>
    %254 = vector.shape_cast %253 : vector<1x1x32xf32> to vector<1x32xf32>
    %cst_79 = arith.constant dense<0.000000e+00> : vector<8xf32>
    %255 = vector.multi_reduction <add>, %250, %cst_79 [1] : vector<8x32xf32> to vector<8xf32>
    %256 = vector.shape_cast %255 : vector<8xf32> to vector<8x1xf32>
    %cst_80 = arith.constant 3.200000e+01 : f32
    %257 = vector.broadcast %cst_80 : f32 to vector<8x1xf32>
    %258 = arith.divf %256, %257 : vector<8x1xf32>
    %259 = vector.broadcast %258 : vector<8x1xf32> to vector<8x32xf32>
    %260 = arith.subf %250, %259 : vector<8x32xf32>
    %261 = arith.mulf %260, %260 : vector<8x32xf32>
    %cst_81 = arith.constant dense<0.000000e+00> : vector<8xf32>
    %262 = vector.multi_reduction <add>, %261, %cst_81 [1] : vector<8x32xf32> to vector<8xf32>
    %263 = vector.shape_cast %262 : vector<8xf32> to vector<8x1xf32>
    %cst_82 = arith.constant 3.200000e+01 : f32
    %264 = vector.broadcast %cst_82 : f32 to vector<8x1xf32>
    %265 = arith.divf %263, %264 : vector<8x1xf32>
    %266 = vector.broadcast %258 : vector<8x1xf32> to vector<8x32xf32>
    %267 = arith.subf %250, %266 : vector<8x32xf32>
    %cst_83 = arith.constant 9.99999996E-13 : f32
    %268 = vector.broadcast %cst_83 : f32 to vector<8x1xf32>
    %269 = arith.addf %265, %268 : vector<8x1xf32>
    %270 = math.rsqrt %269 : vector<8x1xf32>
    %271 = vector.broadcast %270 : vector<8x1xf32> to vector<8x32xf32>
    %272 = arith.mulf %267, %271 : vector<8x32xf32>
    %273 = vector.broadcast %252 : vector<1x32xf32> to vector<8x32xf32>
    %274 = arith.mulf %272, %273 : vector<8x32xf32>
    %275 = vector.broadcast %254 : vector<1x32xf32> to vector<8x32xf32>
    %276 = arith.addf %274, %275 : vector<8x32xf32>
    %c0_84 = arith.constant 0 : index
    %c0_85 = arith.constant 0 : index
    %c0_86 = arith.constant 0 : index
    %277 = vector.load %arg14[%c0_84, %c0_85, %c0_86] : memref<2x32x64xf32, #tpu.memory_space<vmem>>, vector<1x32x64xf32>
    %278 = vector.shape_cast %277 : vector<1x32x64xf32> to vector<32x64xf32>
    %cst_87 = arith.constant dense<0.000000e+00> : vector<8x64xf32>
    %279 = tpu.matmul %276, %278, %cst_87 {dimension_numbers = #tpu.dot_dimension_numbers<[1], [0], [0], [1], [0, 0, 1, 1], [], []>} : vector<8x32xf32>, vector<32x64xf32>, vector<8x64xf32> -> vector<8x64xf32>
    %c0_88 = arith.constant 0 : index
    %c0_89 = arith.constant 0 : index
    %c0_90 = arith.constant 0 : index
    %280 = vector.load %arg15[%c0_88, %c0_89, %c0_90] : memref<2x1x64xf32, #tpu.memory_space<vmem>>, vector<1x1x64xf32>
    %281 = vector.shape_cast %280 : vector<1x1x64xf32> to vector<1x64xf32>
    %282 = vector.broadcast %281 : vector<1x64xf32> to vector<8x64xf32>
    %283 = arith.addf %279, %282 : vector<8x64xf32>
    %cst_91 = arith.constant 5.000000e-01 : f32
    %284 = vector.broadcast %cst_91 : f32 to vector<8x64xf32>
    %285 = arith.mulf %284, %283 : vector<8x64xf32>
    %cst_92 = arith.constant 0.707106769 : f32
    %286 = vector.broadcast %cst_92 : f32 to vector<8x64xf32>
    %287 = arith.mulf %283, %286 : vector<8x64xf32>
    %288 = math.erf %287 : vector<8x64xf32>
    %cst_93 = arith.constant 1.000000e+00 : f32
    %289 = vector.broadcast %cst_93 : f32 to vector<8x64xf32>
    %290 = arith.addf %289, %288 : vector<8x64xf32>
    %291 = arith.mulf %285, %290 : vector<8x64xf32>
    %c0_94 = arith.constant 0 : index
    %c0_95 = arith.constant 0 : index
    %c0_96 = arith.constant 0 : index
    %292 = vector.load %arg16[%c0_94, %c0_95, %c0_96] : memref<2x64x32xf32, #tpu.memory_space<vmem>>, vector<1x64x32xf32>
    %293 = vector.shape_cast %292 : vector<1x64x32xf32> to vector<64x32xf32>
    %cst_97 = arith.constant dense<0.000000e+00> : vector<8x32xf32>
    %294 = tpu.matmul %291, %293, %cst_97 {dimension_numbers = #tpu.dot_dimension_numbers<[1], [0], [0], [1], [0, 0, 1, 1], [], []>} : vector<8x64xf32>, vector<64x32xf32>, vector<8x32xf32> -> vector<8x32xf32>
    %c0_98 = arith.constant 0 : index
    %c0_99 = arith.constant 0 : index
    %c0_100 = arith.constant 0 : index
    %295 = vector.load %arg17[%c0_98, %c0_99, %c0_100] : memref<2x1x32xf32, #tpu.memory_space<vmem>>, vector<1x1x32xf32>
    %296 = vector.shape_cast %295 : vector<1x1x32xf32> to vector<1x32xf32>
    %297 = vector.broadcast %296 : vector<1x32xf32> to vector<8x32xf32>
    %298 = arith.addf %294, %297 : vector<8x32xf32>
    %299 = arith.addf %298, %276 : vector<8x32xf32>
    %c0_101 = arith.constant 0 : index
    %c0_102 = arith.constant 0 : index
    %c0_103 = arith.constant 0 : index
    %300 = vector.load %arg18[%c0_101, %c0_102, %c0_103] : memref<2x1x32xf32, #tpu.memory_space<vmem>>, vector<1x1x32xf32>
    %301 = vector.shape_cast %300 : vector<1x1x32xf32> to vector<1x32xf32>
    %c0_104 = arith.constant 0 : index
    %c0_105 = arith.constant 0 : index
    %c0_106 = arith.constant 0 : index
    %302 = vector.load %arg19[%c0_104, %c0_105, %c0_106] : memref<2x1x32xf32, #tpu.memory_space<vmem>>, vector<1x1x32xf32>
    %303 = vector.shape_cast %302 : vector<1x1x32xf32> to vector<1x32xf32>
    %cst_107 = arith.constant dense<0.000000e+00> : vector<8xf32>
    %304 = vector.multi_reduction <add>, %299, %cst_107 [1] : vector<8x32xf32> to vector<8xf32>
    %305 = vector.shape_cast %304 : vector<8xf32> to vector<8x1xf32>
    %cst_108 = arith.constant 3.200000e+01 : f32
    %306 = vector.broadcast %cst_108 : f32 to vector<8x1xf32>
    %307 = arith.divf %305, %306 : vector<8x1xf32>
    %308 = vector.broadcast %307 : vector<8x1xf32> to vector<8x32xf32>
    %309 = arith.subf %299, %308 : vector<8x32xf32>
    %310 = arith.mulf %309, %309 : vector<8x32xf32>
    %cst_109 = arith.constant dense<0.000000e+00> : vector<8xf32>
    %311 = vector.multi_reduction <add>, %310, %cst_109 [1] : vector<8x32xf32> to vector<8xf32>
    %312 = vector.shape_cast %311 : vector<8xf32> to vector<8x1xf32>
    %cst_110 = arith.constant 3.200000e+01 : f32
    %313 = vector.broadcast %cst_110 : f32 to vector<8x1xf32>
    %314 = arith.divf %312, %313 : vector<8x1xf32>
    %315 = vector.broadcast %307 : vector<8x1xf32> to vector<8x32xf32>
    %316 = arith.subf %299, %315 : vector<8x32xf32>
    %cst_111 = arith.constant 9.99999996E-13 : f32
    %317 = vector.broadcast %cst_111 : f32 to vector<8x1xf32>
    %318 = arith.addf %314, %317 : vector<8x1xf32>
    %319 = math.rsqrt %318 : vector<8x1xf32>
    %320 = vector.broadcast %319 : vector<8x1xf32> to vector<8x32xf32>
    %321 = arith.mulf %316, %320 : vector<8x32xf32>
    %322 = vector.broadcast %301 : vector<1x32xf32> to vector<8x32xf32>
    %323 = arith.mulf %321, %322 : vector<8x32xf32>
    %324 = vector.broadcast %303 : vector<1x32xf32> to vector<8x32xf32>
    %325 = arith.addf %323, %324 : vector<8x32xf32>
    %c1_112 = arith.constant 1 : index
    %c0_113 = arith.constant 0 : index
    %c0_114 = arith.constant 0 : index
    %326 = vector.load %arg8[%c1_112, %c0_113, %c0_114] : memref<2x32x96xf32, #tpu.memory_space<vmem>>, vector<1x32x96xf32>
    %327 = vector.shape_cast %326 : vector<1x32x96xf32> to vector<32x96xf32>
    %cst_115 = arith.constant dense<0.000000e+00> : vector<8x96xf32>
    %328 = tpu.matmul %325, %327, %cst_115 {dimension_numbers = #tpu.dot_dimension_numbers<[1], [0], [0], [1], [0, 0, 1, 1], [], []>} : vector<8x32xf32>, vector<32x96xf32>, vector<8x96xf32> -> vector<8x96xf32>
    %c1_116 = arith.constant 1 : index
    %c0_117 = arith.constant 0 : index
    %c0_118 = arith.constant 0 : index
    %329 = vector.load %arg9[%c1_116, %c0_117, %c0_118] : memref<2x1x96xf32, #tpu.memory_space<vmem>>, vector<1x1x96xf32>
    %330 = vector.shape_cast %329 : vector<1x1x96xf32> to vector<1x96xf32>
    %331 = vector.broadcast %330 : vector<1x96xf32> to vector<8x96xf32>
    %332 = arith.addf %328, %331 : vector<8x96xf32>
    %c1_119 = arith.constant 1 : index
    %c0_120 = arith.constant 0 : index
    %c0_121 = arith.constant 0 : index
    %333 = vector.load %arg10[%c1_119, %c0_120, %c0_121] : memref<2x32x32xf32, #tpu.memory_space<vmem>>, vector<1x32x32xf32>
    %334 = vector.shape_cast %333 : vector<1x32x32xf32> to vector<32x32xf32>
    %cst_122 = arith.constant 0.000000e+00 : f32
    %335 = vector.broadcast %cst_122 : f32 to vector<8x32xf32>
    %336 = vector.extract_strided_slice %332 {offsets = [0, 0], sizes = [8, 8], strides = [1, 1]} : vector<8x96xf32> to vector<8x8xf32>
    %337 = vector.extract_strided_slice %332 {offsets = [0, 8], sizes = [8, 8], strides = [1, 1]} : vector<8x96xf32> to vector<8x8xf32>
    %338 = vector.extract_strided_slice %332 {offsets = [0, 16], sizes = [8, 8], strides = [1, 1]} : vector<8x96xf32> to vector<8x8xf32>
    %cst_123 = arith.constant dense<0.000000e+00> : vector<8x8xf32>
    %339 = tpu.matmul %336, %337, %cst_123 {dimension_numbers = #tpu.dot_dimension_numbers<[1], [1], [0], [0], [0, 0, 1, 0], [], []>} : vector<8x8xf32>, vector<8x8xf32>, vector<8x8xf32> -> vector<8x8xf32>
    %cst_124 = arith.constant 0.353553385 : f32
    %340 = vector.broadcast %cst_124 : f32 to vector<8x8xf32>
    %341 = arith.mulf %339, %340 : vector<8x8xf32>
    %342 = vector.broadcast %147 : vector<1x8xf32> to vector<8x8xf32>
    %343 = arith.addf %341, %342 : vector<8x8xf32>
    %cst_125 = arith.constant dense<0xFF800000> : vector<8xf32>
    %344 = vector.multi_reduction <maximumf>, %343, %cst_125 [1] : vector<8x8xf32> to vector<8xf32>
    %345 = vector.shape_cast %344 : vector<8xf32> to vector<8x1xf32>
    %346 = vector.broadcast %345 : vector<8x1xf32> to vector<8x8xf32>
    %347 = arith.subf %343, %346 : vector<8x8xf32>
    %348 = math.exp %347 : vector<8x8xf32>
    %cst_126 = arith.constant dense<0.000000e+00> : vector<8xf32>
    %349 = vector.multi_reduction <add>, %348, %cst_126 [1] : vector<8x8xf32> to vector<8xf32>
    %350 = vector.shape_cast %349 : vector<8xf32> to vector<8x1xf32>
    %351 = tpu.reciprocal %350 {approx = true} : vector<8x1xf32> -> vector<8x1xf32>
    %352 = vector.broadcast %351 : vector<8x1xf32> to vector<8x8xf32>
    %353 = arith.mulf %348, %352 : vector<8x8xf32>
    %cst_127 = arith.constant dense<0.000000e+00> : vector<8x8xf32>
    %354 = tpu.matmul %353, %338, %cst_127 {dimension_numbers = #tpu.dot_dimension_numbers<[1], [0], [0], [1], [0, 0, 1, 1], [], []>} : vector<8x8xf32>, vector<8x8xf32>, vector<8x8xf32> -> vector<8x8xf32>
    %355 = vector.extract_strided_slice %334 {offsets = [0, 0], sizes = [8, 32], strides = [1, 1]} : vector<32x32xf32> to vector<8x32xf32>
    %cst_128 = arith.constant dense<0.000000e+00> : vector<8x32xf32>
    %356 = tpu.matmul %354, %355, %cst_128 {dimension_numbers = #tpu.dot_dimension_numbers<[1], [0], [0], [1], [0, 0, 1, 1], [], []>} : vector<8x8xf32>, vector<8x32xf32>, vector<8x32xf32> -> vector<8x32xf32>
    %357 = arith.addf %335, %356 : vector<8x32xf32>
    %358 = vector.extract_strided_slice %332 {offsets = [0, 24], sizes = [8, 8], strides = [1, 1]} : vector<8x96xf32> to vector<8x8xf32>
    %359 = vector.extract_strided_slice %332 {offsets = [0, 32], sizes = [8, 8], strides = [1, 1]} : vector<8x96xf32> to vector<8x8xf32>
    %360 = vector.extract_strided_slice %332 {offsets = [0, 40], sizes = [8, 8], strides = [1, 1]} : vector<8x96xf32> to vector<8x8xf32>
    %cst_129 = arith.constant dense<0.000000e+00> : vector<8x8xf32>
    %361 = tpu.matmul %358, %359, %cst_129 {dimension_numbers = #tpu.dot_dimension_numbers<[1], [1], [0], [0], [0, 0, 1, 0], [], []>} : vector<8x8xf32>, vector<8x8xf32>, vector<8x8xf32> -> vector<8x8xf32>
    %cst_130 = arith.constant 0.353553385 : f32
    %362 = vector.broadcast %cst_130 : f32 to vector<8x8xf32>
    %363 = arith.mulf %361, %362 : vector<8x8xf32>
    %364 = vector.broadcast %147 : vector<1x8xf32> to vector<8x8xf32>
    %365 = arith.addf %363, %364 : vector<8x8xf32>
    %cst_131 = arith.constant dense<0xFF800000> : vector<8xf32>
    %366 = vector.multi_reduction <maximumf>, %365, %cst_131 [1] : vector<8x8xf32> to vector<8xf32>
    %367 = vector.shape_cast %366 : vector<8xf32> to vector<8x1xf32>
    %368 = vector.broadcast %367 : vector<8x1xf32> to vector<8x8xf32>
    %369 = arith.subf %365, %368 : vector<8x8xf32>
    %370 = math.exp %369 : vector<8x8xf32>
    %cst_132 = arith.constant dense<0.000000e+00> : vector<8xf32>
    %371 = vector.multi_reduction <add>, %370, %cst_132 [1] : vector<8x8xf32> to vector<8xf32>
    %372 = vector.shape_cast %371 : vector<8xf32> to vector<8x1xf32>
    %373 = tpu.reciprocal %372 {approx = true} : vector<8x1xf32> -> vector<8x1xf32>
    %374 = vector.broadcast %373 : vector<8x1xf32> to vector<8x8xf32>
    %375 = arith.mulf %370, %374 : vector<8x8xf32>
    %cst_133 = arith.constant dense<0.000000e+00> : vector<8x8xf32>
    %376 = tpu.matmul %375, %360, %cst_133 {dimension_numbers = #tpu.dot_dimension_numbers<[1], [0], [0], [1], [0, 0, 1, 1], [], []>} : vector<8x8xf32>, vector<8x8xf32>, vector<8x8xf32> -> vector<8x8xf32>
    %377 = vector.extract_strided_slice %334 {offsets = [8, 0], sizes = [8, 32], strides = [1, 1]} : vector<32x32xf32> to vector<8x32xf32>
    %cst_134 = arith.constant dense<0.000000e+00> : vector<8x32xf32>
    %378 = tpu.matmul %376, %377, %cst_134 {dimension_numbers = #tpu.dot_dimension_numbers<[1], [0], [0], [1], [0, 0, 1, 1], [], []>} : vector<8x8xf32>, vector<8x32xf32>, vector<8x32xf32> -> vector<8x32xf32>
    %379 = arith.addf %357, %378 : vector<8x32xf32>
    %380 = vector.extract_strided_slice %332 {offsets = [0, 48], sizes = [8, 8], strides = [1, 1]} : vector<8x96xf32> to vector<8x8xf32>
    %381 = vector.extract_strided_slice %332 {offsets = [0, 56], sizes = [8, 8], strides = [1, 1]} : vector<8x96xf32> to vector<8x8xf32>
    %382 = vector.extract_strided_slice %332 {offsets = [0, 64], sizes = [8, 8], strides = [1, 1]} : vector<8x96xf32> to vector<8x8xf32>
    %cst_135 = arith.constant dense<0.000000e+00> : vector<8x8xf32>
    %383 = tpu.matmul %380, %381, %cst_135 {dimension_numbers = #tpu.dot_dimension_numbers<[1], [1], [0], [0], [0, 0, 1, 0], [], []>} : vector<8x8xf32>, vector<8x8xf32>, vector<8x8xf32> -> vector<8x8xf32>
    %cst_136 = arith.constant 0.353553385 : f32
    %384 = vector.broadcast %cst_136 : f32 to vector<8x8xf32>
    %385 = arith.mulf %383, %384 : vector<8x8xf32>
    %386 = vector.broadcast %147 : vector<1x8xf32> to vector<8x8xf32>
    %387 = arith.addf %385, %386 : vector<8x8xf32>
    %cst_137 = arith.constant dense<0xFF800000> : vector<8xf32>
    %388 = vector.multi_reduction <maximumf>, %387, %cst_137 [1] : vector<8x8xf32> to vector<8xf32>
    %389 = vector.shape_cast %388 : vector<8xf32> to vector<8x1xf32>
    %390 = vector.broadcast %389 : vector<8x1xf32> to vector<8x8xf32>
    %391 = arith.subf %387, %390 : vector<8x8xf32>
    %392 = math.exp %391 : vector<8x8xf32>
    %cst_138 = arith.constant dense<0.000000e+00> : vector<8xf32>
    %393 = vector.multi_reduction <add>, %392, %cst_138 [1] : vector<8x8xf32> to vector<8xf32>
    %394 = vector.shape_cast %393 : vector<8xf32> to vector<8x1xf32>
    %395 = tpu.reciprocal %394 {approx = true} : vector<8x1xf32> -> vector<8x1xf32>
    %396 = vector.broadcast %395 : vector<8x1xf32> to vector<8x8xf32>
    %397 = arith.mulf %392, %396 : vector<8x8xf32>
    %cst_139 = arith.constant dense<0.000000e+00> : vector<8x8xf32>
    %398 = tpu.matmul %397, %382, %cst_139 {dimension_numbers = #tpu.dot_dimension_numbers<[1], [0], [0], [1], [0, 0, 1, 1], [], []>} : vector<8x8xf32>, vector<8x8xf32>, vector<8x8xf32> -> vector<8x8xf32>
    %399 = vector.extract_strided_slice %334 {offsets = [16, 0], sizes = [8, 32], strides = [1, 1]} : vector<32x32xf32> to vector<8x32xf32>
    %cst_140 = arith.constant dense<0.000000e+00> : vector<8x32xf32>
    %400 = tpu.matmul %398, %399, %cst_140 {dimension_numbers = #tpu.dot_dimension_numbers<[1], [0], [0], [1], [0, 0, 1, 1], [], []>} : vector<8x8xf32>, vector<8x32xf32>, vector<8x32xf32> -> vector<8x32xf32>
    %401 = arith.addf %379, %400 : vector<8x32xf32>
    %402 = vector.extract_strided_slice %332 {offsets = [0, 72], sizes = [8, 8], strides = [1, 1]} : vector<8x96xf32> to vector<8x8xf32>
    %403 = vector.extract_strided_slice %332 {offsets = [0, 80], sizes = [8, 8], strides = [1, 1]} : vector<8x96xf32> to vector<8x8xf32>
    %404 = vector.extract_strided_slice %332 {offsets = [0, 88], sizes = [8, 8], strides = [1, 1]} : vector<8x96xf32> to vector<8x8xf32>
    %cst_141 = arith.constant dense<0.000000e+00> : vector<8x8xf32>
    %405 = tpu.matmul %402, %403, %cst_141 {dimension_numbers = #tpu.dot_dimension_numbers<[1], [1], [0], [0], [0, 0, 1, 0], [], []>} : vector<8x8xf32>, vector<8x8xf32>, vector<8x8xf32> -> vector<8x8xf32>
    %cst_142 = arith.constant 0.353553385 : f32
    %406 = vector.broadcast %cst_142 : f32 to vector<8x8xf32>
    %407 = arith.mulf %405, %406 : vector<8x8xf32>
    %408 = vector.broadcast %147 : vector<1x8xf32> to vector<8x8xf32>
    %409 = arith.addf %407, %408 : vector<8x8xf32>
    %cst_143 = arith.constant dense<0xFF800000> : vector<8xf32>
    %410 = vector.multi_reduction <maximumf>, %409, %cst_143 [1] : vector<8x8xf32> to vector<8xf32>
    %411 = vector.shape_cast %410 : vector<8xf32> to vector<8x1xf32>
    %412 = vector.broadcast %411 : vector<8x1xf32> to vector<8x8xf32>
    %413 = arith.subf %409, %412 : vector<8x8xf32>
    %414 = math.exp %413 : vector<8x8xf32>
    %cst_144 = arith.constant dense<0.000000e+00> : vector<8xf32>
    %415 = vector.multi_reduction <add>, %414, %cst_144 [1] : vector<8x8xf32> to vector<8xf32>
    %416 = vector.shape_cast %415 : vector<8xf32> to vector<8x1xf32>
    %417 = tpu.reciprocal %416 {approx = true} : vector<8x1xf32> -> vector<8x1xf32>
    %418 = vector.broadcast %417 : vector<8x1xf32> to vector<8x8xf32>
    %419 = arith.mulf %414, %418 : vector<8x8xf32>
    %cst_145 = arith.constant dense<0.000000e+00> : vector<8x8xf32>
    %420 = tpu.matmul %419, %404, %cst_145 {dimension_numbers = #tpu.dot_dimension_numbers<[1], [0], [0], [1], [0, 0, 1, 1], [], []>} : vector<8x8xf32>, vector<8x8xf32>, vector<8x8xf32> -> vector<8x8xf32>
    %421 = vector.extract_strided_slice %334 {offsets = [24, 0], sizes = [8, 32], strides = [1, 1]} : vector<32x32xf32> to vector<8x32xf32>
    %cst_146 = arith.constant dense<0.000000e+00> : vector<8x32xf32>
    %422 = tpu.matmul %420, %421, %cst_146 {dimension_numbers = #tpu.dot_dimension_numbers<[1], [0], [0], [1], [0, 0, 1, 1], [], []>} : vector<8x8xf32>, vector<8x32xf32>, vector<8x32xf32> -> vector<8x32xf32>
    %423 = arith.addf %401, %422 : vector<8x32xf32>
    %c1_147 = arith.constant 1 : index
    %c0_148 = arith.constant 0 : index
    %c0_149 = arith.constant 0 : index
    %424 = vector.load %arg11[%c1_147, %c0_148, %c0_149] : memref<2x1x32xf32, #tpu.memory_space<vmem>>, vector<1x1x32xf32>
    %425 = vector.shape_cast %424 : vector<1x1x32xf32> to vector<1x32xf32>
    %426 = vector.broadcast %425 : vector<1x32xf32> to vector<8x32xf32>
    %427 = arith.addf %423, %426 : vector<8x32xf32>
    %428 = arith.addf %427, %325 : vector<8x32xf32>
    %c1_150 = arith.constant 1 : index
    %c0_151 = arith.constant 0 : index
    %c0_152 = arith.constant 0 : index
    %429 = vector.load %arg12[%c1_150, %c0_151, %c0_152] : memref<2x1x32xf32, #tpu.memory_space<vmem>>, vector<1x1x32xf32>
    %430 = vector.shape_cast %429 : vector<1x1x32xf32> to vector<1x32xf32>
    %c1_153 = arith.constant 1 : index
    %c0_154 = arith.constant 0 : index
    %c0_155 = arith.constant 0 : index
    %431 = vector.load %arg13[%c1_153, %c0_154, %c0_155] : memref<2x1x32xf32, #tpu.memory_space<vmem>>, vector<1x1x32xf32>
    %432 = vector.shape_cast %431 : vector<1x1x32xf32> to vector<1x32xf32>
    %cst_156 = arith.constant dense<0.000000e+00> : vector<8xf32>
    %433 = vector.multi_reduction <add>, %428, %cst_156 [1] : vector<8x32xf32> to vector<8xf32>
    %434 = vector.shape_cast %433 : vector<8xf32> to vector<8x1xf32>
    %cst_157 = arith.constant 3.200000e+01 : f32
    %435 = vector.broadcast %cst_157 : f32 to vector<8x1xf32>
    %436 = arith.divf %434, %435 : vector<8x1xf32>
    %437 = vector.broadcast %436 : vector<8x1xf32> to vector<8x32xf32>
    %438 = arith.subf %428, %437 : vector<8x32xf32>
    %439 = arith.mulf %438, %438 : vector<8x32xf32>
    %cst_158 = arith.constant dense<0.000000e+00> : vector<8xf32>
    %440 = vector.multi_reduction <add>, %439, %cst_158 [1] : vector<8x32xf32> to vector<8xf32>
    %441 = vector.shape_cast %440 : vector<8xf32> to vector<8x1xf32>
    %cst_159 = arith.constant 3.200000e+01 : f32
    %442 = vector.broadcast %cst_159 : f32 to vector<8x1xf32>
    %443 = arith.divf %441, %442 : vector<8x1xf32>
    %444 = vector.broadcast %436 : vector<8x1xf32> to vector<8x32xf32>
    %445 = arith.subf %428, %444 : vector<8x32xf32>
    %cst_160 = arith.constant 9.99999996E-13 : f32
    %446 = vector.broadcast %cst_160 : f32 to vector<8x1xf32>
    %447 = arith.addf %443, %446 : vector<8x1xf32>
    %448 = math.rsqrt %447 : vector<8x1xf32>
    %449 = vector.broadcast %448 : vector<8x1xf32> to vector<8x32xf32>
    %450 = arith.mulf %445, %449 : vector<8x32xf32>
    %451 = vector.broadcast %430 : vector<1x32xf32> to vector<8x32xf32>
    %452 = arith.mulf %450, %451 : vector<8x32xf32>
    %453 = vector.broadcast %432 : vector<1x32xf32> to vector<8x32xf32>
    %454 = arith.addf %452, %453 : vector<8x32xf32>
    %c1_161 = arith.constant 1 : index
    %c0_162 = arith.constant 0 : index
    %c0_163 = arith.constant 0 : index
    %455 = vector.load %arg14[%c1_161, %c0_162, %c0_163] : memref<2x32x64xf32, #tpu.memory_space<vmem>>, vector<1x32x64xf32>
    %456 = vector.shape_cast %455 : vector<1x32x64xf32> to vector<32x64xf32>
    %cst_164 = arith.constant dense<0.000000e+00> : vector<8x64xf32>
    %457 = tpu.matmul %454, %456, %cst_164 {dimension_numbers = #tpu.dot_dimension_numbers<[1], [0], [0], [1], [0, 0, 1, 1], [], []>} : vector<8x32xf32>, vector<32x64xf32>, vector<8x64xf32> -> vector<8x64xf32>
    %c1_165 = arith.constant 1 : index
    %c0_166 = arith.constant 0 : index
    %c0_167 = arith.constant 0 : index
    %458 = vector.load %arg15[%c1_165, %c0_166, %c0_167] : memref<2x1x64xf32, #tpu.memory_space<vmem>>, vector<1x1x64xf32>
    %459 = vector.shape_cast %458 : vector<1x1x64xf32> to vector<1x64xf32>
    %460 = vector.broadcast %459 : vector<1x64xf32> to vector<8x64xf32>
    %461 = arith.addf %457, %460 : vector<8x64xf32>
    %cst_168 = arith.constant 5.000000e-01 : f32
    %462 = vector.broadcast %cst_168 : f32 to vector<8x64xf32>
    %463 = arith.mulf %462, %461 : vector<8x64xf32>
    %cst_169 = arith.constant 0.707106769 : f32
    %464 = vector.broadcast %cst_169 : f32 to vector<8x64xf32>
    %465 = arith.mulf %461, %464 : vector<8x64xf32>
    %466 = math.erf %465 : vector<8x64xf32>
    %cst_170 = arith.constant 1.000000e+00 : f32
    %467 = vector.broadcast %cst_170 : f32 to vector<8x64xf32>
    %468 = arith.addf %467, %466 : vector<8x64xf32>
    %469 = arith.mulf %463, %468 : vector<8x64xf32>
    %c1_171 = arith.constant 1 : index
    %c0_172 = arith.constant 0 : index
    %c0_173 = arith.constant 0 : index
    %470 = vector.load %arg16[%c1_171, %c0_172, %c0_173] : memref<2x64x32xf32, #tpu.memory_space<vmem>>, vector<1x64x32xf32>
    %471 = vector.shape_cast %470 : vector<1x64x32xf32> to vector<64x32xf32>
    %cst_174 = arith.constant dense<0.000000e+00> : vector<8x32xf32>
    %472 = tpu.matmul %469, %471, %cst_174 {dimension_numbers = #tpu.dot_dimension_numbers<[1], [0], [0], [1], [0, 0, 1, 1], [], []>} : vector<8x64xf32>, vector<64x32xf32>, vector<8x32xf32> -> vector<8x32xf32>
    %c1_175 = arith.constant 1 : index
    %c0_176 = arith.constant 0 : index
    %c0_177 = arith.constant 0 : index
    %473 = vector.load %arg17[%c1_175, %c0_176, %c0_177] : memref<2x1x32xf32, #tpu.memory_space<vmem>>, vector<1x1x32xf32>
    %474 = vector.shape_cast %473 : vector<1x1x32xf32> to vector<1x32xf32>
    %475 = vector.broadcast %474 : vector<1x32xf32> to vector<8x32xf32>
    %476 = arith.addf %472, %475 : vector<8x32xf32>
    %477 = arith.addf %476, %454 : vector<8x32xf32>
    %c1_178 = arith.constant 1 : index
    %c0_179 = arith.constant 0 : index
    %c0_180 = arith.constant 0 : index
    %478 = vector.load %arg18[%c1_178, %c0_179, %c0_180] : memref<2x1x32xf32, #tpu.memory_space<vmem>>, vector<1x1x32xf32>
    %479 = vector.shape_cast %478 : vector<1x1x32xf32> to vector<1x32xf32>
    %c1_181 = arith.constant 1 : index
    %c0_182 = arith.constant 0 : index
    %c0_183 = arith.constant 0 : index
    %480 = vector.load %arg19[%c1_181, %c0_182, %c0_183] : memref<2x1x32xf32, #tpu.memory_space<vmem>>, vector<1x1x32xf32>
    %481 = vector.shape_cast %480 : vector<1x1x32xf32> to vector<1x32xf32>
    %cst_184 = arith.constant dense<0.000000e+00> : vector<8xf32>
    %482 = vector.multi_reduction <add>, %477, %cst_184 [1] : vector<8x32xf32> to vector<8xf32>
    %483 = vector.shape_cast %482 : vector<8xf32> to vector<8x1xf32>
    %cst_185 = arith.constant 3.200000e+01 : f32
    %484 = vector.broadcast %cst_185 : f32 to vector<8x1xf32>
    %485 = arith.divf %483, %484 : vector<8x1xf32>
    %486 = vector.broadcast %485 : vector<8x1xf32> to vector<8x32xf32>
    %487 = arith.subf %477, %486 : vector<8x32xf32>
    %488 = arith.mulf %487, %487 : vector<8x32xf32>
    %cst_186 = arith.constant dense<0.000000e+00> : vector<8xf32>
    %489 = vector.multi_reduction <add>, %488, %cst_186 [1] : vector<8x32xf32> to vector<8xf32>
    %490 = vector.shape_cast %489 : vector<8xf32> to vector<8x1xf32>
    %cst_187 = arith.constant 3.200000e+01 : f32
    %491 = vector.broadcast %cst_187 : f32 to vector<8x1xf32>
    %492 = arith.divf %490, %491 : vector<8x1xf32>
    %493 = vector.broadcast %485 : vector<8x1xf32> to vector<8x32xf32>
    %494 = arith.subf %477, %493 : vector<8x32xf32>
    %cst_188 = arith.constant 9.99999996E-13 : f32
    %495 = vector.broadcast %cst_188 : f32 to vector<8x1xf32>
    %496 = arith.addf %492, %495 : vector<8x1xf32>
    %497 = math.rsqrt %496 : vector<8x1xf32>
    %498 = vector.broadcast %497 : vector<8x1xf32> to vector<8x32xf32>
    %499 = arith.mulf %494, %498 : vector<8x32xf32>
    %500 = vector.broadcast %479 : vector<1x32xf32> to vector<8x32xf32>
    %501 = arith.mulf %499, %500 : vector<8x32xf32>
    %502 = vector.broadcast %481 : vector<1x32xf32> to vector<8x32xf32>
    %503 = arith.addf %501, %502 : vector<8x32xf32>
    %504 = vector.extract_strided_slice %503 {offsets = [0, 0], sizes = [1, 32], strides = [1, 1]} : vector<8x32xf32> to vector<1x32xf32>
    %c0_189 = arith.constant 0 : index
    %c0_190 = arith.constant 0 : index
    %505 = vector.load %arg20[%c0_189, %c0_190] : memref<32x32xf32, #tpu.memory_space<vmem>>, vector<32x32xf32>
    %cst_191 = arith.constant dense<0.000000e+00> : vector<1x32xf32>
    %506 = tpu.matmul %504, %505, %cst_191 {dimension_numbers = #tpu.dot_dimension_numbers<[1], [0], [0], [1], [0, 0, 1, 1], [], []>} : vector<1x32xf32>, vector<32x32xf32>, vector<1x32xf32> -> vector<1x32xf32>
    %c0_192 = arith.constant 0 : index
    %c0_193 = arith.constant 0 : index
    %507 = vector.load %arg21[%c0_192, %c0_193] : memref<1x32xf32, #tpu.memory_space<vmem>>, vector<1x32xf32>
    %508 = arith.addf %506, %507 : vector<1x32xf32>
    %509 = math.tanh %508 : vector<1x32xf32>
    %c0_194 = arith.constant 0 : index
    %c0_195 = arith.constant 0 : index
    %510 = vector.load %arg22[%c0_194, %c0_195] : memref<32x128xf32, #tpu.memory_space<vmem>>, vector<32x128xf32>
    %cst_196 = arith.constant dense<0.000000e+00> : vector<1x128xf32>
    %511 = tpu.matmul %509, %510, %cst_196 {dimension_numbers = #tpu.dot_dimension_numbers<[1], [0], [0], [1], [0, 0, 1, 1], [], []>} : vector<1x32xf32>, vector<32x128xf32>, vector<1x128xf32> -> vector<1x128xf32>
    %c0_197 = arith.constant 0 : index
    %c0_198 = arith.constant 0 : index
    %512 = vector.load %arg23[%c0_197, %c0_198] : memref<1x128xf32, #tpu.memory_space<vmem>>, vector<1x128xf32>
    %513 = arith.addf %511, %512 : vector<1x128xf32>
    %514 = vector.shape_cast %513 : vector<1x128xf32> to vector<1x128xf32>
    %515 = vector.broadcast %514 : vector<1x128xf32> to vector<8x128xf32>
    %c0_199 = arith.constant 0 : index
    %c0_200 = arith.constant 0 : index
    %c0_201 = arith.constant 0 : index
    %516 = vector.load %arg24[%c0_199, %c0_200, %c0_201] : memref<1x8x128xf32, #tpu.memory_space<vmem>>, vector<1x8x128xf32>
    %517 = vector.shape_cast %516 : vector<1x8x128xf32> to vector<8x128xf32>
    %518 = vector.shape_cast %515 : vector<8x128xf32> to vector<1x8x128xf32>
    tpu.vector_store %arg24[%c0_199, %c0_200, %c0_201], %518 {strides = array<i32>} : memref<1x8x128xf32, #tpu.memory_space<vmem>>, vector<1x8x128xf32>,
    return
  }
  func.func @transform_0(%arg0: i32, %arg1: memref<2x8xi32, #tpu.memory_space<smem>>, %arg2: memref<2x8xi32, #tpu.memory_space<smem>>) -> (i32, i32) {
    %c0_i32 = arith.constant 0 : i32
    %c0_i32_0 = arith.constant 0 : i32
    %c0_i32_1 = arith.constant 0 : i32
    return %c0_i32, %c0_i32_0 : i32, i32
  }
  func.func @transform_1(%arg0: i32, %arg1: memref<2x8xi32, #tpu.memory_space<smem>>, %arg2: memref<2x8xi32, #tpu.memory_space<smem>>) -> (i32, i32) {
    %c0_i32 = arith.constant 0 : i32
    %c0_i32_0 = arith.constant 0 : i32
    %c0_i32_1 = arith.constant 0 : i32
    return %c0_i32, %c0_i32_0 : i32, i32
  }
  func.func @transform_2(%arg0: i32, %arg1: memref<2x8xi32, #tpu.memory_space<smem>>, %arg2: memref<2x8xi32, #tpu.memory_space<smem>>) -> (i32, i32) {
    %c0_i32 = arith.constant 0 : i32
    %c0_i32_0 = arith.constant 0 : i32
    %c0_i32_1 = arith.constant 0 : i32
    return %c0_i32, %c0_i32_0 : i32, i32
  }
  func.func @transform_3(%arg0: i32, %arg1: memref<2x8xi32, #tpu.memory_space<smem>>, %arg2: memref<2x8xi32, #tpu.memory_space<smem>>) -> (i32, i32) {
    %c0_i32 = arith.constant 0 : i32
    %c0_i32_0 = arith.constant 0 : i32
    %c0_i32_1 = arith.constant 0 : i32
    return %c0_i32, %c0_i32_0 : i32, i32
  }
  func.func @transform_4(%arg0: i32, %arg1: memref<2x8xi32, #tpu.memory_space<smem>>, %arg2: memref<2x8xi32, #tpu.memory_space<smem>>) -> (i32, i32) {
    %c0_i32 = arith.constant 0 : i32
    %c0_i32_0 = arith.constant 0 : i32
    %c0_i32_1 = arith.constant 0 : i32
    return %c0_i32, %c0_i32_0 : i32, i32
  }
  func.func @transform_5(%arg0: i32, %arg1: memref<2x8xi32, #tpu.memory_space<smem>>, %arg2: memref<2x8xi32, #tpu.memory_space<smem>>) -> (i32, i32, i32) {
    %c0_i32 = arith.constant 0 : i32
    %c0_i32_0 = arith.constant 0 : i32
    %c0_i32_1 = arith.constant 0 : i32
    %c0_i32_2 = arith.constant 0 : i32
    return %c0_i32, %c0_i32_0, %c0_i32_1 : i32, i32, i32
  }
  func.func @transform_6(%arg0: i32, %arg1: memref<2x8xi32, #tpu.memory_space<smem>>, %arg2: memref<2x8xi32, #tpu.memory_space<smem>>) -> (i32, i32, i32) {
    %c0_i32 = arith.constant 0 : i32
    %c0_i32_0 = arith.constant 0 : i32
    %c0_i32_1 = arith.constant 0 : i32
    %c0_i32_2 = arith.constant 0 : i32
    return %c0_i32, %c0_i32_0, %c0_i32_1 : i32, i32, i32
  }
  func.func @transform_7(%arg0: i32, %arg1: memref<2x8xi32, #tpu.memory_space<smem>>, %arg2: memref<2x8xi32, #tpu.memory_space<smem>>) -> (i32, i32, i32) {
    %c0_i32 = arith.constant 0 : i32
    %c0_i32_0 = arith.constant 0 : i32
    %c0_i32_1 = arith.constant 0 : i32
    %c0_i32_2 = arith.constant 0 : i32
    return %c0_i32, %c0_i32_0, %c0_i32_1 : i32, i32, i32
  }
  func.func @transform_8(%arg0: i32, %arg1: memref<2x8xi32, #tpu.memory_space<smem>>, %arg2: memref<2x8xi32, #tpu.memory_space<smem>>) -> (i32, i32, i32) {
    %c0_i32 = arith.constant 0 : i32
    %c0_i32_0 = arith.constant 0 : i32
    %c0_i32_1 = arith.constant 0 : i32
    %c0_i32_2 = arith.constant 0 : i32
    return %c0_i32, %c0_i32_0, %c0_i32_1 : i32, i32, i32
  }
  func.func @transform_9(%arg0: i32, %arg1: memref<2x8xi32, #tpu.memory_space<smem>>, %arg2: memref<2x8xi32, #tpu.memory_space<smem>>) -> (i32, i32, i32) {
    %c0_i32 = arith.constant 0 : i32
    %c0_i32_0 = arith.constant 0 : i32
    %c0_i32_1 = arith.constant 0 : i32
    %c0_i32_2 = arith.constant 0 : i32
    return %c0_i32, %c0_i32_0, %c0_i32_1 : i32, i32, i32
  }
  func.func @transform_10(%arg0: i32, %arg1: memref<2x8xi32, #tpu.memory_space<smem>>, %arg2: memref<2x8xi32, #tpu.memory_space<smem>>) -> (i32, i32, i32) {
    %c0_i32 = arith.constant 0 : i32
    %c0_i32_0 = arith.constant 0 : i32
    %c0_i32_1 = arith.constant 0 : i32
    %c0_i32_2 = arith.constant 0 : i32
    return %c0_i32, %c0_i32_0, %c0_i32_1 : i32, i32, i32
  }
  func.func @transform_11(%arg0: i32, %arg1: memref<2x8xi32, #tpu.memory_space<smem>>, %arg2: memref<2x8xi32, #tpu.memory_space<smem>>) -> (i32, i32, i32) {
    %c0_i32 = arith.constant 0 : i32
    %c0_i32_0 = arith.constant 0 : i32
    %c0_i32_1 = arith.constant 0 : i32
    %c0_i32_2 = arith.constant 0 : i32
    return %c0_i32, %c0_i32_0, %c0_i32_1 : i32, i32, i32
  }
  func.func @transform_12(%arg0: i32, %arg1: memref<2x8xi32, #tpu.memory_space<smem>>, %arg2: memref<2x8xi32, #tpu.memory_space<smem>>) -> (i32, i32, i32) {
    %c0_i32 = arith.constant 0 : i32
    %c0_i32_0 = arith.constant 0 : i32
    %c0_i32_1 = arith.constant 0 : i32
    %c0_i32_2 = arith.constant 0 : i32
    return %c0_i32, %c0_i32_0, %c0_i32_1 : i32, i32, i32
  }
  func.func @transform_13(%arg0: i32, %arg1: memref<2x8xi32, #tpu.memory_space<smem>>, %arg2: memref<2x8xi32, #tpu.memory_space<smem>>) -> (i32, i32, i32) {
    %c0_i32 = arith.constant 0 : i32
    %c0_i32_0 = arith.constant 0 : i32
    %c0_i32_1 = arith.constant 0 : i32
    %c0_i32_2 = arith.constant 0 : i32
    return %c0_i32, %c0_i32_0, %c0_i32_1 : i32, i32, i32
  }
  func.func @transform_14(%arg0: i32, %arg1: memref<2x8xi32, #tpu.memory_space<smem>>, %arg2: memref<2x8xi32, #tpu.memory_space<smem>>) -> (i32, i32, i32) {
    %c0_i32 = arith.constant 0 : i32
    %c0_i32_0 = arith.constant 0 : i32
    %c0_i32_1 = arith.constant 0 : i32
    %c0_i32_2 = arith.constant 0 : i32
    return %c0_i32, %c0_i32_0, %c0_i32_1 : i32, i32, i32
  }
  func.func @transform_15(%arg0: i32, %arg1: memref<2x8xi32, #tpu.memory_space<smem>>, %arg2: memref<2x8xi32, #tpu.memory_space<smem>>) -> (i32, i32, i32) {
    %c0_i32 = arith.constant 0 : i32
    %c0_i32_0 = arith.constant 0 : i32
    %c0_i32_1 = arith.constant 0 : i32
    %c0_i32_2 = arith.constant 0 : i32
    return %c0_i32, %c0_i32_0, %c0_i32_1 : i32, i32, i32
  }
  func.func @transform_16(%arg0: i32, %arg1: memref<2x8xi32, #tpu.memory_space<smem>>, %arg2: memref<2x8xi32, #tpu.memory_space<smem>>) -> (i32, i32, i32) {
    %c0_i32 = arith.constant 0 : i32
    %c0_i32_0 = arith.constant 0 : i32
    %c0_i32_1 = arith.constant 0 : i32
    %c0_i32_2 = arith.constant 0 : i32
    return %c0_i32, %c0_i32_0, %c0_i32_1 : i32, i32, i32
  }
  func.func @transform_17(%arg0: i32, %arg1: memref<2x8xi32, #tpu.memory_space<smem>>, %arg2: memref<2x8xi32, #tpu.memory_space<smem>>) -> (i32, i32) {
    %c0_i32 = arith.constant 0 : i32
    %c0_i32_0 = arith.constant 0 : i32
    %c0_i32_1 = arith.constant 0 : i32
    return %c0_i32, %c0_i32_0 : i32, i32
  }
  func.func @transform_18(%arg0: i32, %arg1: memref<2x8xi32, #tpu.memory_space<smem>>, %arg2: memref<2x8xi32, #tpu.memory_space<smem>>) -> (i32, i32) {
    %c0_i32 = arith.constant 0 : i32
    %c0_i32_0 = arith.constant 0 : i32
    %c0_i32_1 = arith.constant 0 : i32
    return %c0_i32, %c0_i32_0 : i32, i32
  }
  func.func @transform_19(%arg0: i32, %arg1: memref<2x8xi32, #tpu.memory_space<smem>>, %arg2: memref<2x8xi32, #tpu.memory_space<smem>>) -> (i32, i32) {
    %c0_i32 = arith.constant 0 : i32
    %c0_i32_0 = arith.constant 0 : i32
    %c0_i32_1 = arith.constant 0 : i32
    return %c0_i32, %c0_i32_0 : i32, i32
  }
  func.func @transform_20(%arg0: i32, %arg1: memref<2x8xi32, #tpu.memory_space<smem>>, %arg2: memref<2x8xi32, #tpu.memory_space<smem>>) -> (i32, i32) {
    %c0_i32 = arith.constant 0 : i32
    %c0_i32_0 = arith.constant 0 : i32
    %c0_i32_1 = arith.constant 0 : i32
    return %c0_i32, %c0_i32_0 : i32, i32
  }
  func.func @transform_21(%arg0: i32, %arg1: memref<2x8xi32, #tpu.memory_space<smem>>, %arg2: memref<2x8xi32, #tpu.memory_space<smem>>) -> (i32, i32, i32) {
    %c0_i32 = arith.constant 0 : i32
    %c0_i32_0 = arith.constant 0 : i32
    %c0_i32_1 = arith.constant 0 : i32
    return %arg0, %c0_i32, %c0_i32_0 : i32, i32, i32
  }
}

</mosaic_0001>

<llo_original>
// kernel: bert_classifier_forward.1
$region0: #{bert_classifier_forward.1}
  #allocation0 [shape = 'u32[]', space=smem, size = 0x4, offset = 0x4, fixed_abs, tag = 'smem constant byte address 0x4 - core index']
  #allocation1 [shape = 'u32[72,128]{1,0:T(1,128)}', space=vmem, size = 0x9000, scoped, tag = 'internal scratch']
  #allocation2 [shape = 's32[1]{0}', space=sflag, size = 0x4, scoped, tag = 'scoped memory for bert_classifier_forward.1']
  #allocation3 [shape = 'u8[1024]{0}', space=smem, size = 0x400, scoped, tag = 'prefetched SMEM operand 0']
  #allocation4 [shape = 'u8[1024]{0}', space=smem, size = 0x400, scoped, tag = 'prefetched SMEM operand 1']
  %s0 = inlined_call_operand.vmem [shape: s32[2,8], index: 0, kind: input, shape index: {}]
  %s1 = inlined_call_operand.vmem [shape: s32[2,8], index: 1, kind: input, shape index: {}]
  %s2 = inlined_call_operand.vmem [shape: f32[128,32], index: 2, kind: input, shape index: {}]
  %s3 = inlined_call_operand.vmem [shape: f32[64,32], index: 3, kind: input, shape index: {}]
  %s4 = inlined_call_operand.vmem [shape: f32[2,32], index: 4, kind: input, shape index: {}]
  %s5 = inlined_call_operand.vmem [shape: f32[1,32], index: 5, kind: input, shape index: {}]
  %s6 = inlined_call_operand.vmem [shape: f32[1,32], index: 6, kind: input, shape index: {}]
  %s7 = inlined_call_operand.vmem [shape: f32[2,32,96], index: 7, kind: input, shape index: {}]
  %s8 = inlined_call_operand.vmem [shape: f32[2,1,96], index: 8, kind: input, shape index: {}]
  %s9 = inlined_call_operand.vmem [shape: f32[2,32,32], index: 9, kind: input, shape index: {}]
  %s10 = inlined_call_operand.vmem [shape: f32[2,1,32], index: 10, kind: input, shape index: {}]
  %s11 = inlined_call_operand.vmem [shape: f32[2,1,32], index: 11, kind: input, shape index: {}]
  %s12 = inlined_call_operand.vmem [shape: f32[2,1,32], index: 12, kind: input, shape index: {}]
  %s13 = inlined_call_operand.vmem [shape: f32[2,32,64], index: 13, kind: input, shape index: {}]
  %s14 = inlined_call_operand.vmem [shape: f32[2,1,64], index: 14, kind: input, shape index: {}]
  %s15 = inlined_call_operand.vmem [shape: f32[2,64,32], index: 15, kind: input, shape index: {}]
  %s16 = inlined_call_operand.vmem [shape: f32[2,1,32], index: 16, kind: input, shape index: {}]
  %s17 = inlined_call_operand.vmem [shape: f32[2,1,32], index: 17, kind: input, shape index: {}]
  %s18 = inlined_call_operand.vmem [shape: f32[2,1,32], index: 18, kind: input, shape index: {}]
  %s19 = inlined_call_operand.vmem [shape: f32[32,32], index: 19, kind: input, shape index: {}]
  %s20 = inlined_call_operand.vmem [shape: f32[1,32], index: 20, kind: input, shape index: {}]
  %s21 = inlined_call_operand.vmem [shape: f32[32,128], index: 21, kind: input, shape index: {}]
  %s22 = inlined_call_operand.vmem [shape: f32[1,128], index: 22, kind: input, shape index: {}]
  %s23 = inlined_call_operand.vmem [shape: f32[2,8,128], index: 23, kind: output, shape index: {}]
  %s24 = sld [smem:[#allocation0]]
  $region117: #{bert_classifier_forward.1} parent=0
    _
  %s26 = ssub.s32 1, %s24
  %s27 = scalar_select 0, %s26, %s24
  %s29 = sshll.u32 %s0, 4
  %s30 = int_to_ptr.vmem [resolvable:$true] %s29
  %32 = dma.vmem_to_smem %s30, 32, [#allocation3], [#allocation2]
  %s34 = sshll.u32 %s1, 4
  %s35 = int_to_ptr.vmem [resolvable:$true] %s34
  %37 = dma.vmem_to_smem %s35, 32, [#allocation4], [#allocation2]
  %39 = dma.done [#allocation2], 64
  %40 = sfence
  loop: start=0, step=1, limit=4
  $region2: #{bert_classifier_forward.1} parent=0 // loop_pre_header
    _
  $region3: #{bert_classifier_forward.1} parent=0 // loop_header
    %s42 = sphi 0, %s46
    %p43 = scmp.ge.s32.totalorder %s42, 4
    %s50 = sphi 0, %s50
    %s52 = sphi 0, %s50
    %s53 = sphi 0, %s52
    %s67 = sphi 0, %s53
    %s71 = sphi 0, %s71
    %s73 = sphi 0, %s71
    %s74 = sphi 0, %s73
    %s88 = sphi 0, %s74
    %s92 = sphi 0, %s92
    %s94 = sphi 0, %s92
    %s95 = sphi 0, %s94
    %s109 = sphi 0, %s95
    %s113 = sphi 0, %s113
    %s115 = sphi 0, %s113
    %s116 = sphi 0, %s115
    %s130 = sphi 0, %s116
    %s134 = sphi 0, %s134
    %s136 = sphi 0, %s134
    %s137 = sphi 0, %s136
    %s151 = sphi 0, %s137
    %s155 = sphi 0, %s155
    %s157 = sphi 0, %s155
    %s158 = sphi 0, %s157
    %s172 = sphi 0, %s158
    %s176 = sphi 0, %s176
    %s178 = sphi 0, %s176
    %s179 = sphi 0, %s178
    %s193 = sphi 0, %s179
    %s197 = sphi 0, %s197
    %s199 = sphi 0, %s197
    %s200 = sphi 0, %s199
    %s214 = sphi 0, %s200
    %s218 = sphi 0, %s218
    %s220 = sphi 0, %s218
    %s221 = sphi 0, %s220
    %s235 = sphi 0, %s221
    %s239 = sphi 0, %s239
    %s241 = sphi 0, %s239
    %s242 = sphi 0, %s241
    %s256 = sphi 0, %s242
    %s260 = sphi 0, %s260
    %s262 = sphi 0, %s260
    %s263 = sphi 0, %s262
    %s277 = sphi 0, %s263
    %s281 = sphi 0, %s281
    %s283 = sphi 0, %s281
    %s284 = sphi 0, %s283
    %s298 = sphi 0, %s284
    %s302 = sphi 0, %s302
    %s304 = sphi 0, %s302
    %s305 = sphi 0, %s304
    %s319 = sphi 0, %s305
    %s323 = sphi 0, %s323
    %s325 = sphi 0, %s323
    %s326 = sphi 0, %s325
    %s340 = sphi 0, %s326
    %s344 = sphi 0, %s344
    %s346 = sphi 0, %s344
    %s347 = sphi 0, %s346
    %s361 = sphi 0, %s347
    %s365 = sphi 0, %s365
    %s367 = sphi 0, %s365
    %s368 = sphi 0, %s367
    %s382 = sphi 0, %s368
    %s386 = sphi 0, %s386
    %s388 = sphi 0, %s386
    %s389 = sphi 0, %s388
    %s403 = sphi 0, %s389
    %s407 = sphi 0, %s407
    %s409 = sphi 0, %s407
    %s410 = sphi 0, %s409
    %s424 = sphi 0, %s410
    %s428 = sphi 0, %s428
    %s430 = sphi 0, %s428
    %s431 = sphi 0, %s430
    %s445 = sphi 0, %s431
    %s449 = sphi 0, %s449
    %s451 = sphi 0, %s449
    %s452 = sphi 0, %s451
    %s466 = sphi 0, %s452
    %s470 = sphi 0, %s470
    %s472 = sphi 0, %s470
    %s473 = sphi 0, %s472
    %s487 = sphi 0, %s473
    %s493 = sphi 0, %s495
    %s496 = sphi 0, %s493
    %s497 = sphi 0, %s496
    %s513 = sphi 0, %s497
  $region4: #{bert_classifier_forward.1} parent=0 // loop_header_branch
    %45 = sbr.rel (%p43) target = $region8
  $region5: #{bert_classifier_forward.1} parent=0 // loop_body
    %s47 = ssub.s32 %s42, 1
    %s48 = ssub.s32 %s42, 2
    %s49 = sadd.s32 %s42, 1
    %s51 = sadd.s32 %s50, 1
    %p54 = scmp.eq.s32.totalorder %s42, 1
    %p55 = scmp.ne.s32.totalorder %s50, %s52
    %p56 = scmp.eq.s32.totalorder %s42, 0
    %p57 = por %p55, %p56
    %p58 = scmp.ne.s32.totalorder %s50, %s52
    %p59 = scmp.eq.s32.totalorder %s47, 1
    %p60 = por %p58, %p59
    %p61 = scmp.ne.s32.totalorder %s52, %s53
    %p62 = scmp.eq.s32.totalorder %s47, 0
    %p63 = por %p61, %p62
    %p64 = scmp.ne.s32.totalorder %s52, %s53
    %p65 = scmp.eq.s32.totalorder %s48, 1
    %p66 = por %p64, %p65
    %p68 = scmp.ne.s32.totalorder %s53, %s67
    %p69 = scmp.eq.s32.totalorder %s48, 0
    %p70 = por %p68, %p69
    %s72 = sadd.s32 %s71, 1
    %p75 = scmp.eq.s32.totalorder %s42, 1
    %p76 = scmp.ne.s32.totalorder %s71, %s73
    %p77 = scmp.eq.s32.totalorder %s42, 0
    %p78 = por %p76, %p77
    %p79 = scmp.ne.s32.totalorder %s71, %s73
    %p80 = scmp.eq.s32.totalorder %s47, 1
    %p81 = por %p79, %p80
    %p82 = scmp.ne.s32.totalorder %s73, %s74
    %p83 = scmp.eq.s32.totalorder %s47, 0
    %p84 = por %p82, %p83
    %p85 = scmp.ne.s32.totalorder %s73, %s74
    %p86 = scmp.eq.s32.totalorder %s48, 1
    %p87 = por %p85, %p86
    %p89 = scmp.ne.s32.totalorder %s74, %s88
    %p90 = scmp.eq.s32.totalorder %s48, 0
    %p91 = por %p89, %p90
    %s93 = sadd.s32 %s92, 1
    %p96 = scmp.eq.s32.totalorder %s42, 1
    %p97 = scmp.ne.s32.totalorder %s92, %s94
    %p98 = scmp.eq.s32.totalorder %s42, 0
    %p99 = por %p97, %p98
    %p100 = scmp.ne.s32.totalorder %s92, %s94
    %p101 = scmp.eq.s32.totalorder %s47, 1
    %p102 = por %p100, %p101
    %p103 = scmp.ne.s32.totalorder %s94, %s95
    %p104 = scmp.eq.s32.totalorder %s47, 0
    %p105 = por %p103, %p104
    %p106 = scmp.ne.s32.totalorder %s94, %s95
    %p107 = scmp.eq.s32.totalorder %s48, 1
    %p108 = por %p106, %p107
    %p110 = scmp.ne.s32.totalorder %s95, %s109
    %p111 = scmp.eq.s32.totalorder %s48, 0
    %p112 = por %p110, %p111
    %s114 = sadd.s32 %s113, 1
    %p117 = scmp.eq.s32.totalorder %s42, 1
    %p118 = scmp.ne.s32.totalorder %s113, %s115
    %p119 = scmp.eq.s32.totalorder %s42, 0
    %p120 = por %p118, %p119
    %p121 = scmp.ne.s32.totalorder %s113, %s115
    %p122 = scmp.eq.s32.totalorder %s47, 1
    %p123 = por %p121, %p122
    %p124 = scmp.ne.s32.totalorder %s115, %s116
    %p125 = scmp.eq.s32.totalorder %s47, 0
    %p126 = por %p124, %p125
    %p127 = scmp.ne.s32.totalorder %s115, %s116
    %p128 = scmp.eq.s32.totalorder %s48, 1
    %p129 = por %p127, %p128
    %p131 = scmp.ne.s32.totalorder %s116, %s130
    %p132 = scmp.eq.s32.totalorder %s48, 0
    %p133 = por %p131, %p132
    %s135 = sadd.s32 %s134, 1
    %p138 = scmp.eq.s32.totalorder %s42, 1
    %p139 = scmp.ne.s32.totalorder %s134, %s136
    %p140 = scmp.eq.s32.totalorder %s42, 0
    %p141 = por %p139, %p140
    %p142 = scmp.ne.s32.totalorder %s134, %s136
    %p143 = scmp.eq.s32.totalorder %s47, 1
    %p144 = por %p142, %p143
    %p145 = scmp.ne.s32.totalorder %s136, %s137
    %p146 = scmp.eq.s32.totalorder %s47, 0
    %p147 = por %p145, %p146
    %p148 = scmp.ne.s32.totalorder %s136, %s137
    %p149 = scmp.eq.s32.totalorder %s48, 1
    %p150 = por %p148, %p149
    %p152 = scmp.ne.s32.totalorder %s137, %s151
    %p153 = scmp.eq.s32.totalorder %s48, 0
    %p154 = por %p152, %p153
    %s156 = sadd.s32 %s155, 1
    %p159 = scmp.eq.s32.totalorder %s42, 1
    %p160 = scmp.ne.s32.totalorder %s155, %s157
    %p161 = scmp.eq.s32.totalorder %s42, 0
    %p162 = por %p160, %p161
    %p163 = scmp.ne.s32.totalorder %s155, %s157
    %p164 = scmp.eq.s32.totalorder %s47, 1
    %p165 = por %p163, %p164
    %p166 = scmp.ne.s32.totalorder %s157, %s158
    %p167 = scmp.eq.s32.totalorder %s47, 0
    %p168 = por %p166, %p167
    %p169 = scmp.ne.s32.totalorder %s157, %s158
    %p170 = scmp.eq.s32.totalorder %s48, 1
    %p171 = por %p169, %p170
    %p173 = scmp.ne.s32.totalorder %s158, %s172
    %p174 = scmp.eq.s32.totalorder %s48, 0
    %p175 = por %p173, %p174
    %s177 = sadd.s32 %s176, 1
    %p180 = scmp.eq.s32.totalorder %s42, 1
    %p181 = scmp.ne.s32.totalorder %s176, %s178
    %p182 = scmp.eq.s32.totalorder %s42, 0
    %p183 = por %p181, %p182
    %p184 = scmp.ne.s32.totalorder %s176, %s178
    %p185 = scmp.eq.s32.totalorder %s47, 1
    %p186 = por %p184, %p185
    %p187 = scmp.ne.s32.totalorder %s178, %s179
    %p188 = scmp.eq.s32.totalorder %s47, 0
    %p189 = por %p187, %p188
    %p190 = scmp.ne.s32.totalorder %s178, %s179
    %p191 = scmp.eq.s32.totalorder %s48, 1
    %p192 = por %p190, %p191
    %p194 = scmp.ne.s32.totalorder %s179, %s193
    %p195 = scmp.eq.s32.totalorder %s48, 0
    %p196 = por %p194, %p195
    %s198 = sadd.s32 %s197, 1
    %p201 = scmp.eq.s32.totalorder %s42, 1
    %p202 = scmp.ne.s32.totalorder %s197, %s199
    %p203 = scmp.eq.s32.totalorder %s42, 0
    %p204 = por %p202, %p203
    %p205 = scmp.ne.s32.totalorder %s197, %s199
    %p206 = scmp.eq.s32.totalorder %s47, 1
    %p207 = por %p205, %p206
    %p208 = scmp.ne.s32.totalorder %s199, %s200
    %p209 = scmp.eq.s32.totalorder %s47, 0
    %p210 = por %p208, %p209
    %p211 = scmp.ne.s32.totalorder %s199, %s200
    %p212 = scmp.eq.s32.totalorder %s48, 1
    %p213 = por %p211, %p212
    %p215 = scmp.ne.s32.totalorder %s200, %s214
    %p216 = scmp.eq.s32.totalorder %s48, 0
    %p217 = por %p215, %p216
    %s219 = sadd.s32 %s218, 1
    %p222 = scmp.eq.s32.totalorder %s42, 1
    %p223 = scmp.ne.s32.totalorder %s218, %s220
    %p224 = scmp.eq.s32.totalorder %s42, 0
    %p225 = por %p223, %p224
    %p226 = scmp.ne.s32.totalorder %s218, %s220
    %p227 = scmp.eq.s32.totalorder %s47, 1
    %p228 = por %p226, %p227
    %p229 = scmp.ne.s32.totalorder %s220, %s221
    %p230 = scmp.eq.s32.totalorder %s47, 0
    %p231 = por %p229, %p230
    %p232 = scmp.ne.s32.totalorder %s220, %s221
    %p233 = scmp.eq.s32.totalorder %s48, 1
    %p234 = por %p232, %p233
    %p236 = scmp.ne.s32.totalorder %s221, %s235
    %p237 = scmp.eq.s32.totalorder %s48, 0
    %p238 = por %p236, %p237
    %s240 = sadd.s32 %s239, 1
    %p243 = scmp.eq.s32.totalorder %s42, 1
    %p244 = scmp.ne.s32.totalorder %s239, %s241
    %p245 = scmp.eq.s32.totalorder %s42, 0
    %p246 = por %p244, %p245
    %p247 = scmp.ne.s32.totalorder %s239, %s241
    %p248 = scmp.eq.s32.totalorder %s47, 1
    %p249 = por %p247, %p248
    %p250 = scmp.ne.s32.totalorder %s241, %s242
    %p251 = scmp.eq.s32.totalorder %s47, 0
    %p252 = por %p250, %p251
    %p253 = scmp.ne.s32.totalorder %s241, %s242
    %p254 = scmp.eq.s32.totalorder %s48, 1
    %p255 = por %p253, %p254
    %p257 = scmp.ne.s32.totalorder %s242, %s256
    %p258 = scmp.eq.s32.totalorder %s48, 0
    %p259 = por %p257, %p258
    %s261 = sadd.s32 %s260, 1
    %p264 = scmp.eq.s32.totalorder %s42, 1
    %p265 = scmp.ne.s32.totalorder %s260, %s262
    %p266 = scmp.eq.s32.totalorder %s42, 0
    %p267 = por %p265, %p266
    %p268 = scmp.ne.s32.totalorder %s260, %s262
    %p269 = scmp.eq.s32.totalorder %s47, 1
    %p270 = por %p268, %p269
    %p271 = scmp.ne.s32.totalorder %s262, %s263
    %p272 = scmp.eq.s32.totalorder %s47, 0
    %p273 = por %p271, %p272
    %p274 = scmp.ne.s32.totalorder %s262, %s263
    %p275 = scmp.eq.s32.totalorder %s48, 1
    %p276 = por %p274, %p275
    %p278 = scmp.ne.s32.totalorder %s263, %s277
    %p279 = scmp.eq.s32.totalorder %s48, 0
    %p280 = por %p278, %p279
    %s282 = sadd.s32 %s281, 1
    %p285 = scmp.eq.s32.totalorder %s42, 1
    %p286 = scmp.ne.s32.totalorder %s281, %s283
    %p287 = scmp.eq.s32.totalorder %s42, 0
    %p288 = por %p286, %p287
    %p289 = scmp.ne.s32.totalorder %s281, %s283
    %p290 = scmp.eq.s32.totalorder %s47, 1
    %p291 = por %p289, %p290
    %p292 = scmp.ne.s32.totalorder %s283, %s284
    %p293 = scmp.eq.s32.totalorder %s47, 0
    %p294 = por %p292, %p293
    %p295 = scmp.ne.s32.totalorder %s283, %s284
    %p296 = scmp.eq.s32.totalorder %s48, 1
    %p297 = por %p295, %p296
    %p299 = scmp.ne.s32.totalorder %s284, %s298
    %p300 = scmp.eq.s32.totalorder %s48, 0
    %p301 = por %p299, %p300
    %s303 = sadd.s32 %s302, 1
    %p306 = scmp.eq.s32.totalorder %s42, 1
    %p307 = scmp.ne.s32.totalorder %s302, %s304
    %p308 = scmp.eq.s32.totalorder %s42, 0
    %p309 = por %p307, %p308
    %p310 = scmp.ne.s32.totalorder %s302, %s304
    %p311 = scmp.eq.s32.totalorder %s47, 1
    %p312 = por %p310, %p311
    %p313 = scmp.ne.s32.totalorder %s304, %s305
    %p314 = scmp.eq.s32.totalorder %s47, 0
    %p315 = por %p313, %p314
    %p316 = scmp.ne.s32.totalorder %s304, %s305
    %p317 = scmp.eq.s32.totalorder %s48, 1
    %p318 = por %p316, %p317
    %p320 = scmp.ne.s32.totalorder %s305, %s319
    %p321 = scmp.eq.s32.totalorder %s48, 0
    %p322 = por %p320, %p321
    %s324 = sadd.s32 %s323, 1
    %p327 = scmp.eq.s32.totalorder %s42, 1
    %p328 = scmp.ne.s32.totalorder %s323, %s325
    %p329 = scmp.eq.s32.totalorder %s42, 0
    %p330 = por %p328, %p329
    %p331 = scmp.ne.s32.totalorder %s323, %s325
    %p332 = scmp.eq.s32.totalorder %s47, 1
    %p333 = por %p331, %p332
    %p334 = scmp.ne.s32.totalorder %s325, %s326
    %p335 = scmp.eq.s32.totalorder %s47, 0
    %p336 = por %p334, %p335
    %p337 = scmp.ne.s32.totalorder %s325, %s326
    %p338 = scmp.eq.s32.totalorder %s48, 1
    %p339 = por %p337, %p338
    %p341 = scmp.ne.s32.totalorder %s326, %s340
    %p342 = scmp.eq.s32.totalorder %s48, 0
    %p343 = por %p341, %p342
    %s345 = sadd.s32 %s344, 1
    %p348 = scmp.eq.s32.totalorder %s42, 1
    %p349 = scmp.ne.s32.totalorder %s344, %s346
    %p350 = scmp.eq.s32.totalorder %s42, 0
    %p351 = por %p349, %p350
    %p352 = scmp.ne.s32.totalorder %s344, %s346
    %p353 = scmp.eq.s32.totalorder %s47, 1
    %p354 = por %p352, %p353
    %p355 = scmp.ne.s32.totalorder %s346, %s347
    %p356 = scmp.eq.s32.totalorder %s47, 0
    %p357 = por %p355, %p356
    %p358 = scmp.ne.s32.totalorder %s346, %s347
    %p359 = scmp.eq.s32.totalorder %s48, 1
    %p360 = por %p358, %p359
    %p362 = scmp.ne.s32.totalorder %s347, %s361
    %p363 = scmp.eq.s32.totalorder %s48, 0
    %p364 = por %p362, %p363
    %s366 = sadd.s32 %s365, 1
    %p369 = scmp.eq.s32.totalorder %s42, 1
    %p370 = scmp.ne.s32.totalorder %s365, %s367
    %p371 = scmp.eq.s32.totalorder %s42, 0
    %p372 = por %p370, %p371
    %p373 = scmp.ne.s32.totalorder %s365, %s367
    %p374 = scmp.eq.s32.totalorder %s47, 1
    %p375 = por %p373, %p374
    %p376 = scmp.ne.s32.totalorder %s367, %s368
    %p377 = scmp.eq.s32.totalorder %s47, 0
    %p378 = por %p376, %p377
    %p379 = scmp.ne.s32.totalorder %s367, %s368
    %p380 = scmp.eq.s32.totalorder %s48, 1
    %p381 = por %p379, %p380
    %p383 = scmp.ne.s32.totalorder %s368, %s382
    %p384 = scmp.eq.s32.totalorder %s48, 0
    %p385 = por %p383, %p384
    %s387 = sadd.s32 %s386, 1
    %p390 = scmp.eq.s32.totalorder %s42, 1
    %p391 = scmp.ne.s32.totalorder %s386, %s388
    %p392 = scmp.eq.s32.totalorder %s42, 0
    %p393 = por %p391, %p392
    %p394 = scmp.ne.s32.totalorder %s386, %s388
    %p395 = scmp.eq.s32.totalorder %s47, 1
    %p396 = por %p394, %p395
    %p397 = scmp.ne.s32.totalorder %s388, %s389
    %p398 = scmp.eq.s32.totalorder %s47, 0
    %p399 = por %p397, %p398
    %p400 = scmp.ne.s32.totalorder %s388, %s389
    %p401 = scmp.eq.s32.totalorder %s48, 1
    %p402 = por %p400, %p401
    %p404 = scmp.ne.s32.totalorder %s389, %s403
    %p405 = scmp.eq.s32.totalorder %s48, 0
    %p406 = por %p404, %p405
    %s408 = sadd.s32 %s407, 1
    %p411 = scmp.eq.s32.totalorder %s42, 1
    %p412 = scmp.ne.s32.totalorder %s407, %s409
    %p413 = scmp.eq.s32.totalorder %s42, 0
    %p414 = por %p412, %p413
    %p415 = scmp.ne.s32.totalorder %s407, %s409
    %p416 = scmp.eq.s32.totalorder %s47, 1
    %p417 = por %p415, %p416
    %p418 = scmp.ne.s32.totalorder %s409, %s410
    %p419 = scmp.eq.s32.totalorder %s47, 0
    %p420 = por %p418, %p419
    %p421 = scmp.ne.s32.totalorder %s409, %s410
    %p422 = scmp.eq.s32.totalorder %s48, 1
    %p423 = por %p421, %p422
    %p425 = scmp.ne.s32.totalorder %s410, %s424
    %p426 = scmp.eq.s32.totalorder %s48, 0
    %p427 = por %p425, %p426
    %s429 = sadd.s32 %s428, 1
    %p432 = scmp.eq.s32.totalorder %s42, 1
    %p433 = scmp.ne.s32.totalorder %s428, %s430
    %p434 = scmp.eq.s32.totalorder %s42, 0
    %p435 = por %p433, %p434
    %p436 = scmp.ne.s32.totalorder %s428, %s430
    %p437 = scmp.eq.s32.totalorder %s47, 1
    %p438 = por %p436, %p437
    %p439 = scmp.ne.s32.totalorder %s430, %s431
    %p440 = scmp.eq.s32.totalorder %s47, 0
    %p441 = por %p439, %p440
    %p442 = scmp.ne.s32.totalorder %s430, %s431
    %p443 = scmp.eq.s32.totalorder %s48, 1
    %p444 = por %p442, %p443
    %p446 = scmp.ne.s32.totalorder %s431, %s445
    %p447 = scmp.eq.s32.totalorder %s48, 0
    %p448 = por %p446, %p447
    %s450 = sadd.s32 %s449, 1
    %p453 = scmp.eq.s32.totalorder %s42, 1
    %p454 = scmp.ne.s32.totalorder %s449, %s451
    %p455 = scmp.eq.s32.totalorder %s42, 0
    %p456 = por %p454, %p455
    %p457 = scmp.ne.s32.totalorder %s449, %s451
    %p458 = scmp.eq.s32.totalorder %s47, 1
    %p459 = por %p457, %p458
    %p460 = scmp.ne.s32.totalorder %s451, %s452
    %p461 = scmp.eq.s32.totalorder %s47, 0
    %p462 = por %p460, %p461
    %p463 = scmp.ne.s32.totalorder %s451, %s452
    %p464 = scmp.eq.s32.totalorder %s48, 1
    %p465 = por %p463, %p464
    %p467 = scmp.ne.s32.totalorder %s452, %s466
    %p468 = scmp.eq.s32.totalorder %s48, 0
    %p469 = por %p467, %p468
    %s471 = sadd.s32 %s470, 1
    %p474 = scmp.eq.s32.totalorder %s42, 1
    %p475 = scmp.ne.s32.totalorder %s470, %s472
    %p476 = scmp.eq.s32.totalorder %s42, 0
    %p477 = por %p475, %p476
    %p478 = scmp.ne.s32.totalorder %s470, %s472
    %p479 = scmp.eq.s32.totalorder %s47, 1
    %p480 = por %p478, %p479
    %p481 = scmp.ne.s32.totalorder %s472, %s473
    %p482 = scmp.eq.s32.totalorder %s47, 0
    %p483 = por %p481, %p482
    %p484 = scmp.ne.s32.totalorder %s472, %s473
    %p485 = scmp.eq.s32.totalorder %s48, 1
    %p486 = por %p484, %p485
    %p488 = scmp.ne.s32.totalorder %s473, %s487
    %p489 = scmp.eq.s32.totalorder %s48, 0
    %p490 = por %p488, %p489
    %s491 = ssub.s32 %s42, %s49
    %p492 = scmp.eq.s32.totalorder %s491, 0
    %s494 = sadd.s32 %s493, 1
    %s495 = scalar_select %p492, %s493, %s494
    %p498 = pneg %p492
    %p499 = scmp.eq.s32.totalorder %s42, 1
    %p500 = por %p498, %p499
    %p501 = scmp.ne.s32.totalorder %s493, %s496
    %p502 = scmp.eq.s32.totalorder %s42, 0
    %p503 = por %p501, %p502
    %p504 = scmp.ne.s32.totalorder %s493, %s496
    %p505 = scmp.eq.s32.totalorder %s47, 1
    %p506 = por %p504, %p505
    %p507 = scmp.ne.s32.totalorder %s496, %s497
    %p508 = scmp.eq.s32.totalorder %s47, 0
    %p509 = por %p507, %p508
    %p510 = scmp.ne.s32.totalorder %s496, %s497
    %p511 = scmp.eq.s32.totalorder %s48, 1
    %p512 = por %p510, %p511
    %p514 = scmp.ne.s32.totalorder %s497, %s513
    %p515 = scmp.eq.s32.totalorder %s48, 0
    %p516 = por %p514, %p515
    %p517 = scmp.le.s32.totalorder 1, %s42
    %p518 = scmp.lt.s32.totalorder %s42, 3
    %p519 = pnand %p517, %p518
    %p520 = pneg %p519
    // Predicated region
    $region9: #{bert_classifier_forward.1} parent=5 // pred_check
      _
    $region10: #{bert_classifier_forward.1} parent=5 // pred_check_branch
      %522 = sbr.rel (%p519) target = $region12
    $region11: #{bert_classifier_forward.1} parent=5 // pred_region
      %s523 = ssub.s32 %s42, 1
      // Predicated region
      $region13: #{bert_classifier_forward.1} parent=11 // pred_check
        %p524 = pneg %p63
      $region14: #{bert_classifier_forward.1} parent=11 // pred_check_branch
        %526 = sbr.rel (%p524) target = $region16
      $region15: #{bert_classifier_forward.1} parent=11 // pred_region
        _
      $region16: #{bert_classifier_forward.1} parent=11 // pred_fallthru
        _
      // Predicated region
      $region17: #{bert_classifier_forward.1} parent=11 // pred_check
        %p527 = pneg %p84
      $region18: #{bert_classifier_forward.1} parent=11 // pred_check_branch
        %529 = sbr.rel (%p527) target = $region20
      $region19: #{bert_classifier_forward.1} parent=11 // pred_region
        _
      $region20: #{bert_classifier_forward.1} parent=11 // pred_fallthru
        _
      // Predicated region
      $region21: #{bert_classifier_forward.1} parent=11 // pred_check
        %p530 = pneg %p105
      $region22: #{bert_classifier_forward.1} parent=11 // pred_check_branch
        %532 = sbr.rel (%p530) target = $region24
      $region23: #{bert_classifier_forward.1} parent=11 // pred_region
        _
      $region24: #{bert_classifier_forward.1} parent=11 // pred_fallthru
        _
      // Predicated region
      $region25: #{bert_classifier_forward.1} parent=11 // pred_check
        %p533 = pneg %p126
      $region26: #{bert_classifier_forward.1} parent=11 // pred_check_branch
        %535 = sbr.rel (%p533) target = $region28
      $region27: #{bert_classifier_forward.1} parent=11 // pred_region
        _
      $region28: #{bert_classifier_forward.1} parent=11 // pred_fallthru
        _
      // Predicated region
      $region29: #{bert_classifier_forward.1} parent=11 // pred_check
        %p536 = pneg %p147
      $region30: #{bert_classifier_forward.1} parent=11 // pred_check_branch
        %538 = sbr.rel (%p536) target = $region32
      $region31: #{bert_classifier_forward.1} parent=11 // pred_region
        _
      $region32: #{bert_classifier_forward.1} parent=11 // pred_fallthru
        _
      // Predicated region
      $region33: #{bert_classifier_forward.1} parent=11 // pred_check
        %p539 = pneg %p168
      $region34: #{bert_classifier_forward.1} parent=11 // pred_check_branch
        %541 = sbr.rel (%p539) target = $region36
      $region35: #{bert_classifier_forward.1} parent=11 // pred_region
        _
      $region36: #{bert_classifier_forward.1} parent=11 // pred_fallthru
        _
      // Predicated region
      $region37: #{bert_classifier_forward.1} parent=11 // pred_check
        %p542 = pneg %p189
      $region38: #{bert_classifier_forward.1} parent=11 // pred_check_branch
        %544 = sbr.rel (%p542) target = $region40
      $region39: #{bert_classifier_forward.1} parent=11 // pred_region
        _
      $region40: #{bert_classifier_forward.1} parent=11 // pred_fallthru
        _
      // Predicated region
      $region41: #{bert_classifier_forward.1} parent=11 // pred_check
        %p545 = pneg %p210
      $region42: #{bert_classifier_forward.1} parent=11 // pred_check_branch
        %547 = sbr.rel (%p545) target = $region44
      $region43: #{bert_classifier_forward.1} parent=11 // pred_region
        _
      $region44: #{bert_classifier_forward.1} parent=11 // pred_fallthru
        _
      // Predicated region
      $region45: #{bert_classifier_forward.1} parent=11 // pred_check
        %p548 = pneg %p231
      $region46: #{bert_classifier_forward.1} parent=11 // pred_check_branch
        %550 = sbr.rel (%p548) target = $region48
      $region47: #{bert_classifier_forward.1} parent=11 // pred_region
        _
      $region48: #{bert_classifier_forward.1} parent=11 // pred_fallthru
        _
      // Predicated region
      $region49: #{bert_classifier_forward.1} parent=11 // pred_check
        %p551 = pneg %p252
      $region50: #{bert_classifier_forward.1} parent=11 // pred_check_branch
        %553 = sbr.rel (%p551) target = $region52
      $region51: #{bert_classifier_forward.1} parent=11 // pred_region
        _
      $region52: #{bert_classifier_forward.1} parent=11 // pred_fallthru
        _
      // Predicated region
      $region53: #{bert_classifier_forward.1} parent=11 // pred_check
        %p554 = pneg %p273
      $region54: #{bert_classifier_forward.1} parent=11 // pred_check_branch
        %556 = sbr.rel (%p554) target = $region56
      $region55: #{bert_classifier_forward.1} parent=11 // pred_region
        _
      $region56: #{bert_classifier_forward.1} parent=11 // pred_fallthru
        _
      // Predicated region
      $region57: #{bert_classifier_forward.1} parent=11 // pred_check
        %p557 = pneg %p294
      $region58: #{bert_classifier_forward.1} parent=11 // pred_check_branch
        %559 = sbr.rel (%p557) target = $region60
      $region59: #{bert_classifier_forward.1} parent=11 // pred_region
        _
      $region60: #{bert_classifier_forward.1} parent=11 // pred_fallthru
        _
      // Predicated region
      $region61: #{bert_classifier_forward.1} parent=11 // pred_check
        %p560 = pneg %p315
      $region62: #{bert_classifier_forward.1} parent=11 // pred_check_branch
        %562 = sbr.rel (%p560) target = $region64
      $region63: #{bert_classifier_forward.1} parent=11 // pred_region
        _
      $region64: #{bert_classifier_forward.1} parent=11 // pred_fallthru
        _
      // Predicated region
      $region65: #{bert_classifier_forward.1} parent=11 // pred_check
        %p563 = pneg %p336
      $region66: #{bert_classifier_forward.1} parent=11 // pred_check_branch
        %565 = sbr.rel (%p563) target = $region68
      $region67: #{bert_classifier_forward.1} parent=11 // pred_region
        _
      $region68: #{bert_classifier_forward.1} parent=11 // pred_fallthru
        _
      // Predicated region
      $region69: #{bert_classifier_forward.1} parent=11 // pred_check
        %p566 = pneg %p357
      $region70: #{bert_classifier_forward.1} parent=11 // pred_check_branch
        %568 = sbr.rel (%p566) target = $region72
      $region71: #{bert_classifier_forward.1} parent=11 // pred_region
        _
      $region72: #{bert_classifier_forward.1} parent=11 // pred_fallthru
        _
      // Predicated region
      $region73: #{bert_classifier_forward.1} parent=11 // pred_check
        %p569 = pneg %p378
      $region74: #{bert_classifier_forward.1} parent=11 // pred_check_branch
        %571 = sbr.rel (%p569) target = $region76
      $region75: #{bert_classifier_forward.1} parent=11 // pred_region
        _
      $region76: #{bert_classifier_forward.1} parent=11 // pred_fallthru
        _
      // Predicated region
      $region77: #{bert_classifier_forward.1} parent=11 // pred_check
        %p572 = pneg %p399
      $region78: #{bert_classifier_forward.1} parent=11 // pred_check_branch
        %574 = sbr.rel (%p572) target = $region80
      $region79: #{bert_classifier_forward.1} parent=11 // pred_region
        _
      $region80: #{bert_classifier_forward.1} parent=11 // pred_fallthru
        _
      // Predicated region
      $region81: #{bert_classifier_forward.1} parent=11 // pred_check
        %p575 = pneg %p420
      $region82: #{bert_classifier_forward.1} parent=11 // pred_check_branch
        %577 = sbr.rel (%p575) target = $region84
      $region83: #{bert_classifier_forward.1} parent=11 // pred_region
        _
      $region84: #{bert_classifier_forward.1} parent=11 // pred_fallthru
        _
      // Predicated region
      $region85: #{bert_classifier_forward.1} parent=11 // pred_check
        %p578 = pneg %p441
      $region86: #{bert_classifier_forward.1} parent=11 // pred_check_branch
        %580 = sbr.rel (%p578) target = $region88
      $region87: #{bert_classifier_forward.1} parent=11 // pred_region
        _
      $region88: #{bert_classifier_forward.1} parent=11 // pred_fallthru
        _
      // Predicated region
      $region89: #{bert_classifier_forward.1} parent=11 // pred_check
        %p581 = pneg %p462
      $region90: #{bert_classifier_forward.1} parent=11 // pred_check_branch
        %583 = sbr.rel (%p581) target = $region92
      $region91: #{bert_classifier_forward.1} parent=11 // pred_region
        _
      $region92: #{bert_classifier_forward.1} parent=11 // pred_fallthru
        _
      // Predicated region
      $region93: #{bert_classifier_forward.1} parent=11 // pred_check
        %p584 = pneg %p483
      $region94: #{bert_classifier_forward.1} parent=11 // pred_check_branch
        %586 = sbr.rel (%p584) target = $region96
      $region95: #{bert_classifier_forward.1} parent=11 // pred_region
        _
      $region96: #{bert_classifier_forward.1} parent=11 // pred_fallthru
        _
    $region12: #{bert_classifier_forward.1} parent=5 // pred_fallthru
      _
    %p587 = scmp.lt.s32.totalorder %s42, 2
    // Predicated region
    $region97: #{bert_classifier_forward.1} parent=5 // pred_check
      %p588 = pneg %p587
    $region98: #{bert_classifier_forward.1} parent=5 // pred_check_branch
      %590 = sbr.rel (%p588) target = $region100
    $region99: #{bert_classifier_forward.1} parent=5 // pred_region
      _
    $region100: #{bert_classifier_forward.1} parent=5 // pred_fallthru
      _
    %p591 = scmp.le.s32.totalorder 1, %s42
    %p592 = scmp.lt.s32.totalorder %s42, 3
    %p593 = pnand %p591, %p592
    %p594 = pneg %p593
    // Predicated region
    $region101: #{bert_classifier_forward.1} parent=5 // pred_check
      _
    $region102: #{bert_classifier_forward.1} parent=5 // pred_check_branch
      %596 = sbr.rel (%p593) target = $region104
    $region103: #{bert_classifier_forward.1} parent=5 // pred_region
      %s597 = ssub.s32 %s42, 1
      %p598 = pneg %p63
      %p599 = pneg %p60
      %p600 = pneg %p84
      %p601 = pneg %p81
      %p602 = pneg %p105
      %p603 = pneg %p102
      %p604 = pneg %p126
      %p605 = pneg %p123
      %p606 = pneg %p147
      %p607 = pneg %p144
      %p608 = pneg %p168
      %p609 = pneg %p165
      %p610 = pneg %p189
      %p611 = pneg %p186
      %p612 = pneg %p210
      %p613 = pneg %p207
      %p614 = pneg %p231
      %p615 = pneg %p228
      %p616 = pneg %p252
      %p617 = pneg %p249
      %p618 = pneg %p273
      %p619 = pneg %p270
      %p620 = pneg %p294
      %p621 = pneg %p291
      %p622 = pneg %p315
      %p623 = pneg %p312
      %p624 = pneg %p336
      %p625 = pneg %p333
      %p626 = pneg %p357
      %p627 = pneg %p354
      %p628 = pneg %p378
      %p629 = pneg %p375
      %p630 = pneg %p399
      %p631 = pneg %p396
      %p632 = pneg %p420
      %p633 = pneg %p417
      %p634 = pneg %p441
      %p635 = pneg %p438
      %p636 = pneg %p462
      %p637 = pneg %p459
      %p638 = pneg %p483
      %p639 = pneg %p480
      %p640 = pneg %p509
      %p641 = pneg %p506
      %p642 = scmp.lt.s32.totalorder %s47, 1
      %s643 = scalar_select %p642, %s47, 1
      %s644 = smul.addr %s643, 8
      %s645 = scalar_lea.vmem %s23, %s644
      %p646 = scmp.lt.s32.totalorder %s47, 1
      %s647 = scalar_select %p646, %s47, 1
      %s648 = smul.addr %s647, 8
      %s649 = scalar_lea.vmem %s23, %s648
      %v650 = vlaneseq
      %v651 = vshrl.u32 %v650, 7
      %v652 = vlaneseq
      %v653 = vand.u32 %v652, 127
      %vm654 = vcmp.eq.s32.totalorder %v651, 0
      %s655 = smul.u32 %s47, 128
      %s656 = sld [smem:[#allocation3 + %s655]]
      %v657 = vstv %s656
      %v658 = vsel %vm654, %v657, 0
      %vm659 = vcmp.eq.s32.totalorder %v653, 0
      %s660 = sld [smem:[#allocation4 + %s655]]
      %s661 = scvt.s32.f32 %s660
      %v662 = vstv %s661
      %v663 = vsel %vm659, %v662, 0.0
      %vm664 = vcmp.eq.s32.totalorder %v651, 1
      %s665 = sadd.s32 %s655, 1
      %s666 = sld [smem:[#allocation3 + %s665]]
      %v667 = vstv %s666
      %v668 = vsel %vm664, %v667, %v658
      %vm669 = vcmp.eq.s32.totalorder %v653, 1
      %s670 = sld [smem:[#allocation4 + %s665]]
      %s671 = scvt.s32.f32 %s670
      %v672 = vstv %s671
      %v673 = vsel %vm669, %v672, %v663
      %vm674 = vcmp.eq.s32.totalorder %v651, 2
      %s675 = sadd.s32 %s655, 2
      %s676 = sld [smem:[#allocation3 + %s675]]
      %v677 = vstv %s676
      %v678 = vsel %vm674, %v677, %v668
      %vm679 = vcmp.eq.s32.totalorder %v653, 2
      %s680 = sld [smem:[#allocation4 + %s675]]
      %s681 = scvt.s32.f32 %s680
      %v682 = vstv %s681
      %v683 = vsel %vm679, %v682, %v673
      %vm684 = vcmp.eq.s32.totalorder %v651, 3
      %s685 = sadd.s32 %s655, 3
      %s686 = sld [smem:[#allocation3 + %s685]]
      %v687 = vstv %s686
      %v688 = vsel %vm684, %v687, %v678
      %vm689 = vcmp.eq.s32.totalorder %v653, 3
      %s690 = sld [smem:[#allocation4 + %s685]]
      %s691 = scvt.s32.f32 %s690
      %v692 = vstv %s691
      %v693 = vsel %vm689, %v692, %v683
      %vm694 = vcmp.eq.s32.totalorder %v651, 4
      %s695 = sadd.s32 %s655, 4
      %s696 = sld [smem:[#allocation3 + %s695]]
      %v697 = vstv %s696
      %v698 = vsel %vm694, %v697, %v688
      %vm699 = vcmp.eq.s32.totalorder %v653, 4
      %s700 = sld [smem:[#allocation4 + %s695]]
      %s701 = scvt.s32.f32 %s700
      %v702 = vstv %s701
      %v703 = vsel %vm699, %v702, %v693
      %vm704 = vcmp.eq.s32.totalorder %v651, 5
      %s705 = sadd.s32 %s655, 5
      %s706 = sld [smem:[#allocation3 + %s705]]
      %v707 = vstv %s706
      %v708 = vsel %vm704, %v707, %v698
      %vm709 = vcmp.eq.s32.totalorder %v653, 5
      %s710 = sld [smem:[#allocation4 + %s705]]
      %s711 = scvt.s32.f32 %s710
      %v712 = vstv %s711
      %v713 = vsel %vm709, %v712, %v703
      %vm714 = vcmp.eq.s32.totalorder %v651, 6
      %s715 = sadd.s32 %s655, 6
      %s716 = sld [smem:[#allocation3 + %s715]]
      %v717 = vstv %s716
      %v718 = vsel %vm714, %v717, %v708
      %vm719 = vcmp.eq.s32.totalorder %v653, 6
      %s720 = sld [smem:[#allocation4 + %s715]]
      %s721 = scvt.s32.f32 %s720
      %v722 = vstv %s721
      %v723 = vsel %vm719, %v722, %v713
      %vm724 = vcmp.eq.s32.totalorder %v651, 7
      %s725 = sadd.s32 %s655, 7
      %s726 = sld [smem:[#allocation3 + %s725]]
      %v727 = vstv %s726
      %v728 = vsel %vm724, %v727, %v718
      %vm729 = vcmp.eq.s32.totalorder %v653, 7
      %s730 = sld [smem:[#allocation4 + %s725]]
      %s731 = scvt.s32.f32 %s730
      %v732 = vstv %s731
      %v733 = vsel %vm729, %v732, %v723
      %vm734 = vcmp.eq.s32.totalorder %v653, %v728
      %v735 = vsel %vm734, 1, 0
      %v736 = vcvt.s32.f32 %v735
      %v737 = vld [vmem:[%s2] sm:$0xff]
      %v738 = vld [vmem:[%s2 + $0x8] sm:$0xff]
      %v739 = vld [vmem:[%s2 + $0x10] sm:$0xff]
      %v740 = vld [vmem:[%s2 + $0x18] sm:$0xff]
      %v741 = vld [vmem:[%s2 + $0x20] sm:$0xff]
      %v742 = vld [vmem:[%s2 + $0x28] sm:$0xff]
      %v743 = vld [vmem:[%s2 + $0x30] sm:$0xff]
      %v744 = vld [vmem:[%s2 + $0x38] sm:$0xff]
      %v745 = vld [vmem:[%s2 + $0x40] sm:$0xff]
      %v746 = vld [vmem:[%s2 + $0x48] sm:$0xff]
      %v747 = vld [vmem:[%s2 + $0x50] sm:$0xff]
      %v748 = vld [vmem:[%s2 + $0x58] sm:$0xff]
      %v749 = vld [vmem:[%s2 + $0x60] sm:$0xff]
      %v750 = vld [vmem:[%s2 + $0x68] sm:$0xff]
      %v751 = vld [vmem:[%s2 + $0x70] sm:$0xff]
      %v752 = vld [vmem:[%s2 + $0x78] sm:$0xff]
      %v753 = vld [vmem:[%s3] sm:$0xff]
      %754 = vmatpush.msra.mxu0 %v752
      %755 = vmatpush.msra.mxu0 %v751
      %756 = vmatpush.msra.mxu0 %v750
      %757 = vmatpush.msra.mxu0 %v749
      %758 = vmatpush.msra.mxu0 %v748
      %759 = vmatpush.msra.mxu0 %v747
      %760 = vmatpush.msra.mxu0 %v746
      %761 = vmatpush.msra.mxu0 %v745
      %762 = vmatpush.msra.mxu0 %v744
      %763 = vmatpush.msra.mxu0 %v743
      %764 = vmatpush.msra.mxu0 %v742
      %765 = vmatpush.msra.mxu0 %v741
      %766 = vmatpush.msra.mxu0 %v740
      %767 = vmatpush.msra.mxu0 %v739
      %768 = vmatpush.msra.mxu0 %v738
      %769 = vmatpush.msra.mxu0 %v737
      %770 = vmatmul.f32.gmra.mxu0 %v736
      %v771 = vpop.f32.mrf.mxu0
      %v772 = vadd.f32 %v753, %v771
      %773 = vdwg.mxu0
      %v774 = vld [vmem:[%s4] sm:$0x1]
      %v775 = vperm.slane %v774, 0
      %v776 = vadd.f32 %v772, %v775
      %v777 = vld [vmem:[%s5] sm:$0x1]
      %v778 = vld [vmem:[%s6] sm:$0x1]
      %vm779 = vcmask 261120
      %v780 = vsel %vm779, %v776, 0.0
      %781 = vadd.xlane.f32.xlu0 %v780
      %v782 = vpop.xlane.xlu0 %781
      %v783 = vrcp.pop 32.0
      %v784 = vmul.f32 32.0, %v783
      %v785 = vsub.f32 1.0, %v784
      %v786 = vmul.f32 %v783, %v785
      %v787 = vadd.f32 %v783, %v786
      %vm788 = vweird.f32 %v783
      %v789 = vsel %vm788, %v783, %v787
      %v790 = vmul.f32 %v782, %v789
      %v791 = vsub.f32 %v776, %v790
      %v792 = vmul.f32 %v791, %v791
      %v793 = vsel %vm779, %v792, 0.0
      %794 = vadd.xlane.f32.xlu0 %v793
      %v795 = vpop.xlane.xlu0 %794
      %v796 = vmul.f32 %v795, %v789
      %v797 = vadd.f32 %v796, 1e-12
      %v798 = vrsqrt.pop %v797
      %v799 = vmul.f32 %v798, %v797
      %v800 = vmul.f32 %v799, %v798
      %v801 = vmul.f32 0.5, %v800
      %v802 = vsub.f32 1.5, %v801
      %v803 = vmul.f32 %v798, %v802
      %vm804 = vweird.f32 %v797
      %vm805 = vweird.f32 %v798
      %vm806 = vmor %vm804, %vm805
      %v807 = vsel %vm806, %v798, %v803
      %v808 = vmul.f32 %v791, %v807
      %v810 = vperm.slane %v777, 0
      %v812 = vmul.f32 %v808, %v810
      %v814 = vperm.slane %v778, 0
      %v816 = vadd.f32 %v812, %v814
      %v817 = vsub.f32 1.0, %v733
      %v818 = vmul.f32 %v817, -1e+09
      %v819 = vld [vmem:[%s7] sm:$0xff]
      %v820 = vld [vmem:[%s7 + $0x8] sm:$0xff]
      %v821 = vld [vmem:[%s7 + $0x10] sm:$0xff]
      %v822 = vld [vmem:[%s7 + $0x18] sm:$0xff]
      %v823 = vld [vmem:[%s8] sm:$0x1]
      %v825 = vperm.slane %v823, 0
      %v828 = vsel %vm779, %v816, 0
      %830 = vmatpush.msra.mxu0 0.0
      %831 = vmatpush.msra.mxu0 0.0
      %832 = vmatpush.msra.mxu0 0.0
      %833 = vmatpush.msra.mxu0 0.0
      %834 = vmatpush.msra.mxu0 0.0
      %835 = vmatpush.msra.mxu0 0.0
      %836 = vmatpush.msra.mxu0 0.0
      %837 = vmatpush.msra.mxu0 0.0
      %838 = vmatpush.msra.mxu0 0.0
      %839 = vmatpush.msra.mxu0 0.0
      %840 = vmatpush.msra.mxu0 0.0
      %841 = vmatpush.msra.mxu0 0.0
      %842 = vmatpush.msra.mxu0 %v822
      %843 = vmatpush.msra.mxu0 %v821
      %844 = vmatpush.msra.mxu0 %v820
      %845 = vmatpush.msra.mxu0 %v819
      %846 = vmatmul.f32.gmra.mxu0 %v828
      %v847 = vpop.f32.mrf.mxu0
      %v848 = vadd.f32 %v825, %v847
      %849 = vdwg.mxu0
      %v850 = vld [vmem:[%s9] sm:$0xff]
      %v851 = vld [vmem:[%s9 + $0x8] sm:$0xff]
      %v852 = vld [vmem:[%s9 + $0x10] sm:$0xff]
      %v853 = vld [vmem:[%s9 + $0x18] sm:$0xff]
      %855 = vrot.lane.b32.xlu0 %v848, 120
      %v856 = vpop.permute.xlu0 %855
      %vm857 = vcmask 64512
      %v858 = vsel %vm857, %v848, 0
      %v860 = vsel %vm857, %v856, 0
      %862 = vmatpush.xpose.msra.mxu0 0.0
      %863 = vmatpush.xpose.msra.mxu0 0.0
      %864 = vmatpush.xpose.msra.mxu0 0.0
      %865 = vmatpush.xpose.msra.mxu0 0.0
      %866 = vmatpush.xpose.msra.mxu0 0.0
      %867 = vmatpush.xpose.msra.mxu0 0.0
      %868 = vmatpush.xpose.msra.mxu0 0.0
      %869 = vmatpush.xpose.msra.mxu0 0.0
      %870 = vmatpush.xpose.msra.mxu0 0.0
      %871 = vmatpush.xpose.msra.mxu0 0.0
      %872 = vmatpush.xpose.msra.mxu0 0.0
      %873 = vmatpush.xpose.msra.mxu0 0.0
      %874 = vmatpush.xpose.msra.mxu0 0.0
      %875 = vmatpush.xpose.msra.mxu0 0.0
      %876 = vmatpush.xpose.msra.mxu0 0.0
      %877 = vmatpush.xpose.msra.mxu0 %v860
      %878 = vmatmul.f32.gmra.mxu0 %v858
      %v879 = vpop.f32.mrf.mxu0
      %v880 = vadd.f32 0.0, %v879
      %881 = vdwg.mxu0
      %v882 = vmul.f32 %v880, 0.35355338
      %v883 = vadd.f32 %v882, %v818
      %v884 = vsel %vm857, %v883, -inf
      %885 = vmax.xlane.f32.xlu0 %v884
      %v886 = vpop.xlane.xlu0 %885
      %v887 = vsub.f32 %v883, %v886
      %v888 = vmul.f32 %v887, 1.442695
      %v889 = vpow.pop %v888
      %v890 = vsel %vm857, %v889, 0.0
      %891 = vadd.xlane.f32.xlu0 %v890
      %v892 = vpop.xlane.xlu0 %891
      %v893 = vrcp.pop %v892
      %v894 = vmul.f32 %v889, %v893
      %895 = vrot.lane.b32.xlu0 %v848, 112
      %v896 = vpop.permute.xlu0 %895
      %v899 = vsel %vm857, %v894, 0
      %901 = vmatpush.msra.mxu0 0.0
      %902 = vmatpush.msra.mxu0 0.0
      %903 = vmatpush.msra.mxu0 0.0
      %904 = vmatpush.msra.mxu0 0.0
      %905 = vmatpush.msra.mxu0 0.0
      %906 = vmatpush.msra.mxu0 0.0
      %907 = vmatpush.msra.mxu0 0.0
      %908 = vmatpush.msra.mxu0 0.0
      %909 = vmatpush.msra.mxu0 0.0
      %910 = vmatpush.msra.mxu0 0.0
      %911 = vmatpush.msra.mxu0 0.0
      %912 = vmatpush.msra.mxu0 0.0
      %913 = vmatpush.msra.mxu0 0.0
      %914 = vmatpush.msra.mxu0 0.0
      %915 = vmatpush.msra.mxu0 0.0
      %916 = vmatpush.msra.mxu0 %v896
      %917 = vmatmul.f32.gmra.mxu0 %v899
      %v918 = vpop.f32.mrf.mxu0
      %v919 = vadd.f32 0.0, %v918
      %920 = vdwg.mxu0
      %921 = vrot.lane.b32.xlu0 %v848, 104
      %v922 = vpop.permute.xlu0 %921
      %923 = vrot.lane.b32.xlu0 %v848, 96
      %v924 = vpop.permute.xlu0 %923
      %v925 = vsel %vm857, %v922, 0
      %v927 = vsel %vm857, %v924, 0
      %929 = vmatpush.xpose.msra.mxu0 0.0
      %930 = vmatpush.xpose.msra.mxu0 0.0
      %931 = vmatpush.xpose.msra.mxu0 0.0
      %932 = vmatpush.xpose.msra.mxu0 0.0
      %933 = vmatpush.xpose.msra.mxu0 0.0
      %934 = vmatpush.xpose.msra.mxu0 0.0
      %935 = vmatpush.xpose.msra.mxu0 0.0
      %936 = vmatpush.xpose.msra.mxu0 0.0
      %937 = vmatpush.xpose.msra.mxu0 0.0
      %938 = vmatpush.xpose.msra.mxu0 0.0
      %939 = vmatpush.xpose.msra.mxu0 0.0
      %940 = vmatpush.xpose.msra.mxu0 0.0
      %941 = vmatpush.xpose.msra.mxu0 0.0
      %942 = vmatpush.xpose.msra.mxu0 0.0
      %943 = vmatpush.xpose.msra.mxu0 0.0
      %944 = vmatpush.xpose.msra.mxu0 %v927
      %945 = vmatmul.f32.gmra.mxu0 %v925
      %v946 = vpop.f32.mrf.mxu0
      %v947 = vadd.f32 0.0, %v946
      %948 = vdwg.mxu0
      %v949 = vmul.f32 %v947, 0.35355338
      %v950 = vadd.f32 %v949, %v818
      %v951 = vsel %vm857, %v950, -inf
      %952 = vmax.xlane.f32.xlu0 %v951
      %v953 = vpop.xlane.xlu0 %952
      %v954 = vsub.f32 %v950, %v953
      %v955 = vmul.f32 %v954, 1.442695
      %v956 = vpow.pop %v955
      %v957 = vsel %vm857, %v956, 0.0
      %958 = vadd.xlane.f32.xlu0 %v957
      %v959 = vpop.xlane.xlu0 %958
      %v960 = vrcp.pop %v959
      %v961 = vmul.f32 %v956, %v960
      %962 = vrot.lane.b32.xlu0 %v848, 88
      %v963 = vpop.permute.xlu0 %962
      %v966 = vsel %vm857, %v961, 0
      %968 = vmatpush.msra.mxu0 0.0
      %969 = vmatpush.msra.mxu0 0.0
      %970 = vmatpush.msra.mxu0 0.0
      %971 = vmatpush.msra.mxu0 0.0
      %972 = vmatpush.msra.mxu0 0.0
      %973 = vmatpush.msra.mxu0 0.0
      %974 = vmatpush.msra.mxu0 0.0
      %975 = vmatpush.msra.mxu0 0.0
      %976 = vmatpush.msra.mxu0 0.0
      %977 = vmatpush.msra.mxu0 0.0
      %978 = vmatpush.msra.mxu0 0.0
      %979 = vmatpush.msra.mxu0 0.0
      %980 = vmatpush.msra.mxu0 0.0
      %981 = vmatpush.msra.mxu0 0.0
      %982 = vmatpush.msra.mxu0 0.0
      %983 = vmatpush.msra.mxu0 %v963
      %984 = vmatmul.f32.gmra.mxu0 %v966
      %v985 = vpop.f32.mrf.mxu0
      %v986 = vadd.f32 0.0, %v985
      %987 = vdwg.mxu0
      %v989 = vsel %vm857, %v986, 0
      %991 = vmatpush.msra.mxu0 0.0
      %992 = vmatpush.msra.mxu0 0.0
      %993 = vmatpush.msra.mxu0 0.0
      %994 = vmatpush.msra.mxu0 0.0
      %995 = vmatpush.msra.mxu0 0.0
      %996 = vmatpush.msra.mxu0 0.0
      %997 = vmatpush.msra.mxu0 0.0
      %998 = vmatpush.msra.mxu0 0.0
      %999 = vmatpush.msra.mxu0 0.0
      %1000 = vmatpush.msra.mxu0 0.0
      %1001 = vmatpush.msra.mxu0 0.0
      %1002 = vmatpush.msra.mxu0 0.0
      %1003 = vmatpush.msra.mxu0 0.0
      %1004 = vmatpush.msra.mxu0 0.0
      %1005 = vmatpush.msra.mxu0 0.0
      %1006 = vmatpush.msra.mxu0 %v851
      %1007 = vmatmul.f32.gmra.mxu0 %v989
      %v1008 = vpop.f32.mrf.mxu0
      %v1009 = vadd.f32 0.0, %v1008
      %1010 = vdwg.mxu0
      %v1012 = vsel %vm857, %v919, 0
      %1014 = vmatpush.msra.mxu0 0.0
      %1015 = vmatpush.msra.mxu0 0.0
      %1016 = vmatpush.msra.mxu0 0.0
      %1017 = vmatpush.msra.mxu0 0.0
      %1018 = vmatpush.msra.mxu0 0.0
      %1019 = vmatpush.msra.mxu0 0.0
      %1020 = vmatpush.msra.mxu0 0.0
      %1021 = vmatpush.msra.mxu0 0.0
      %1022 = vmatpush.msra.mxu0 0.0
      %1023 = vmatpush.msra.mxu0 0.0
      %1024 = vmatpush.msra.mxu0 0.0
      %1025 = vmatpush.msra.mxu0 0.0
      %1026 = vmatpush.msra.mxu0 0.0
      %1027 = vmatpush.msra.mxu0 0.0
      %1028 = vmatpush.msra.mxu0 0.0
      %1029 = vmatpush.msra.mxu0 %v850
      %1030 = vmatmul.f32.gmra.mxu0 %v1012
      %v1031 = vpop.f32.mrf.mxu0
      %v1032 = vadd.f32 %v1009, %v1031
      %1033 = vdwg.mxu0
      %1034 = vrot.lane.b32.xlu0 %v848, 80
      %v1035 = vpop.permute.xlu0 %1034
      %1036 = vrot.lane.b32.xlu0 %v848, 72
      %v1037 = vpop.permute.xlu0 %1036
      %v1038 = vsel %vm857, %v1035, 0
      %v1040 = vsel %vm857, %v1037, 0
      %1042 = vmatpush.xpose.msra.mxu0 0.0
      %1043 = vmatpush.xpose.msra.mxu0 0.0
      %1044 = vmatpush.xpose.msra.mxu0 0.0
      %1045 = vmatpush.xpose.msra.mxu0 0.0
      %1046 = vmatpush.xpose.msra.mxu0 0.0
      %1047 = vmatpush.xpose.msra.mxu0 0.0
      %1048 = vmatpush.xpose.msra.mxu0 0.0
      %1049 = vmatpush.xpose.msra.mxu0 0.0
      %1050 = vmatpush.xpose.msra.mxu0 0.0
      %1051 = vmatpush.xpose.msra.mxu0 0.0
      %1052 = vmatpush.xpose.msra.mxu0 0.0
      %1053 = vmatpush.xpose.msra.mxu0 0.0
      %1054 = vmatpush.xpose.msra.mxu0 0.0
      %1055 = vmatpush.xpose.msra.mxu0 0.0
      %1056 = vmatpush.xpose.msra.mxu0 0.0
      %1057 = vmatpush.xpose.msra.mxu0 %v1040
      %1058 = vmatmul.f32.gmra.mxu0 %v1038
      %v1059 = vpop.f32.mrf.mxu0
      %v1060 = vadd.f32 0.0, %v1059
      %1061 = vdwg.mxu0
      %v1062 = vmul.f32 %v1060, 0.35355338
      %v1063 = vadd.f32 %v1062, %v818
      %v1064 = vsel %vm857, %v1063, -inf
      %1065 = vmax.xlane.f32.xlu0 %v1064
      %v1066 = vpop.xlane.xlu0 %1065
      %v1067 = vsub.f32 %v1063, %v1066
      %v1068 = vmul.f32 %v1067, 1.442695
      %v1069 = vpow.pop %v1068
      %v1070 = vsel %vm857, %v1069, 0.0
      %1071 = vadd.xlane.f32.xlu0 %v1070
      %v1072 = vpop.xlane.xlu0 %1071
      %v1073 = vrcp.pop %v1072
      %v1074 = vmul.f32 %v1069, %v1073
      %1075 = vrot.lane.b32.xlu0 %v848, 64
      %v1076 = vpop.permute.xlu0 %1075
      %v1079 = vsel %vm857, %v1074, 0
      %1081 = vmatpush.msra.mxu0 0.0
      %1082 = vmatpush.msra.mxu0 0.0
      %1083 = vmatpush.msra.mxu0 0.0
      %1084 = vmatpush.msra.mxu0 0.0
      %1085 = vmatpush.msra.mxu0 0.0
      %1086 = vmatpush.msra.mxu0 0.0
      %1087 = vmatpush.msra.mxu0 0.0
      %1088 = vmatpush.msra.mxu0 0.0
      %1089 = vmatpush.msra.mxu0 0.0
      %1090 = vmatpush.msra.mxu0 0.0
      %1091 = vmatpush.msra.mxu0 0.0
      %1092 = vmatpush.msra.mxu0 0.0
      %1093 = vmatpush.msra.mxu0 0.0
      %1094 = vmatpush.msra.mxu0 0.0
      %1095 = vmatpush.msra.mxu0 0.0
      %1096 = vmatpush.msra.mxu0 %v1076
      %1097 = vmatmul.f32.gmra.mxu0 %v1079
      %v1098 = vpop.f32.mrf.mxu0
      %v1099 = vadd.f32 0.0, %v1098
      %1100 = vdwg.mxu0
      %v1102 = vsel %vm857, %v1099, 0
      %1104 = vmatpush.msra.mxu0 0.0
      %1105 = vmatpush.msra.mxu0 0.0
      %1106 = vmatpush.msra.mxu0 0.0
      %1107 = vmatpush.msra.mxu0 0.0
      %1108 = vmatpush.msra.mxu0 0.0
      %1109 = vmatpush.msra.mxu0 0.0
      %1110 = vmatpush.msra.mxu0 0.0
      %1111 = vmatpush.msra.mxu0 0.0
      %1112 = vmatpush.msra.mxu0 0.0
      %1113 = vmatpush.msra.mxu0 0.0
      %1114 = vmatpush.msra.mxu0 0.0
      %1115 = vmatpush.msra.mxu0 0.0
      %1116 = vmatpush.msra.mxu0 0.0
      %1117 = vmatpush.msra.mxu0 0.0
      %1118 = vmatpush.msra.mxu0 0.0
      %1119 = vmatpush.msra.mxu0 %v852
      %1120 = vmatmul.f32.gmra.mxu0 %v1102
      %v1121 = vpop.f32.mrf.mxu0
      %v1122 = vadd.f32 0.0, %v1121
      %1123 = vdwg.mxu0
      %v1124 = vadd.f32 %v1032, %v1122
      %1125 = vrot.lane.b32.xlu0 %v848, 56
      %v1126 = vpop.permute.xlu0 %1125
      %1127 = vrot.lane.b32.xlu0 %v848, 48
      %v1128 = vpop.permute.xlu0 %1127
      %v1129 = vsel %vm857, %v1126, 0
      %v1131 = vsel %vm857, %v1128, 0
      %1133 = vmatpush.xpose.msra.mxu0 0.0
      %1134 = vmatpush.xpose.msra.mxu0 0.0
      %1135 = vmatpush.xpose.msra.mxu0 0.0
      %1136 = vmatpush.xpose.msra.mxu0 0.0
      %1137 = vmatpush.xpose.msra.mxu0 0.0
      %1138 = vmatpush.xpose.msra.mxu0 0.0
      %1139 = vmatpush.xpose.msra.mxu0 0.0
      %1140 = vmatpush.xpose.msra.mxu0 0.0
      %1141 = vmatpush.xpose.msra.mxu0 0.0
      %1142 = vmatpush.xpose.msra.mxu0 0.0
      %1143 = vmatpush.xpose.msra.mxu0 0.0
      %1144 = vmatpush.xpose.msra.mxu0 0.0
      %1145 = vmatpush.xpose.msra.mxu0 0.0
      %1146 = vmatpush.xpose.msra.mxu0 0.0
      %1147 = vmatpush.xpose.msra.mxu0 0.0
      %1148 = vmatpush.xpose.msra.mxu0 %v1131
      %1149 = vmatmul.f32.gmra.mxu0 %v1129
      %v1150 = vpop.f32.mrf.mxu0
      %v1151 = vadd.f32 0.0, %v1150
      %1152 = vdwg.mxu0
      %v1153 = vmul.f32 %v1151, 0.35355338
      %v1154 = vadd.f32 %v1153, %v818
      %v1155 = vsel %vm857, %v1154, -inf
      %1156 = vmax.xlane.f32.xlu0 %v1155
      %v1157 = vpop.xlane.xlu0 %1156
      %v1158 = vsub.f32 %v1154, %v1157
      %v1159 = vmul.f32 %v1158, 1.442695
      %v1160 = vpow.pop %v1159
      %v1161 = vsel %vm857, %v1160, 0.0
      %1162 = vadd.xlane.f32.xlu0 %v1161
      %v1163 = vpop.xlane.xlu0 %1162
      %v1164 = vrcp.pop %v1163
      %v1165 = vmul.f32 %v1160, %v1164
      %1166 = vrot.lane.b32.xlu0 %v848, 40
      %v1167 = vpop.permute.xlu0 %1166
      %v1170 = vsel %vm857, %v1165, 0
      %1172 = vmatpush.msra.mxu0 0.0
      %1173 = vmatpush.msra.mxu0 0.0
      %1174 = vmatpush.msra.mxu0 0.0
      %1175 = vmatpush.msra.mxu0 0.0
      %1176 = vmatpush.msra.mxu0 0.0
      %1177 = vmatpush.msra.mxu0 0.0
      %1178 = vmatpush.msra.mxu0 0.0
      %1179 = vmatpush.msra.mxu0 0.0
      %1180 = vmatpush.msra.mxu0 0.0
      %1181 = vmatpush.msra.mxu0 0.0
      %1182 = vmatpush.msra.mxu0 0.0
      %1183 = vmatpush.msra.mxu0 0.0
      %1184 = vmatpush.msra.mxu0 0.0
      %1185 = vmatpush.msra.mxu0 0.0
      %1186 = vmatpush.msra.mxu0 0.0
      %1187 = vmatpush.msra.mxu0 %v1167
      %1188 = vmatmul.f32.gmra.mxu0 %v1170
      %v1189 = vpop.f32.mrf.mxu0
      %v1190 = vadd.f32 0.0, %v1189
      %1191 = vdwg.mxu0
      %v1193 = vsel %vm857, %v1190, 0
      %1195 = vmatpush.msra.mxu0 0.0
      %1196 = vmatpush.msra.mxu0 0.0
      %1197 = vmatpush.msra.mxu0 0.0
      %1198 = vmatpush.msra.mxu0 0.0
      %1199 = vmatpush.msra.mxu0 0.0
      %1200 = vmatpush.msra.mxu0 0.0
      %1201 = vmatpush.msra.mxu0 0.0
      %1202 = vmatpush.msra.mxu0 0.0
      %1203 = vmatpush.msra.mxu0 0.0
      %1204 = vmatpush.msra.mxu0 0.0
      %1205 = vmatpush.msra.mxu0 0.0
      %1206 = vmatpush.msra.mxu0 0.0
      %1207 = vmatpush.msra.mxu0 0.0
      %1208 = vmatpush.msra.mxu0 0.0
      %1209 = vmatpush.msra.mxu0 0.0
      %1210 = vmatpush.msra.mxu0 %v853
      %1211 = vmatmul.f32.gmra.mxu0 %v1193
      %v1212 = vpop.f32.mrf.mxu0
      %v1213 = vadd.f32 0.0, %v1212
      %1214 = vdwg.mxu0
      %v1215 = vadd.f32 %v1124, %v1213
      %v1216 = vld [vmem:[%s10] sm:$0x1]
      %v1218 = vperm.slane %v1216, 0
      %v1220 = vadd.f32 %v1215, %v1218
      %v1221 = vadd.f32 %v1220, %v816
      %v1222 = vld [vmem:[%s11] sm:$0x1]
      %v1223 = vld [vmem:[%s12] sm:$0x1]
      %v1224 = vsel %vm779, %v1221, 0.0
      %1225 = vadd.xlane.f32.xlu0 %v1224
      %v1226 = vpop.xlane.xlu0 %1225
      %v1227 = vmul.f32 %v1226, %v789
      %v1228 = vsub.f32 %v1221, %v1227
      %v1229 = vmul.f32 %v1228, %v1228
      %v1230 = vsel %vm779, %v1229, 0.0
      %1231 = vadd.xlane.f32.xlu0 %v1230
      %v1232 = vpop.xlane.xlu0 %1231
      %v1233 = vmul.f32 %v1232, %v789
      %v1234 = vadd.f32 %v1233, 1e-12
      %v1235 = vrsqrt.pop %v1234
      %v1236 = vmul.f32 %v1235, %v1234
      %v1237 = vmul.f32 %v1236, %v1235
      %v1238 = vmul.f32 0.5, %v1237
      %v1239 = vsub.f32 1.5, %v1238
      %v1240 = vmul.f32 %v1235, %v1239
      %vm1241 = vweird.f32 %v1234
      %vm1242 = vweird.f32 %v1235
      %vm1243 = vmor %vm1241, %vm1242
      %v1244 = vsel %vm1243, %v1235, %v1240
      %v1245 = vmul.f32 %v1228, %v1244
      %v1247 = vperm.slane %v1222, 0
      %v1249 = vmul.f32 %v1245, %v1247
      %v1251 = vperm.slane %v1223, 0
      %v1253 = vadd.f32 %v1249, %v1251
      %v1254 = vld [vmem:[%s13] sm:$0xff]
      %v1255 = vld [vmem:[%s13 + $0x8] sm:$0xff]
      %v1256 = vld [vmem:[%s13 + $0x10] sm:$0xff]
      %v1257 = vld [vmem:[%s13 + $0x18] sm:$0xff]
      %v1258 = vld [vmem:[%s14] sm:$0x1]
      %v1260 = vperm.slane %v1258, 0
      %v1263 = vsel %vm779, %v1253, 0
      %1265 = vmatpush.msra.mxu0 0.0
      %1266 = vmatpush.msra.mxu0 0.0
      %1267 = vmatpush.msra.mxu0 0.0
      %1268 = vmatpush.msra.mxu0 0.0
      %1269 = vmatpush.msra.mxu0 0.0
      %1270 = vmatpush.msra.mxu0 0.0
      %1271 = vmatpush.msra.mxu0 0.0
      %1272 = vmatpush.msra.mxu0 0.0
      %1273 = vmatpush.msra.mxu0 0.0
      %1274 = vmatpush.msra.mxu0 0.0
      %1275 = vmatpush.msra.mxu0 0.0
      %1276 = vmatpush.msra.mxu0 0.0
      %1277 = vmatpush.msra.mxu0 %v1257
      %1278 = vmatpush.msra.mxu0 %v1256
      %1279 = vmatpush.msra.mxu0 %v1255
      %1280 = vmatpush.msra.mxu0 %v1254
      %1281 = vmatmul.f32.gmra.mxu0 %v1263
      %v1282 = vpop.f32.mrf.mxu0
      %v1283 = vadd.f32 %v1260, %v1282
      %1284 = vdwg.mxu0
      %v1285 = vmul.f32 %v1283, 0.5
      %v1286 = vmul.f32 %v1283, 0.70710677
      %v1287 = vmul.f32 %v1286, %v1286
      %v1288 = vmin.f32 16.0, %v1287
      %v1289 = vmul.f32 %v1288, 2.1237322e-06
      %v1290 = vadd.f32 %v1289, 0.00028619796
      %v1291 = vmul.f32 %v1288, %v1290
      %v1292 = vadd.f32 %v1291, 0.0036580483
      %v1293 = vmul.f32 %v1288, %v1292
      %v1294 = vadd.f32 %v1293, 0.05243302
      %v1295 = vmul.f32 %v1288, %v1294
      %v1296 = vadd.f32 %v1295, 0.18741608
      %v1297 = vmul.f32 %v1288, %v1296
      %v1298 = vadd.f32 %v1297, 1.1283791
      %v1299 = vmul.f32 %v1286, %v1298
      %v1300 = vmul.f32 %v1288, 3.8918573e-05
      %v1301 = vadd.f32 %v1300, 0.001143296
      %v1302 = vmul.f32 %v1288, %v1301
      %v1303 = vadd.f32 %v1302, 0.014752088
      %v1304 = vmul.f32 %v1288, %v1303
      %v1305 = vadd.f32 %v1304, 0.112945676
      %v1306 = vmul.f32 %v1288, %v1305
      %v1307 = vadd.f32 %v1306, 0.4994258
      %v1308 = vmul.f32 %v1288, %v1307
      %v1309 = vadd.f32 %v1308, 1.0
      %v1310 = vrcp.pop %v1309
      %v1311 = vmul.f32 %v1309, %v1310
      %v1312 = vsub.f32 1.0, %v1311
      %v1313 = vmul.f32 %v1310, %v1312
      %v1314 = vadd.f32 %v1310, %v1313
      %vm1315 = vweird.f32 %v1309
      %vm1316 = vweird.f32 %v1310
      %vm1317 = vmor %vm1315, %vm1316
      %v1318 = vsel %vm1317, %v1310, %v1314
      %v1319 = vand.u32 2147483647, %v1309
      %vm1320 = vcmp.eq.f32.partialorder %v1319, 8.507059e+37
      %v1321 = vand.u32 %v1309, 2147483648
      %v1322 = vor.u32 1.1754944e-38, %v1321
      %v1323 = vsel %vm1320, %v1322, %v1318
      %v1324 = vmul.f32 %v1299, %v1323
      %v1325 = vmin.f32 %v1324, 1.0
      %v1326 = vmax.f32 %v1325, -1.0
      %v1327 = vadd.f32 %v1326, 1.0
      %v1328 = vmul.f32 %v1285, %v1327
      %v1329 = vld [vmem:[%s15] sm:$0xff]
      %v1330 = vld [vmem:[%s15 + $0x8] sm:$0xff]
      %v1331 = vld [vmem:[%s15 + $0x10] sm:$0xff]
      %v1332 = vld [vmem:[%s15 + $0x18] sm:$0xff]
      %v1333 = vld [vmem:[%s15 + $0x20] sm:$0xff]
      %v1334 = vld [vmem:[%s15 + $0x28] sm:$0xff]
      %v1335 = vld [vmem:[%s15 + $0x30] sm:$0xff]
      %v1336 = vld [vmem:[%s15 + $0x38] sm:$0xff]
      %v1337 = vld [vmem:[%s16] sm:$0x1]
      %v1339 = vperm.slane %v1337, 0
      %vm1341 = vcmask 523264
      %v1343 = vsel %vm1341, %v1328, 0
      %1345 = vmatpush.msra.mxu0 0.0
      %1346 = vmatpush.msra.mxu0 0.0
      %1347 = vmatpush.msra.mxu0 0.0
      %1348 = vmatpush.msra.mxu0 0.0
      %1349 = vmatpush.msra.mxu0 0.0
      %1350 = vmatpush.msra.mxu0 0.0
      %1351 = vmatpush.msra.mxu0 0.0
      %1352 = vmatpush.msra.mxu0 0.0
      %1353 = vmatpush.msra.mxu0 %v1336
      %1354 = vmatpush.msra.mxu0 %v1335
      %1355 = vmatpush.msra.mxu0 %v1334
      %1356 = vmatpush.msra.mxu0 %v1333
      %1357 = vmatpush.msra.mxu0 %v1332
      %1358 = vmatpush.msra.mxu0 %v1331
      %1359 = vmatpush.msra.mxu0 %v1330
      %1360 = vmatpush.msra.mxu0 %v1329
      %1361 = vmatmul.f32.gmra.mxu0 %v1343
      %v1362 = vpop.f32.mrf.mxu0
      %v1363 = vadd.f32 %v1339, %v1362
      %1364 = vdwg.mxu0
      %v1365 = vadd.f32 %v1363, %v1253
      %v1366 = vld [vmem:[%s17] sm:$0x1]
      %v1367 = vld [vmem:[%s18] sm:$0x1]
      %v1368 = vsel %vm779, %v1365, 0.0
      %1369 = vadd.xlane.f32.xlu0 %v1368
      %v1370 = vpop.xlane.xlu0 %1369
      %v1371 = vmul.f32 %v1370, %v789
      %v1372 = vsub.f32 %v1365, %v1371
      %v1373 = vmul.f32 %v1372, %v1372
      %v1374 = vsel %vm779, %v1373, 0.0
      %1375 = vadd.xlane.f32.xlu0 %v1374
      %v1376 = vpop.xlane.xlu0 %1375
      %v1377 = vmul.f32 %v1376, %v789
      %v1378 = vadd.f32 %v1377, 1e-12
      %v1379 = vrsqrt.pop %v1378
      %v1380 = vmul.f32 %v1379, %v1378
      %v1381 = vmul.f32 %v1380, %v1379
      %v1382 = vmul.f32 0.5, %v1381
      %v1383 = vsub.f32 1.5, %v1382
      %v1384 = vmul.f32 %v1379, %v1383
      %vm1385 = vweird.f32 %v1378
      %vm1386 = vweird.f32 %v1379
      %vm1387 = vmor %vm1385, %vm1386
      %v1388 = vsel %vm1387, %v1379, %v1384
      %v1389 = vmul.f32 %v1372, %v1388
      %v1391 = vperm.slane %v1366, 0
      %v1393 = vmul.f32 %v1389, %v1391
      %v1395 = vperm.slane %v1367, 0
      %v1397 = vadd.f32 %v1393, %v1395
      %s1398 = scalar_lea.vmem %s7, 32
      %v1399 = vld [vmem:[%s1398] sm:$0xff]
      %v1400 = vld [vmem:[%s1398 + $0x8] sm:$0xff]
      %v1401 = vld [vmem:[%s1398 + $0x10] sm:$0xff]
      %v1402 = vld [vmem:[%s1398 + $0x18] sm:$0xff]
      %s1403 = scalar_lea.vmem %s8, 1
      %v1404 = vld [vmem:[%s1403] sm:$0x1]
      %v1406 = vperm.slane %v1404, 0
      %v1409 = vsel %vm779, %v1397, 0
      %1411 = vmatpush.msra.mxu0 0.0
      %1412 = vmatpush.msra.mxu0 0.0
      %1413 = vmatpush.msra.mxu0 0.0
      %1414 = vmatpush.msra.mxu0 0.0
      %1415 = vmatpush.msra.mxu0 0.0
      %1416 = vmatpush.msra.mxu0 0.0
      %1417 = vmatpush.msra.mxu0 0.0
      %1418 = vmatpush.msra.mxu0 0.0
      %1419 = vmatpush.msra.mxu0 0.0
      %1420 = vmatpush.msra.mxu0 0.0
      %1421 = vmatpush.msra.mxu0 0.0
      %1422 = vmatpush.msra.mxu0 0.0
      %1423 = vmatpush.msra.mxu0 %v1402
      %1424 = vmatpush.msra.mxu0 %v1401
      %1425 = vmatpush.msra.mxu0 %v1400
      %1426 = vmatpush.msra.mxu0 %v1399
      %1427 = vmatmul.f32.gmra.mxu0 %v1409
      %v1428 = vpop.f32.mrf.mxu0
      %v1429 = vadd.f32 %v1406, %v1428
      %1430 = vdwg.mxu0
      %s1431 = scalar_lea.vmem %s9, 32
      %v1432 = vld [vmem:[%s1431] sm:$0xff]
      %v1433 = vld [vmem:[%s1431 + $0x8] sm:$0xff]
      %v1434 = vld [vmem:[%s1431 + $0x10] sm:$0xff]
      %v1435 = vld [vmem:[%s1431 + $0x18] sm:$0xff]
      %1437 = vrot.lane.b32.xlu0 %v1429, 120
      %v1438 = vpop.permute.xlu0 %1437
      %v1439 = vsel %vm857, %v1429, 0
      %v1441 = vsel %vm857, %v1438, 0
      %1443 = vmatpush.xpose.msra.mxu0 0.0
      %1444 = vmatpush.xpose.msra.mxu0 0.0
      %1445 = vmatpush.xpose.msra.mxu0 0.0
      %1446 = vmatpush.xpose.msra.mxu0 0.0
      %1447 = vmatpush.xpose.msra.mxu0 0.0
      %1448 = vmatpush.xpose.msra.mxu0 0.0
      %1449 = vmatpush.xpose.msra.mxu0 0.0
      %1450 = vmatpush.xpose.msra.mxu0 0.0
      %1451 = vmatpush.xpose.msra.mxu0 0.0
      %1452 = vmatpush.xpose.msra.mxu0 0.0
      %1453 = vmatpush.xpose.msra.mxu0 0.0
      %1454 = vmatpush.xpose.msra.mxu0 0.0
      %1455 = vmatpush.xpose.msra.mxu0 0.0
      %1456 = vmatpush.xpose.msra.mxu0 0.0
      %1457 = vmatpush.xpose.msra.mxu0 0.0
      %1458 = vmatpush.xpose.msra.mxu0 %v1441
      %1459 = vmatmul.f32.gmra.mxu0 %v1439
      %v1460 = vpop.f32.mrf.mxu0
      %v1461 = vadd.f32 0.0, %v1460
      %1462 = vdwg.mxu0
      %v1463 = vmul.f32 %v1461, 0.35355338
      %v1464 = vadd.f32 %v1463, %v818
      %v1465 = vsel %vm857, %v1464, -inf
      %1466 = vmax.xlane.f32.xlu0 %v1465
      %v1467 = vpop.xlane.xlu0 %1466
      %v1468 = vsub.f32 %v1464, %v1467
      %v1469 = vmul.f32 %v1468, 1.442695
      %v1470 = vpow.pop %v1469
      %v1471 = vsel %vm857, %v1470, 0.0
      %1472 = vadd.xlane.f32.xlu0 %v1471
      %v1473 = vpop.xlane.xlu0 %1472
      %v1474 = vrcp.pop %v1473
      %v1475 = vmul.f32 %v1470, %v1474
      %1476 = vrot.lane.b32.xlu0 %v1429, 112
      %v1477 = vpop.permute.xlu0 %1476
      %v1480 = vsel %vm857, %v1475, 0
      %1482 = vmatpush.msra.mxu0 0.0
      %1483 = vmatpush.msra.mxu0 0.0
      %1484 = vmatpush.msra.mxu0 0.0
      %1485 = vmatpush.msra.mxu0 0.0
      %1486 = vmatpush.msra.mxu0 0.0
      %1487 = vmatpush.msra.mxu0 0.0
      %1488 = vmatpush.msra.mxu0 0.0
      %1489 = vmatpush.msra.mxu0 0.0
      %1490 = vmatpush.msra.mxu0 0.0
      %1491 = vmatpush.msra.mxu0 0.0
      %1492 = vmatpush.msra.mxu0 0.0
      %1493 = vmatpush.msra.mxu0 0.0
      %1494 = vmatpush.msra.mxu0 0.0
      %1495 = vmatpush.msra.mxu0 0.0
      %1496 = vmatpush.msra.mxu0 0.0
      %1497 = vmatpush.msra.mxu0 %v1477
      %1498 = vmatmul.f32.gmra.mxu0 %v1480
      %v1499 = vpop.f32.mrf.mxu0
      %v1500 = vadd.f32 0.0, %v1499
      %1501 = vdwg.mxu0
      %1502 = vrot.lane.b32.xlu0 %v1429, 104
      %v1503 = vpop.permute.xlu0 %1502
      %1504 = vrot.lane.b32.xlu0 %v1429, 96
      %v1505 = vpop.permute.xlu0 %1504
      %v1506 = vsel %vm857, %v1503, 0
      %v1508 = vsel %vm857, %v1505, 0
      %1510 = vmatpush.xpose.msra.mxu0 0.0
      %1511 = vmatpush.xpose.msra.mxu0 0.0
      %1512 = vmatpush.xpose.msra.mxu0 0.0
      %1513 = vmatpush.xpose.msra.mxu0 0.0
      %1514 = vmatpush.xpose.msra.mxu0 0.0
      %1515 = vmatpush.xpose.msra.mxu0 0.0
      %1516 = vmatpush.xpose.msra.mxu0 0.0
      %1517 = vmatpush.xpose.msra.mxu0 0.0
      %1518 = vmatpush.xpose.msra.mxu0 0.0
      %1519 = vmatpush.xpose.msra.mxu0 0.0
      %1520 = vmatpush.xpose.msra.mxu0 0.0
      %1521 = vmatpush.xpose.msra.mxu0 0.0
      %1522 = vmatpush.xpose.msra.mxu0 0.0
      %1523 = vmatpush.xpose.msra.mxu0 0.0
      %1524 = vmatpush.xpose.msra.mxu0 0.0
      %1525 = vmatpush.xpose.msra.mxu0 %v1508
      %1526 = vmatmul.f32.gmra.mxu0 %v1506
      %v1527 = vpop.f32.mrf.mxu0
      %v1528 = vadd.f32 0.0, %v1527
      %1529 = vdwg.mxu0
      %v1530 = vmul.f32 %v1528, 0.35355338
      %v1531 = vadd.f32 %v1530, %v818
      %v1532 = vsel %vm857, %v1531, -inf
      %1533 = vmax.xlane.f32.xlu0 %v1532
      %v1534 = vpop.xlane.xlu0 %1533
      %v1535 = vsub.f32 %v1531, %v1534
      %v1536 = vmul.f32 %v1535, 1.442695
      %v1537 = vpow.pop %v1536
      %v1538 = vsel %vm857, %v1537, 0.0
      %1539 = vadd.xlane.f32.xlu0 %v1538
      %v1540 = vpop.xlane.xlu0 %1539
      %v1541 = vrcp.pop %v1540
      %v1542 = vmul.f32 %v1537, %v1541
      %1543 = vrot.lane.b32.xlu0 %v1429, 88
      %v1544 = vpop.permute.xlu0 %1543
      %v1547 = vsel %vm857, %v1542, 0
      %1549 = vmatpush.msra.mxu0 0.0
      %1550 = vmatpush.msra.mxu0 0.0
      %1551 = vmatpush.msra.mxu0 0.0
      %1552 = vmatpush.msra.mxu0 0.0
      %1553 = vmatpush.msra.mxu0 0.0
      %1554 = vmatpush.msra.mxu0 0.0
      %1555 = vmatpush.msra.mxu0 0.0
      %1556 = vmatpush.msra.mxu0 0.0
      %1557 = vmatpush.msra.mxu0 0.0
      %1558 = vmatpush.msra.mxu0 0.0
      %1559 = vmatpush.msra.mxu0 0.0
      %1560 = vmatpush.msra.mxu0 0.0
      %1561 = vmatpush.msra.mxu0 0.0
      %1562 = vmatpush.msra.mxu0 0.0
      %1563 = vmatpush.msra.mxu0 0.0
      %1564 = vmatpush.msra.mxu0 %v1544
      %1565 = vmatmul.f32.gmra.mxu0 %v1547
      %v1566 = vpop.f32.mrf.mxu0
      %v1567 = vadd.f32 0.0, %v1566
      %1568 = vdwg.mxu0
      %v1570 = vsel %vm857, %v1567, 0
      %1572 = vmatpush.msra.mxu0 0.0
      %1573 = vmatpush.msra.mxu0 0.0
      %1574 = vmatpush.msra.mxu0 0.0
      %1575 = vmatpush.msra.mxu0 0.0
      %1576 = vmatpush.msra.mxu0 0.0
      %1577 = vmatpush.msra.mxu0 0.0
      %1578 = vmatpush.msra.mxu0 0.0
      %1579 = vmatpush.msra.mxu0 0.0
      %1580 = vmatpush.msra.mxu0 0.0
      %1581 = vmatpush.msra.mxu0 0.0
      %1582 = vmatpush.msra.mxu0 0.0
      %1583 = vmatpush.msra.mxu0 0.0
      %1584 = vmatpush.msra.mxu0 0.0
      %1585 = vmatpush.msra.mxu0 0.0
      %1586 = vmatpush.msra.mxu0 0.0
      %1587 = vmatpush.msra.mxu0 %v1433
      %1588 = vmatmul.f32.gmra.mxu0 %v1570
      %v1589 = vpop.f32.mrf.mxu0
      %v1590 = vadd.f32 0.0, %v1589
      %1591 = vdwg.mxu0
      %v1593 = vsel %vm857, %v1500, 0
      %1595 = vmatpush.msra.mxu0 0.0
      %1596 = vmatpush.msra.mxu0 0.0
      %1597 = vmatpush.msra.mxu0 0.0
      %1598 = vmatpush.msra.mxu0 0.0
      %1599 = vmatpush.msra.mxu0 0.0
      %1600 = vmatpush.msra.mxu0 0.0
      %1601 = vmatpush.msra.mxu0 0.0
      %1602 = vmatpush.msra.mxu0 0.0
      %1603 = vmatpush.msra.mxu0 0.0
      %1604 = vmatpush.msra.mxu0 0.0
      %1605 = vmatpush.msra.mxu0 0.0
      %1606 = vmatpush.msra.mxu0 0.0
      %1607 = vmatpush.msra.mxu0 0.0
      %1608 = vmatpush.msra.mxu0 0.0
      %1609 = vmatpush.msra.mxu0 0.0
      %1610 = vmatpush.msra.mxu0 %v1432
      %1611 = vmatmul.f32.gmra.mxu0 %v1593
      %v1612 = vpop.f32.mrf.mxu0
      %v1613 = vadd.f32 %v1590, %v1612
      %1614 = vdwg.mxu0
      %1615 = vrot.lane.b32.xlu0 %v1429, 80
      %v1616 = vpop.permute.xlu0 %1615
      %1617 = vrot.lane.b32.xlu0 %v1429, 72
      %v1618 = vpop.permute.xlu0 %1617
      %v1619 = vsel %vm857, %v1616, 0
      %v1621 = vsel %vm857, %v1618, 0
      %1623 = vmatpush.xpose.msra.mxu0 0.0
      %1624 = vmatpush.xpose.msra.mxu0 0.0
      %1625 = vmatpush.xpose.msra.mxu0 0.0
      %1626 = vmatpush.xpose.msra.mxu0 0.0
      %1627 = vmatpush.xpose.msra.mxu0 0.0
      %1628 = vmatpush.xpose.msra.mxu0 0.0
      %1629 = vmatpush.xpose.msra.mxu0 0.0
      %1630 = vmatpush.xpose.msra.mxu0 0.0
      %1631 = vmatpush.xpose.msra.mxu0 0.0
      %1632 = vmatpush.xpose.msra.mxu0 0.0
      %1633 = vmatpush.xpose.msra.mxu0 0.0
      %1634 = vmatpush.xpose.msra.mxu0 0.0
      %1635 = vmatpush.xpose.msra.mxu0 0.0
      %1636 = vmatpush.xpose.msra.mxu0 0.0
      %1637 = vmatpush.xpose.msra.mxu0 0.0
      %1638 = vmatpush.xpose.msra.mxu0 %v1621
      %1639 = vmatmul.f32.gmra.mxu0 %v1619
      %v1640 = vpop.f32.mrf.mxu0
      %v1641 = vadd.f32 0.0, %v1640
      %1642 = vdwg.mxu0
      %v1643 = vmul.f32 %v1641, 0.35355338
      %v1644 = vadd.f32 %v1643, %v818
      %v1645 = vsel %vm857, %v1644, -inf
      %1646 = vmax.xlane.f32.xlu0 %v1645
      %v1647 = vpop.xlane.xlu0 %1646
      %v1648 = vsub.f32 %v1644, %v1647
      %v1649 = vmul.f32 %v1648, 1.442695
      %v1650 = vpow.pop %v1649
      %v1651 = vsel %vm857, %v1650, 0.0
      %1652 = vadd.xlane.f32.xlu0 %v1651
      %v1653 = vpop.xlane.xlu0 %1652
      %v1654 = vrcp.pop %v1653
      %v1655 = vmul.f32 %v1650, %v1654
      %1656 = vrot.lane.b32.xlu0 %v1429, 64
      %v1657 = vpop.permute.xlu0 %1656
      %v1660 = vsel %vm857, %v1655, 0
      %1662 = vmatpush.msra.mxu0 0.0
      %1663 = vmatpush.msra.mxu0 0.0
      %1664 = vmatpush.msra.mxu0 0.0
      %1665 = vmatpush.msra.mxu0 0.0
      %1666 = vmatpush.msra.mxu0 0.0
      %1667 = vmatpush.msra.mxu0 0.0
      %1668 = vmatpush.msra.mxu0 0.0
      %1669 = vmatpush.msra.mxu0 0.0
      %1670 = vmatpush.msra.mxu0 0.0
      %1671 = vmatpush.msra.mxu0 0.0
      %1672 = vmatpush.msra.mxu0 0.0
      %1673 = vmatpush.msra.mxu0 0.0
      %1674 = vmatpush.msra.mxu0 0.0
      %1675 = vmatpush.msra.mxu0 0.0
      %1676 = vmatpush.msra.mxu0 0.0
      %1677 = vmatpush.msra.mxu0 %v1657
      %1678 = vmatmul.f32.gmra.mxu0 %v1660
      %v1679 = vpop.f32.mrf.mxu0
      %v1680 = vadd.f32 0.0, %v1679
      %1681 = vdwg.mxu0
      %v1683 = vsel %vm857, %v1680, 0
      %1685 = vmatpush.msra.mxu0 0.0
      %1686 = vmatpush.msra.mxu0 0.0
      %1687 = vmatpush.msra.mxu0 0.0
      %1688 = vmatpush.msra.mxu0 0.0
      %1689 = vmatpush.msra.mxu0 0.0
      %1690 = vmatpush.msra.mxu0 0.0
      %1691 = vmatpush.msra.mxu0 0.0
      %1692 = vmatpush.msra.mxu0 0.0
      %1693 = vmatpush.msra.mxu0 0.0
      %1694 = vmatpush.msra.mxu0 0.0
      %1695 = vmatpush.msra.mxu0 0.0
      %1696 = vmatpush.msra.mxu0 0.0
      %1697 = vmatpush.msra.mxu0 0.0
      %1698 = vmatpush.msra.mxu0 0.0
      %1699 = vmatpush.msra.mxu0 0.0
      %1700 = vmatpush.msra.mxu0 %v1434
      %1701 = vmatmul.f32.gmra.mxu0 %v1683
      %v1702 = vpop.f32.mrf.mxu0
      %v1703 = vadd.f32 0.0, %v1702
      %1704 = vdwg.mxu0
      %v1705 = vadd.f32 %v1613, %v1703
      %1706 = vrot.lane.b32.xlu0 %v1429, 56
      %v1707 = vpop.permute.xlu0 %1706
      %1708 = vrot.lane.b32.xlu0 %v1429, 48
      %v1709 = vpop.permute.xlu0 %1708
      %v1710 = vsel %vm857, %v1707, 0
      %v1712 = vsel %vm857, %v1709, 0
      %1714 = vmatpush.xpose.msra.mxu0 0.0
      %1715 = vmatpush.xpose.msra.mxu0 0.0
      %1716 = vmatpush.xpose.msra.mxu0 0.0
      %1717 = vmatpush.xpose.msra.mxu0 0.0
      %1718 = vmatpush.xpose.msra.mxu0 0.0
      %1719 = vmatpush.xpose.msra.mxu0 0.0
      %1720 = vmatpush.xpose.msra.mxu0 0.0
      %1721 = vmatpush.xpose.msra.mxu0 0.0
      %1722 = vmatpush.xpose.msra.mxu0 0.0
      %1723 = vmatpush.xpose.msra.mxu0 0.0
      %1724 = vmatpush.xpose.msra.mxu0 0.0
      %1725 = vmatpush.xpose.msra.mxu0 0.0
      %1726 = vmatpush.xpose.msra.mxu0 0.0
      %1727 = vmatpush.xpose.msra.mxu0 0.0
      %1728 = vmatpush.xpose.msra.mxu0 0.0
      %1729 = vmatpush.xpose.msra.mxu0 %v1712
      %1730 = vmatmul.f32.gmra.mxu0 %v1710
      %v1731 = vpop.f32.mrf.mxu0
      %v1732 = vadd.f32 0.0, %v1731
      %1733 = vdwg.mxu0
      %v1734 = vmul.f32 %v1732, 0.35355338
      %v1735 = vadd.f32 %v1734, %v818
      %v1736 = vsel %vm857, %v1735, -inf
      %1737 = vmax.xlane.f32.xlu0 %v1736
      %v1738 = vpop.xlane.xlu0 %1737
      %v1739 = vsub.f32 %v1735, %v1738
      %v1740 = vmul.f32 %v1739, 1.442695
      %v1741 = vpow.pop %v1740
      %v1742 = vsel %vm857, %v1741, 0.0
      %1743 = vadd.xlane.f32.xlu0 %v1742
      %v1744 = vpop.xlane.xlu0 %1743
      %v1745 = vrcp.pop %v1744
      %v1746 = vmul.f32 %v1741, %v1745
      %1747 = vrot.lane.b32.xlu0 %v1429, 40
      %v1748 = vpop.permute.xlu0 %1747
      %v1751 = vsel %vm857, %v1746, 0
      %1753 = vmatpush.msra.mxu0 0.0
      %1754 = vmatpush.msra.mxu0 0.0
      %1755 = vmatpush.msra.mxu0 0.0
      %1756 = vmatpush.msra.mxu0 0.0
      %1757 = vmatpush.msra.mxu0 0.0
      %1758 = vmatpush.msra.mxu0 0.0
      %1759 = vmatpush.msra.mxu0 0.0
      %1760 = vmatpush.msra.mxu0 0.0
      %1761 = vmatpush.msra.mxu0 0.0
      %1762 = vmatpush.msra.mxu0 0.0
      %1763 = vmatpush.msra.mxu0 0.0
      %1764 = vmatpush.msra.mxu0 0.0
      %1765 = vmatpush.msra.mxu0 0.0
      %1766 = vmatpush.msra.mxu0 0.0
      %1767 = vmatpush.msra.mxu0 0.0
      %1768 = vmatpush.msra.mxu0 %v1748
      %1769 = vmatmul.f32.gmra.mxu0 %v1751
      %v1770 = vpop.f32.mrf.mxu0
      %v1771 = vadd.f32 0.0, %v1770
      %1772 = vdwg.mxu0
      %v1774 = vsel %vm857, %v1771, 0
      %1776 = vmatpush.msra.mxu0 0.0
      %1777 = vmatpush.msra.mxu0 0.0
      %1778 = vmatpush.msra.mxu0 0.0
      %1779 = vmatpush.msra.mxu0 0.0
      %1780 = vmatpush.msra.mxu0 0.0
      %1781 = vmatpush.msra.mxu0 0.0
      %1782 = vmatpush.msra.mxu0 0.0
      %1783 = vmatpush.msra.mxu0 0.0
      %1784 = vmatpush.msra.mxu0 0.0
      %1785 = vmatpush.msra.mxu0 0.0
      %1786 = vmatpush.msra.mxu0 0.0
      %1787 = vmatpush.msra.mxu0 0.0
      %1788 = vmatpush.msra.mxu0 0.0
      %1789 = vmatpush.msra.mxu0 0.0
      %1790 = vmatpush.msra.mxu0 0.0
      %1791 = vmatpush.msra.mxu0 %v1435
      %1792 = vmatmul.f32.gmra.mxu0 %v1774
      %v1793 = vpop.f32.mrf.mxu0
      %v1794 = vadd.f32 0.0, %v1793
      %1795 = vdwg.mxu0
      %v1796 = vadd.f32 %v1705, %v1794
      %s1797 = scalar_lea.vmem %s10, 1
      %v1798 = vld [vmem:[%s1797] sm:$0x1]
      %v1800 = vperm.slane %v1798, 0
      %v1802 = vadd.f32 %v1796, %v1800
      %v1803 = vadd.f32 %v1802, %v1397
      %s1804 = scalar_lea.vmem %s11, 1
      %v1805 = vld [vmem:[%s1804] sm:$0x1]
      %s1806 = scalar_lea.vmem %s12, 1
      %v1807 = vld [vmem:[%s1806] sm:$0x1]
      %v1808 = vsel %vm779, %v1803, 0.0
      %1809 = vadd.xlane.f32.xlu0 %v1808
      %v1810 = vpop.xlane.xlu0 %1809
      %v1811 = vmul.f32 %v1810, %v789
      %v1812 = vsub.f32 %v1803, %v1811
      %v1813 = vmul.f32 %v1812, %v1812
      %v1814 = vsel %vm779, %v1813, 0.0
      %1815 = vadd.xlane.f32.xlu0 %v1814
      %v1816 = vpop.xlane.xlu0 %1815
      %v1817 = vmul.f32 %v1816, %v789
      %v1818 = vadd.f32 %v1817, 1e-12
      %v1819 = vrsqrt.pop %v1818
      %v1820 = vmul.f32 %v1819, %v1818
      %v1821 = vmul.f32 %v1820, %v1819
      %v1822 = vmul.f32 0.5, %v1821
      %v1823 = vsub.f32 1.5, %v1822
      %v1824 = vmul.f32 %v1819, %v1823
      %vm1825 = vweird.f32 %v1818
      %vm1826 = vweird.f32 %v1819
      %vm1827 = vmor %vm1825, %vm1826
      %v1828 = vsel %vm1827, %v1819, %v1824
      %v1829 = vmul.f32 %v1812, %v1828
      %v1831 = vperm.slane %v1805, 0
      %v1833 = vmul.f32 %v1829, %v1831
      %v1835 = vperm.slane %v1807, 0
      %v1837 = vadd.f32 %v1833, %v1835
      %s1838 = scalar_lea.vmem %s13, 32
      %v1839 = vld [vmem:[%s1838] sm:$0xff]
      %v1840 = vld [vmem:[%s1838 + $0x8] sm:$0xff]
      %v1841 = vld [vmem:[%s1838 + $0x10] sm:$0xff]
      %v1842 = vld [vmem:[%s1838 + $0x18] sm:$0xff]
      %s1843 = scalar_lea.vmem %s14, 1
      %v1844 = vld [vmem:[%s1843] sm:$0x1]
      %v1846 = vperm.slane %v1844, 0
      %v1849 = vsel %vm779, %v1837, 0
      %1851 = vmatpush.msra.mxu0 0.0
      %1852 = vmatpush.msra.mxu0 0.0
      %1853 = vmatpush.msra.mxu0 0.0
      %1854 = vmatpush.msra.mxu0 0.0
      %1855 = vmatpush.msra.mxu0 0.0
      %1856 = vmatpush.msra.mxu0 0.0
      %1857 = vmatpush.msra.mxu0 0.0
      %1858 = vmatpush.msra.mxu0 0.0
      %1859 = vmatpush.msra.mxu0 0.0
      %1860 = vmatpush.msra.mxu0 0.0
      %1861 = vmatpush.msra.mxu0 0.0
      %1862 = vmatpush.msra.mxu0 0.0
      %1863 = vmatpush.msra.mxu0 %v1842
      %1864 = vmatpush.msra.mxu0 %v1841
      %1865 = vmatpush.msra.mxu0 %v1840
      %1866 = vmatpush.msra.mxu0 %v1839
      %1867 = vmatmul.f32.gmra.mxu0 %v1849
      %v1868 = vpop.f32.mrf.mxu0
      %v1869 = vadd.f32 %v1846, %v1868
      %1870 = vdwg.mxu0
      %v1871 = vmul.f32 %v1869, 0.5
      %v1872 = vmul.f32 %v1869, 0.70710677
      %v1873 = vmul.f32 %v1872, %v1872
      %v1874 = vmin.f32 16.0, %v1873
      %v1875 = vmul.f32 %v1874, 2.1237322e-06
      %v1876 = vadd.f32 %v1875, 0.00028619796
      %v1877 = vmul.f32 %v1874, %v1876
      %v1878 = vadd.f32 %v1877, 0.0036580483
      %v1879 = vmul.f32 %v1874, %v1878
      %v1880 = vadd.f32 %v1879, 0.05243302
      %v1881 = vmul.f32 %v1874, %v1880
      %v1882 = vadd.f32 %v1881, 0.18741608
      %v1883 = vmul.f32 %v1874, %v1882
      %v1884 = vadd.f32 %v1883, 1.1283791
      %v1885 = vmul.f32 %v1872, %v1884
      %v1886 = vmul.f32 %v1874, 3.8918573e-05
      %v1887 = vadd.f32 %v1886, 0.001143296
      %v1888 = vmul.f32 %v1874, %v1887
      %v1889 = vadd.f32 %v1888, 0.014752088
      %v1890 = vmul.f32 %v1874, %v1889
      %v1891 = vadd.f32 %v1890, 0.112945676
      %v1892 = vmul.f32 %v1874, %v1891
      %v1893 = vadd.f32 %v1892, 0.4994258
      %v1894 = vmul.f32 %v1874, %v1893
      %v1895 = vadd.f32 %v1894, 1.0
      %v1896 = vrcp.pop %v1895
      %v1897 = vmul.f32 %v1895, %v1896
      %v1898 = vsub.f32 1.0, %v1897
      %v1899 = vmul.f32 %v1896, %v1898
      %v1900 = vadd.f32 %v1896, %v1899
      %vm1901 = vweird.f32 %v1895
      %vm1902 = vweird.f32 %v1896
      %vm1903 = vmor %vm1901, %vm1902
      %v1904 = vsel %vm1903, %v1896, %v1900
      %v1905 = vand.u32 2147483647, %v1895
      %vm1906 = vcmp.eq.f32.partialorder %v1905, 8.507059e+37
      %v1907 = vand.u32 %v1895, 2147483648
      %v1908 = vor.u32 1.1754944e-38, %v1907
      %v1909 = vsel %vm1906, %v1908, %v1904
      %v1910 = vmul.f32 %v1885, %v1909
      %v1911 = vmin.f32 %v1910, 1.0
      %v1912 = vmax.f32 %v1911, -1.0
      %v1913 = vadd.f32 %v1912, 1.0
      %v1914 = vmul.f32 %v1871, %v1913
      %s1915 = scalar_lea.vmem %s15, 64
      %v1916 = vld [vmem:[%s1915] sm:$0xff]
      %v1917 = vld [vmem:[%s1915 + $0x8] sm:$0xff]
      %v1918 = vld [vmem:[%s1915 + $0x10] sm:$0xff]
      %v1919 = vld [vmem:[%s1915 + $0x18] sm:$0xff]
      %v1920 = vld [vmem:[%s1915 + $0x20] sm:$0xff]
      %v1921 = vld [vmem:[%s1915 + $0x28] sm:$0xff]
      %v1922 = vld [vmem:[%s1915 + $0x30] sm:$0xff]
      %v1923 = vld [vmem:[%s1915 + $0x38] sm:$0xff]
      %s1924 = scalar_lea.vmem %s16, 1
      %v1925 = vld [vmem:[%s1924] sm:$0x1]
      %v1927 = vperm.slane %v1925, 0
      %v1930 = vsel %vm1341, %v1914, 0
      %1932 = vmatpush.msra.mxu0 0.0
      %1933 = vmatpush.msra.mxu0 0.0
      %1934 = vmatpush.msra.mxu0 0.0
      %1935 = vmatpush.msra.mxu0 0.0
      %1936 = vmatpush.msra.mxu0 0.0
      %1937 = vmatpush.msra.mxu0 0.0
      %1938 = vmatpush.msra.mxu0 0.0
      %1939 = vmatpush.msra.mxu0 0.0
      %1940 = vmatpush.msra.mxu0 %v1923
      %1941 = vmatpush.msra.mxu0 %v1922
      %1942 = vmatpush.msra.mxu0 %v1921
      %1943 = vmatpush.msra.mxu0 %v1920
      %1944 = vmatpush.msra.mxu0 %v1919
      %1945 = vmatpush.msra.mxu0 %v1918
      %1946 = vmatpush.msra.mxu0 %v1917
      %1947 = vmatpush.msra.mxu0 %v1916
      %1948 = vmatmul.f32.gmra.mxu0 %v1930
      %v1949 = vpop.f32.mrf.mxu0
      %v1950 = vadd.f32 %v1927, %v1949
      %1951 = vdwg.mxu0
      %v1952 = vadd.f32 %v1950, %v1837
      %s1953 = scalar_lea.vmem %s17, 1
      %v1954 = vld [vmem:[%s1953] sm:$0x1]
      %s1955 = scalar_lea.vmem %s18, 1
      %v1956 = vld [vmem:[%s1955] sm:$0x1]
      %v1957 = vsel %vm779, %v1952, 0.0
      %1958 = vadd.xlane.f32.xlu0 %v1957
      %v1959 = vpop.xlane.xlu0 %1958
      %v1960 = vmul.f32 %v1959, %v789
      %v1961 = vsub.f32 %v1952, %v1960
      %v1962 = vmul.f32 %v1961, %v1961
      %v1963 = vsel %vm779, %v1962, 0.0
      %1964 = vadd.xlane.f32.xlu0 %v1963
      %v1965 = vpop.xlane.xlu0 %1964
      %v1966 = vmul.f32 %v1965, %v789
      %v1967 = vadd.f32 %v1966, 1e-12
      %v1968 = vrsqrt.pop %v1967
      %v1969 = vmul.f32 %v1968, %v1967
      %v1970 = vmul.f32 %v1969, %v1968
      %v1971 = vmul.f32 0.5, %v1970
      %v1972 = vsub.f32 1.5, %v1971
      %v1973 = vmul.f32 %v1968, %v1972
      %vm1974 = vweird.f32 %v1967
      %vm1975 = vweird.f32 %v1968
      %vm1976 = vmor %vm1974, %vm1975
      %v1977 = vsel %vm1976, %v1968, %v1973
      %v1978 = vmul.f32 %v1961, %v1977
      %v1980 = vperm.slane %v1954, 0
      %v1982 = vmul.f32 %v1978, %v1980
      %v1984 = vperm.slane %v1956, 0
      %v1986 = vadd.f32 %v1982, %v1984
      %v1987 = vld [vmem:[%s19] sm:$0xff]
      %v1988 = vld [vmem:[%s19 + $0x8] sm:$0xff]
      %v1989 = vld [vmem:[%s19 + $0x10] sm:$0xff]
      %v1990 = vld [vmem:[%s19 + $0x18] sm:$0xff]
      %v1991 = vld [vmem:[%s20] sm:$0x1]
      %v1993 = vsel %vm779, %v1986, 0
      %1995 = vmatpush.msra.mxu0 0.0
      %1996 = vmatpush.msra.mxu0 0.0
      %1997 = vmatpush.msra.mxu0 0.0
      %1998 = vmatpush.msra.mxu0 0.0
      %1999 = vmatpush.msra.mxu0 0.0
      %2000 = vmatpush.msra.mxu0 0.0
      %2001 = vmatpush.msra.mxu0 0.0
      %2002 = vmatpush.msra.mxu0 0.0
      %2003 = vmatpush.msra.mxu0 0.0
      %2004 = vmatpush.msra.mxu0 0.0
      %2005 = vmatpush.msra.mxu0 0.0
      %2006 = vmatpush.msra.mxu0 0.0
      %2007 = vmatpush.msra.mxu0 %v1990
      %2008 = vmatpush.msra.mxu0 %v1989
      %2009 = vmatpush.msra.mxu0 %v1988
      %2010 = vmatpush.msra.mxu0 %v1987
      %2011 = vmatmul.f32.gmra.mxu0 %v1993
      %v2012 = vpop.f32.mrf.mxu0
      %v2013 = vadd.f32 %v1991, %v2012
      %2014 = vdwg.mxu0
      %v2015 = vtanh.pop %v2013
      %v2016 = vld [vmem:[%s21] sm:$0xff]
      %v2017 = vld [vmem:[%s21 + $0x8] sm:$0xff]
      %v2018 = vld [vmem:[%s21 + $0x10] sm:$0xff]
      %v2019 = vld [vmem:[%s21 + $0x18] sm:$0xff]
      %v2020 = vld [vmem:[%s22] sm:$0x1]
      %v2022 = vsel %vm779, %v2015, 0
      %2024 = vmatpush.msra.mxu0 0.0
      %2025 = vmatpush.msra.mxu0 0.0
      %2026 = vmatpush.msra.mxu0 0.0
      %2027 = vmatpush.msra.mxu0 0.0
      %2028 = vmatpush.msra.mxu0 0.0
      %2029 = vmatpush.msra.mxu0 0.0
      %2030 = vmatpush.msra.mxu0 0.0
      %2031 = vmatpush.msra.mxu0 0.0
      %2032 = vmatpush.msra.mxu0 0.0
      %2033 = vmatpush.msra.mxu0 0.0
      %2034 = vmatpush.msra.mxu0 0.0
      %2035 = vmatpush.msra.mxu0 0.0
      %2036 = vmatpush.msra.mxu0 %v2019
      %2037 = vmatpush.msra.mxu0 %v2018
      %2038 = vmatpush.msra.mxu0 %v2017
      %2039 = vmatpush.msra.mxu0 %v2016
      %2040 = vmatmul.f32.gmra.mxu0 %v2022
      %v2041 = vpop.f32.mrf.mxu0
      %v2042 = vadd.f32 %v2020, %v2041
      %2043 = vdwg.mxu0
      %v2044 = vperm.slane %v2042, 0
      %2045 = vst [vmem:[%s649] sm:$0xff] %v2044
      %p2046 = scmp.lt.s32.totalorder %s47, 1
      %s2047 = scalar_select %p2046, %s47, 1
      %s2048 = smul.addr %s2047, 8
      %s2049 = scalar_lea.vmem %s23, %s2048
      // Predicated region
      $region105: #{bert_classifier_forward.1} parent=103 // pred_check
        %p2050 = pneg %p506
      $region106: #{bert_classifier_forward.1} parent=103 // pred_check_branch
        %2052 = sbr.rel (%p2050) target = $region108
      $region107: #{bert_classifier_forward.1} parent=103 // pred_region
        _
      $region108: #{bert_classifier_forward.1} parent=103 // pred_fallthru
        _
    $region104: #{bert_classifier_forward.1} parent=5 // pred_fallthru
      _
    %p2053 = scmp.le.s32.totalorder 2, %s42
    // Predicated region
    $region109: #{bert_classifier_forward.1} parent=5 // pred_check
      %p2054 = pneg %p2053
    $region110: #{bert_classifier_forward.1} parent=5 // pred_check_branch
      %2056 = sbr.rel (%p2054) target = $region112
    $region111: #{bert_classifier_forward.1} parent=5 // pred_region
      %s2057 = ssub.s32 %s42, 2
      // Predicated region
      $region113: #{bert_classifier_forward.1} parent=111 // pred_check
        %p2058 = pneg %p512
      $region114: #{bert_classifier_forward.1} parent=111 // pred_check_branch
        %2060 = sbr.rel (%p2058) target = $region116
      $region115: #{bert_classifier_forward.1} parent=111 // pred_region
        %p2061 = scmp.lt.s32.totalorder %s48, 1
        %s2062 = scalar_select %p2061, %s48, 1
        %s2063 = smul.addr %s2062, 8
        %s2064 = scalar_lea.vmem %s23, %s2063
      $region116: #{bert_classifier_forward.1} parent=111 // pred_fallthru
        _
    $region112: #{bert_classifier_forward.1} parent=5 // pred_fallthru
      _
  $region6: #{bert_classifier_forward.1} parent=0 // loop_footer
    %s46 = sadd.s32 1, %s42
  $region7: #{bert_classifier_forward.1} parent=0 // loop_footer_branch
    %41 = sbr.rel target = $region3
  $region8: #{bert_classifier_forward.1} parent=0 // loop_exit
    _

</llo_original>
